<compile_context>
chip_gen: v7x
topology: tpu7x:2x2x1
jax: 0.10.0
libtpu: 0.0.40
codegen_flags: <defaults>
</compile_context>

<pallas_src>
import numpy as np
import jax
import jax.numpy as jnp
from jax.experimental import pallas as pl
from jax.experimental.pallas import tpu as pltpu


def _round_up(x, m):
    return ((x + m - 1) // m) * m


# ----------------------------------------------------------------------------
# Fused Pallas kernel: the entire forward pass (eval mode)
# ----------------------------------------------------------------------------
def _convnet_kernel(x_ref, w1_ref, b1_ref, w2_ref, b2_ref,
                    wf1_ref, bf1_ref, wf2_ref, bf2_ref, o_ref):
    n1 = w1_ref.shape[1] // 4          # lanes per conv1 pool-parity block (384)
    n2 = w2_ref.shape[1] // 4          # lanes per conv2 pool-parity block (128)

    # conv1 (+bias) -> 2x2 maxpool -> relu  ==  relu(max_p(slice_p(x @ W1)) + b1)
    x = x_ref[...].astype(jnp.bfloat16)
    y = jnp.dot(x, w1_ref[...], preferred_element_type=jnp.float32)      # (tb, 4*n1)
    y = jnp.maximum(jnp.maximum(y[:, 0 * n1:1 * n1], y[:, 1 * n1:2 * n1]),
                    jnp.maximum(y[:, 2 * n1:3 * n1], y[:, 3 * n1:4 * n1]))
    a1 = jnp.maximum(y + b1_ref[...], 0.0)                               # (tb, n1) NHWC-flat

    # conv2 (+bias) -> Dropout2d (eval identity) -> 2x2 maxpool -> relu
    # TODO(synk): Dropout2d / F.dropout are eval-mode identities here; training-mode
    #             RNG dropout (pltpu.prng_seed / prng_random_bits) is not implemented.
    z = jnp.dot(a1.astype(jnp.bfloat16), w2_ref[...],
                preferred_element_type=jnp.float32)                      # (tb, 4*n2)
    z = jnp.maximum(jnp.maximum(z[:, 0 * n2:1 * n2], z[:, 1 * n2:2 * n2]),
                    jnp.maximum(z[:, 2 * n2:3 * n2], z[:, 3 * n2:4 * n2]))
    a2 = jnp.maximum(z + b2_ref[...], 0.0)                               # (tb, n2) NHWC-flat

    # fc1 + relu (flatten permutation + K/N lane padding folded into the packed weight)
    h = jnp.dot(a2.astype(jnp.bfloat16), wf1_ref[...],
                preferred_element_type=jnp.float32) + bf1_ref[...]
    h = jnp.maximum(h, 0.0)
    # dropout before fc2 is an eval-mode identity; fc2:
    o = jnp.dot(h.astype(jnp.bfloat16), wf2_ref[...],
                preferred_element_type=jnp.float32) + bf2_ref[...]
    o_ref[...] = o.astype(o_ref.dtype)


# ----------------------------------------------------------------------------
# One-time host-side parameter packing (all layout work folded in here)
# ----------------------------------------------------------------------------
def _pack_conv_pool(w, b, in_h, in_w, in_layout, k_pad=None, lane_align=128):
    """Fold `valid KxK conv (stride 1) + bias -> 2x2/2 maxpool` into ONE wide GEMM.

    w: (Cout, Cin, K, K) torch-layout filter, b: (Cout,)
    in_layout: "nchw" -> GEMM row = (ci*in_h + h)*in_w + w
               "nhwc" -> GEMM row = (h*in_w + w)*Cin + ci
    Returns (w_wide, b_pad, n_blk, (PH, PW)) with
      w_wide: (k_pad, 4*n_blk) f32; parity p = 2*dy+dx occupies lanes
              [p*n_blk, p*n_blk + PH*PW*Cout), column order (po, pw, co);
              n_blk = round_up(PH*PW*Cout, lane_align); unused rows/cols are zero.
      b_pad:  (1, n_blk) bias tiled over (po, pw), zero padded.
    Then relu(max_p((X @ w_wide)[:, p*n_blk:(p+1)*n_blk]) + b_pad) equals the
    NHWC-flat pooled/relu'd conv output, zero-padded to n_blk lanes.
    """
    w = np.asarray(w, np.float32)
    b = np.asarray(b, np.float32)
    cout, cin, k, _ = w.shape
    oh, ow = in_h - k + 1, in_w - k + 1
    assert oh % 2 == 0 and ow % 2 == 0, "2x2 maxpool needs even conv output dims"
    ph, pw = oh // 2, ow // 2
    n_true = ph * pw * cout
    n_blk = _round_up(n_true, lane_align)
    k_rows = in_h * in_w * cin
    k_pad = k_rows if k_pad is None else k_pad
    assert k_pad >= k_rows
    w_wide = np.zeros((k_pad, 4 * n_blk), np.float32)
    for dy in range(2):
        for dx in range(2):
            base = (2 * dy + dx) * n_blk
            for po in range(ph):
                for pq in range(pw):
                    col = base + (po * pw + pq) * cout
                    oy, ox = 2 * po + dy, 2 * pq + dx
                    for a in range(k):
                        for bb in range(k):
                            hy, hx = oy + a, ox + bb
                            for ci in range(cin):
                                if in_layout == "nchw":
                                    row = (ci * in_h + hy) * in_w + hx
                                else:
                                    row = (hy * in_w + hx) * cin + ci
                                w_wide[row, col:col + cout] = w[:, ci, a, bb]
    b_pad = np.zeros((1, n_blk), np.float32)
    b_pad[0, :n_true] = np.tile(b, ph * pw)
    return w_wide, b_pad, n_blk, (ph, pw)


def pack_params(params, im_size):
    """Pack torch-layout parameters into bf16 GEMM operands for the fused kernel."""
    # conv1: GEMM rows are the NCHW-flat image (x.reshape(n, -1)).
    w1, b1, nb1, (ph1, pw1) = _pack_conv_pool(
        params["conv1_w"], params["conv1_b"], im_size, im_size, in_layout="nchw")
    # conv2: GEMM rows are a1's NHWC-flat columns, K padded to nb1 (a1's lane width).
    w2, b2, nb2, (ph2, pw2) = _pack_conv_pool(
        params["conv2_w"], params["conv2_b"], ph1, pw1, in_layout="nhwc", k_pad=nb1)
    c2 = int(params["conv2_w"].shape[0])
    num_dense = ph2 * pw2 * c2
    assert num_dense == (im_size // 4 - 3) ** 2 * c2

    # fc1: torch flattens the pooled map in NCHW (c,h,w) order; a2 is NHWC-flat
    # (h,w,c) padded to nb2 lanes.  Fold permutation + transpose + padding in.
    fc1_w = np.asarray(params["fc1_w"], np.float32)            # (hidden, num_dense)
    hidden = fc1_w.shape[0]
    hid_pad = _round_up(hidden, 128)
    wf1 = fc1_w.reshape(hidden, c2, ph2, pw2).transpose(2, 3, 1, 0)
    wf1 = wf1.reshape(num_dense, hidden)
    wf1_p = np.zeros((nb2, hid_pad), np.float32)
    wf1_p[:num_dense, :hidden] = wf1
    bf1_p = np.zeros((1, hid_pad), np.float32)
    bf1_p[0, :hidden] = np.asarray(params["fc1_b"], np.float32)

    fc2_w = np.asarray(params["fc2_w"], np.float32)            # (num_classes, hidden)
    num_classes = fc2_w.shape[0]
    ncls_pad = _round_up(num_classes, 128)
    wf2_p = np.zeros((hid_pad, ncls_pad), np.float32)
    wf2_p[:hidden, :num_classes] = fc2_w.T
    bf2_p = np.zeros((1, ncls_pad), np.float32)
    bf2_p[0, :num_classes] = np.asarray(params["fc2_b"], np.float32)

    bf16 = jnp.bfloat16
    return dict(w1=jnp.asarray(w1, bf16), b1=jnp.asarray(b1),
                w2=jnp.asarray(w2, bf16), b2=jnp.asarray(b2),
                wf1=jnp.asarray(wf1_p, bf16), bf1=jnp.asarray(bf1_p),
                wf2=jnp.asarray(wf2_p, bf16), bf2=jnp.asarray(bf2_p))


# ----------------------------------------------------------------------------
# Forward pass wrapper (single pallas_call; no forward-time layout glue)
# ----------------------------------------------------------------------------
def _pick_batch_tile(n):
    """Batch tile: multiple of 8, <= 256, and >= 2 grid blocks whenever n > 8 so the
    'parallel' grid axis can shard across both v7x TensorCores."""
    if n <= 8:
        return n
    return min(256, _round_up((n + 1) // 2, 8))


def convnet_forward(x_nchw, packed, num_classes):
    n = x_nchw.shape[0]
    k1 = packed["w1"].shape[0]
    x2d = x_nchw.reshape(n, -1).astype(jnp.float32)     # free row-major NCHW flatten
    assert x2d.shape[1] == k1, (x2d.shape, k1)

    tb = _pick_batch_tile(n)
    grid_n = pl.cdiv(n, tb)
    n_pad = grid_n * tb
    if n_pad != n:
        x2d = jnp.pad(x2d, ((0, n_pad - n), (0, 0)))    # ragged last block -> zero rows

    ncls_pad = packed["wf2"].shape[1]
    operands = (x2d, packed["w1"], packed["b1"], packed["w2"], packed["b2"],
                packed["wf1"], packed["bf1"], packed["wf2"], packed["bf2"])

    flops = 2 * n_pad * sum(int(packed[k].shape[0]) * int(packed[k].shape[1])
                            for k in ("w1", "w2", "wf1", "wf2"))
    bytes_accessed = int(sum(int(a.size) * a.dtype.itemsize for a in operands)
                         + n_pad * ncls_pad * 4)

    in_specs = [
        pl.BlockSpec((tb, k1), lambda i: (i, 0)),
        pl.BlockSpec(packed["w1"].shape, lambda i: (0, 0)),
        pl.BlockSpec(packed["b1"].shape, lambda i: (0, 0)),
        pl.BlockSpec(packed["w2"].shape, lambda i: (0, 0)),
        pl.BlockSpec(packed["b2"].shape, lambda i: (0, 0)),
        pl.BlockSpec(packed["wf1"].shape, lambda i: (0, 0)),
        pl.BlockSpec(packed["bf1"].shape, lambda i: (0, 0)),
        pl.BlockSpec(packed["wf2"].shape, lambda i: (0, 0)),
        pl.BlockSpec(packed["bf2"].shape, lambda i: (0, 0)),
    ]
    out = pl.pallas_call(
        _convnet_kernel,
        out_shape=jax.ShapeDtypeStruct((n_pad, ncls_pad), jnp.float32),
        grid=(grid_n,),
        in_specs=in_specs,
        out_specs=pl.BlockSpec((tb, ncls_pad), lambda i: (i, 0)),
        compiler_params=pltpu.CompilerParams(dimension_semantics=("parallel",)),
        cost_estimate=pl.CostEstimate(flops=flops, transcendentals=0,
                                      bytes_accessed=bytes_accessed),
    )(*operands)
    return out[:n, :num_classes]                         # drop batch pad + lane pad


# ----------------------------------------------------------------------------
# Plain-JAX reference of the PyTorch forward (eval mode), for self-check only
# ----------------------------------------------------------------------------
def reference_forward(x_nchw, params):
    hp = jax.lax.Precision.HIGHEST
    y = jax.lax.conv_general_dilated(
        x_nchw, params["conv1_w"], (1, 1), "VALID",
        dimension_numbers=("NCHW", "OIHW", "NCHW"), precision=hp)
    y = y + params["conv1_b"][None, :, None, None]
    y = jax.lax.reduce_window(y, -jnp.inf, jax.lax.max,
                              (1, 1, 2, 2), (1, 1, 2, 2), "VALID")
    y = jnp.maximum(y, 0.0)
    y = jax.lax.conv_general_dilated(
        y, params["conv2_w"], (1, 1), "VALID",
        dimension_numbers=("NCHW", "OIHW", "NCHW"), precision=hp)
    y = y + params["conv2_b"][None, :, None, None]
    y = jax.lax.reduce_window(y, -jnp.inf, jax.lax.max,
                              (1, 1, 2, 2), (1, 1, 2, 2), "VALID")
    y = jnp.maximum(y, 0.0)
    y = y.reshape(y.shape[0], -1)                       # torch x.view(-1, num_dense)
    y = jnp.maximum(jnp.dot(y, params["fc1_w"].T, precision=hp)
                    + params["fc1_b"], 0.0)
    y = jnp.dot(y, params["fc2_w"].T, precision=hp) + params["fc2_b"]
    return y


# ----------------------------------------------------------------------------
# Deterministic parameter init (torch layout) + smoke test
# ----------------------------------------------------------------------------
def init_params(key, in_channels, im_size, num_classes):
    num_dense = (im_size // 4 - 3) ** 2 * 20
    ks = jax.random.split(key, 8)
    return {
        "conv1_w": 0.1 * jax.random.normal(ks[0], (10, in_channels, 5, 5), jnp.float32),
        "conv1_b": 0.1 * jax.random.normal(ks[1], (10,), jnp.float32),
        "conv2_w": 0.1 * jax.random.normal(ks[2], (20, 10, 5, 5), jnp.float32),
        "conv2_b": 0.1 * jax.random.normal(ks[3], (20,), jnp.float32),
        "fc1_w":   0.1 * jax.random.normal(ks[4], (50, num_dense), jnp.float32),
        "fc1_b":   0.1 * jax.random.normal(ks[5], (50,), jnp.float32),
        "fc2_w":   0.1 * jax.random.normal(ks[6], (num_classes, 50), jnp.float32),
        "fc2_b":   0.1 * jax.random.normal(ks[7], (num_classes,), jnp.float32),
    }


if __name__ == "__main__":
    batch, in_channels, im_size, num_classes = 2, 4, 16, 10

    key = jax.random.PRNGKey(0)
    kx, kp = jax.random.split(key)
    x = jax.random.normal(kx, (batch, in_channels, im_size, im_size), jnp.float32)
    params = init_params(kp, in_channels, im_size, num_classes)

    packed = pack_params(params, im_size)              # one-time host-side packing

    fwd = jax.jit(convnet_forward, static_argnames=("num_classes",))
    out = fwd(x, packed, num_classes=num_classes)
    jax.block_until_ready(out)
    assert out.shape == (batch, num_classes), out.shape

    # Numerical self-check against the eval-mode PyTorch semantics (f32 reference).
    # bf16 MXU operands (f32 accumulation) introduce a small, expected numerical
    # delta, hence the 2e-2 tolerance instead of the old 1e-3.
    ref = np.asarray(reference_forward(x, params))
    got = np.asarray(out)
    assert np.allclose(got, ref, atol=2e-2, rtol=2e-2), \
        float(np.max(np.abs(got - ref)))

    print("KERNEL_OK")
</pallas_src>

<mosaic_0001>
module attributes {stable_mosaic.version = 11 : i64} {
  func.func @_convnet_kernel(%arg0: i32, %arg1: memref<2x1024xf32, #tpu.memory_space<vmem>>, %arg2: memref<1024x1536xbf16, #tpu.memory_space<vmem>>, %arg3: memref<1x384xf32, #tpu.memory_space<vmem>>, %arg4: memref<384x512xbf16, #tpu.memory_space<vmem>>, %arg5: memref<1x128xf32, #tpu.memory_space<vmem>>, %arg6: memref<128x128xbf16, #tpu.memory_space<vmem>>, %arg7: memref<1x128xf32, #tpu.memory_space<vmem>>, %arg8: memref<128x128xbf16, #tpu.memory_space<vmem>>, %arg9: memref<1x128xf32, #tpu.memory_space<vmem>>, %arg10: memref<2x128xf32, #tpu.memory_space<vmem>>) attributes {dimension_semantics = [#tpu.dimension_semantics<parallel>], iteration_bounds = array<i64: 1>, scalar_prefetch = 0 : i64, scratch_operands = 0 : i64, tpu.core_type = #tpu.core_type<tc>, window_params = [{transform_indices = @transform_0, window_bounds = array<i64: 2, 1024>}, {pipeline_mode = #tpu.pipeline_mode<synchronous>, transform_indices = @transform_1, window_bounds = array<i64: 1024, 1536>}, {pipeline_mode = #tpu.pipeline_mode<synchronous>, transform_indices = @transform_2, window_bounds = array<i64: 1, 384>}, {pipeline_mode = #tpu.pipeline_mode<synchronous>, transform_indices = @transform_3, window_bounds = array<i64: 384, 512>}, {pipeline_mode = #tpu.pipeline_mode<synchronous>, transform_indices = @transform_4, window_bounds = array<i64: 1, 128>}, {pipeline_mode = #tpu.pipeline_mode<synchronous>, transform_indices = @transform_5, window_bounds = array<i64: 128, 128>}, {pipeline_mode = #tpu.pipeline_mode<synchronous>, transform_indices = @transform_6, window_bounds = array<i64: 1, 128>}, {pipeline_mode = #tpu.pipeline_mode<synchronous>, transform_indices = @transform_7, window_bounds = array<i64: 128, 128>}, {pipeline_mode = #tpu.pipeline_mode<synchronous>, transform_indices = @transform_8, window_bounds = array<i64: 1, 128>}, {transform_indices = @transform_9, window_bounds = array<i64: 2, 128>}]} {
    %c0 = arith.constant 0 : index
    %c0_0 = arith.constant 0 : index
    %0 = vector.load %arg1[%c0, %c0_0] : memref<2x1024xf32, #tpu.memory_space<vmem>>, vector<2x1024xf32>
    %1 = arith.truncf %0 : vector<2x1024xf32> to vector<2x1024xbf16>
    %c0_1 = arith.constant 0 : index
    %c0_2 = arith.constant 0 : index
    %2 = vector.load %arg2[%c0_1, %c0_2] : memref<1024x1536xbf16, #tpu.memory_space<vmem>>, vector<1024x1536xbf16>
    %cst = arith.constant dense<0.000000e+00> : vector<2x1536xf32>
    %3 = tpu.matmul %1, %2, %cst {dimension_numbers = #tpu.dot_dimension_numbers<[1], [0], [0], [1], [0, 0, 1, 1], [], []>} : vector<2x1024xbf16>, vector<1024x1536xbf16>, vector<2x1536xf32> -> vector<2x1536xf32>
    %4 = vector.extract_strided_slice %3 {offsets = [0, 0], sizes = [2, 384], strides = [1, 1]} : vector<2x1536xf32> to vector<2x384xf32>
    %5 = vector.extract_strided_slice %3 {offsets = [0, 384], sizes = [2, 384], strides = [1, 1]} : vector<2x1536xf32> to vector<2x384xf32>
    %6 = arith.maximumf %4, %5 : vector<2x384xf32>
    %7 = vector.extract_strided_slice %3 {offsets = [0, 768], sizes = [2, 384], strides = [1, 1]} : vector<2x1536xf32> to vector<2x384xf32>
    %8 = vector.extract_strided_slice %3 {offsets = [0, 1152], sizes = [2, 384], strides = [1, 1]} : vector<2x1536xf32> to vector<2x384xf32>
    %9 = arith.maximumf %7, %8 : vector<2x384xf32>
    %10 = arith.maximumf %6, %9 : vector<2x384xf32>
    %c0_3 = arith.constant 0 : index
    %c0_4 = arith.constant 0 : index
    %11 = vector.load %arg3[%c0_3, %c0_4] : memref<1x384xf32, #tpu.memory_space<vmem>>, vector<1x384xf32>
    %12 = vector.broadcast %11 : vector<1x384xf32> to vector<2x384xf32>
    %13 = arith.addf %10, %12 : vector<2x384xf32>
    %cst_5 = arith.constant 0.000000e+00 : f32
    %14 = vector.broadcast %cst_5 : f32 to vector<2x384xf32>
    %15 = arith.maximumf %13, %14 : vector<2x384xf32>
    %16 = arith.truncf %15 : vector<2x384xf32> to vector<2x384xbf16>
    %c0_6 = arith.constant 0 : index
    %c0_7 = arith.constant 0 : index
    %17 = vector.load %arg4[%c0_6, %c0_7] : memref<384x512xbf16, #tpu.memory_space<vmem>>, vector<384x512xbf16>
    %cst_8 = arith.constant dense<0.000000e+00> : vector<2x512xf32>
    %18 = tpu.matmul %16, %17, %cst_8 {dimension_numbers = #tpu.dot_dimension_numbers<[1], [0], [0], [1], [0, 0, 1, 1], [], []>} : vector<2x384xbf16>, vector<384x512xbf16>, vector<2x512xf32> -> vector<2x512xf32>
    %19 = vector.extract_strided_slice %18 {offsets = [0, 0], sizes = [2, 128], strides = [1, 1]} : vector<2x512xf32> to vector<2x128xf32>
    %20 = vector.extract_strided_slice %18 {offsets = [0, 128], sizes = [2, 128], strides = [1, 1]} : vector<2x512xf32> to vector<2x128xf32>
    %21 = arith.maximumf %19, %20 : vector<2x128xf32>
    %22 = vector.extract_strided_slice %18 {offsets = [0, 256], sizes = [2, 128], strides = [1, 1]} : vector<2x512xf32> to vector<2x128xf32>
    %23 = vector.extract_strided_slice %18 {offsets = [0, 384], sizes = [2, 128], strides = [1, 1]} : vector<2x512xf32> to vector<2x128xf32>
    %24 = arith.maximumf %22, %23 : vector<2x128xf32>
    %25 = arith.maximumf %21, %24 : vector<2x128xf32>
    %c0_9 = arith.constant 0 : index
    %c0_10 = arith.constant 0 : index
    %26 = vector.load %arg5[%c0_9, %c0_10] : memref<1x128xf32, #tpu.memory_space<vmem>>, vector<1x128xf32>
    %27 = vector.broadcast %26 : vector<1x128xf32> to vector<2x128xf32>
    %28 = arith.addf %25, %27 : vector<2x128xf32>
    %cst_11 = arith.constant 0.000000e+00 : f32
    %29 = vector.broadcast %cst_11 : f32 to vector<2x128xf32>
    %30 = arith.maximumf %28, %29 : vector<2x128xf32>
    %31 = arith.truncf %30 : vector<2x128xf32> to vector<2x128xbf16>
    %c0_12 = arith.constant 0 : index
    %c0_13 = arith.constant 0 : index
    %32 = vector.load %arg6[%c0_12, %c0_13] : memref<128x128xbf16, #tpu.memory_space<vmem>>, vector<128x128xbf16>
    %cst_14 = arith.constant dense<0.000000e+00> : vector<2x128xf32>
    %33 = tpu.matmul %31, %32, %cst_14 {dimension_numbers = #tpu.dot_dimension_numbers<[1], [0], [0], [1], [0, 0, 1, 1], [], []>} : vector<2x128xbf16>, vector<128x128xbf16>, vector<2x128xf32> -> vector<2x128xf32>
    %c0_15 = arith.constant 0 : index
    %c0_16 = arith.constant 0 : index
    %34 = vector.load %arg7[%c0_15, %c0_16] : memref<1x128xf32, #tpu.memory_space<vmem>>, vector<1x128xf32>
    %35 = vector.broadcast %34 : vector<1x128xf32> to vector<2x128xf32>
    %36 = arith.addf %33, %35 : vector<2x128xf32>
    %cst_17 = arith.constant 0.000000e+00 : f32
    %37 = vector.broadcast %cst_17 : f32 to vector<2x128xf32>
    %38 = arith.maximumf %36, %37 : vector<2x128xf32>
    %39 = arith.truncf %38 : vector<2x128xf32> to vector<2x128xbf16>
    %c0_18 = arith.constant 0 : index
    %c0_19 = arith.constant 0 : index
    %40 = vector.load %arg8[%c0_18, %c0_19] : memref<128x128xbf16, #tpu.memory_space<vmem>>, vector<128x128xbf16>
    %cst_20 = arith.constant dense<0.000000e+00> : vector<2x128xf32>
    %41 = tpu.matmul %39, %40, %cst_20 {dimension_numbers = #tpu.dot_dimension_numbers<[1], [0], [0], [1], [0, 0, 1, 1], [], []>} : vector<2x128xbf16>, vector<128x128xbf16>, vector<2x128xf32> -> vector<2x128xf32>
    %c0_21 = arith.constant 0 : index
    %c0_22 = arith.constant 0 : index
    %42 = vector.load %arg9[%c0_21, %c0_22] : memref<1x128xf32, #tpu.memory_space<vmem>>, vector<1x128xf32>
    %43 = vector.broadcast %42 : vector<1x128xf32> to vector<2x128xf32>
    %44 = arith.addf %41, %43 : vector<2x128xf32>
    %c0_23 = arith.constant 0 : index
    %c0_24 = arith.constant 0 : index
    %45 = vector.load %arg10[%c0_23, %c0_24] : memref<2x128xf32, #tpu.memory_space<vmem>>, vector<2x128xf32>
    tpu.vector_store %arg10[%c0_23, %c0_24], %44 {strides = array<i32>} : memref<2x128xf32, #tpu.memory_space<vmem>>, vector<2x128xf32>,
    return
  }
  func.func @transform_0(%arg0: i32) -> (i32, i32) {
    %c0_i32 = arith.constant 0 : i32
    %c0_i32_0 = arith.constant 0 : i32
    return %arg0, %c0_i32 : i32, i32
  }
  func.func @transform_1(%arg0: i32) -> (i32, i32) {
    %c0_i32 = arith.constant 0 : i32
    %c0_i32_0 = arith.constant 0 : i32
    %c0_i32_1 = arith.constant 0 : i32
    return %c0_i32, %c0_i32_0 : i32, i32
  }
  func.func @transform_2(%arg0: i32) -> (i32, i32) {
    %c0_i32 = arith.constant 0 : i32
    %c0_i32_0 = arith.constant 0 : i32
    %c0_i32_1 = arith.constant 0 : i32
    return %c0_i32, %c0_i32_0 : i32, i32
  }
  func.func @transform_3(%arg0: i32) -> (i32, i32) {
    %c0_i32 = arith.constant 0 : i32
    %c0_i32_0 = arith.constant 0 : i32
    %c0_i32_1 = arith.constant 0 : i32
    return %c0_i32, %c0_i32_0 : i32, i32
  }
  func.func @transform_4(%arg0: i32) -> (i32, i32) {
    %c0_i32 = arith.constant 0 : i32
    %c0_i32_0 = arith.constant 0 : i32
    %c0_i32_1 = arith.constant 0 : i32
    return %c0_i32, %c0_i32_0 : i32, i32
  }
  func.func @transform_5(%arg0: i32) -> (i32, i32) {
    %c0_i32 = arith.constant 0 : i32
    %c0_i32_0 = arith.constant 0 : i32
    %c0_i32_1 = arith.constant 0 : i32
    return %c0_i32, %c0_i32_0 : i32, i32
  }
  func.func @transform_6(%arg0: i32) -> (i32, i32) {
    %c0_i32 = arith.constant 0 : i32
    %c0_i32_0 = arith.constant 0 : i32
    %c0_i32_1 = arith.constant 0 : i32
    return %c0_i32, %c0_i32_0 : i32, i32
  }
  func.func @transform_7(%arg0: i32) -> (i32, i32) {
    %c0_i32 = arith.constant 0 : i32
    %c0_i32_0 = arith.constant 0 : i32
    %c0_i32_1 = arith.constant 0 : i32
    return %c0_i32, %c0_i32_0 : i32, i32
  }
  func.func @transform_8(%arg0: i32) -> (i32, i32) {
    %c0_i32 = arith.constant 0 : i32
    %c0_i32_0 = arith.constant 0 : i32
    %c0_i32_1 = arith.constant 0 : i32
    return %c0_i32, %c0_i32_0 : i32, i32
  }
  func.func @transform_9(%arg0: i32) -> (i32, i32) {
    %c0_i32 = arith.constant 0 : i32
    %c0_i32_0 = arith.constant 0 : i32
    return %arg0, %c0_i32 : i32, i32
  }
}

</mosaic_0001>

<llo_original>
// kernel: convnet_forward.1
$region0: #{convnet_forward.1}
  #allocation0 [shape = 'u32[]', space=smem, size = 0x4, offset = 0x4, fixed_abs, tag = 'smem constant byte address 0x4 - core index']
  #allocation1 [shape = 'u32[144,128]{1,0:T(1,128)}', space=vmem, size = 0x12000, scoped, tag = 'internal scratch']
  %s0 = inlined_call_operand.vmem [shape: f32[2,1024], index: 0, kind: input, shape index: {}]
  %s1 = inlined_call_operand.hbm [shape: bf16[1024,1536], index: 1, kind: input, shape index: {}]
  %s2 = inlined_call_operand.hbm [shape: f32[1,384], index: 2, kind: input, shape index: {}]
  %s3 = inlined_call_operand.hbm [shape: bf16[384,512], index: 3, kind: input, shape index: {}]
  %s4 = inlined_call_operand.hbm [shape: f32[1,128], index: 4, kind: input, shape index: {}]
  %s5 = inlined_call_operand.hbm [shape: bf16[128,128], index: 5, kind: input, shape index: {}]
  %s6 = inlined_call_operand.hbm [shape: f32[1,128], index: 6, kind: input, shape index: {}]
  %s7 = inlined_call_operand.hbm [shape: bf16[128,128], index: 7, kind: input, shape index: {}]
  %s8 = inlined_call_operand.hbm [shape: f32[1,128], index: 8, kind: input, shape index: {}]
  %s9 = inlined_call_operand.hbm [shape: f32[2,128], index: 9, kind: output, shape index: {}]
  %s10 = sld [smem:[#allocation0]]
  $region78: #{convnet_forward.1} parent=0
    _
  %s12 = ssub.s32 1, %s10
  %s13 = scalar_select 0, %s12, %s10
  $region1: #{convnet_forward.1} parent=0
    #allocation2 [shape = 'u8[3145728]{0}', space=vmem, size = 0x300000, scoped, tag = 'input window, operand 1, single buffered']
    #allocation3 [shape = 's32[1]{0}', space=sflag, size = 0x4, scoped, tag = 'scoped memory for convnet_forward.1']
    #allocation4 [shape = 's32[1]{0}', space=sflag, size = 0x4, scoped, tag = 'scoped memory for convnet_forward.1']
    #allocation5 [shape = 'u8[1536]{0}', space=vmem, size = 0x800, scoped, tag = 'input window, operand 2, single buffered']
    #allocation6 [shape = 's32[1]{0}', space=sflag, size = 0x4, scoped, tag = 'scoped memory for convnet_forward.1']
    #allocation7 [shape = 'u8[393216]{0}', space=vmem, size = 0x60000, scoped, tag = 'input window, operand 3, single buffered']
    #allocation8 [shape = 'u8[512]{0}', space=vmem, size = 0x400, scoped, tag = 'input window, operand 4, single buffered']
    #allocation9 [shape = 's32[1]{0}', space=sflag, size = 0x4, scoped, tag = 'scoped memory for convnet_forward.1']
    #allocation10 [shape = 'u8[32768]{0}', space=vmem, size = 0x8000, scoped, tag = 'input window, operand 5, single buffered']
    #allocation11 [shape = 'u8[512]{0}', space=vmem, size = 0x400, scoped, tag = 'input window, operand 6, single buffered']
    #allocation12 [shape = 's32[1]{0}', space=sflag, size = 0x4, scoped, tag = 'scoped memory for convnet_forward.1']
    #allocation13 [shape = 'u8[32768]{0}', space=vmem, size = 0x8000, scoped, tag = 'input window, operand 7, single buffered']
    #allocation14 [shape = 'u8[512]{0}', space=vmem, size = 0x400, scoped, tag = 'input window, operand 8, single buffered']
    #allocation15 [shape = 's32[1]{0}', space=sflag, size = 0x4, scoped, tag = 'scoped memory for convnet_forward.1']
    #allocation16 [shape = 'u8[1024]{0}', space=vmem, size = 0x400, scoped, tag = 'output window, operand 0, single buffered']
    %14 = vsyncpa [#allocation3], 0
    %15 = vsyncpa [#allocation6], 0
    %16 = vsyncpa [#allocation9], 0
    %17 = vsyncpa [#allocation12], 0
    %18 = vsyncpa [#allocation15], 0
    %19 = vsyncpa [#allocation4], 0
    // Predicated region
    $region2: #{convnet_forward.1} parent=1 // pred_check
      _
    $region3: #{convnet_forward.1} parent=1 // pred_check_branch
      %21 = sbr.rel (0) target = $region5
    $region4: #{convnet_forward.1} parent=1 // pred_region
      _
    $region5: #{convnet_forward.1} parent=1 // pred_fallthru
      _
    // Predicated region
    $region6: #{convnet_forward.1} parent=1 // pred_check
      _
    $region7: #{convnet_forward.1} parent=1 // pred_check_branch
      %23 = sbr.rel (0) target = $region9
    $region8: #{convnet_forward.1} parent=1 // pred_region
      %s25 = ssub.s32 98304, 98304
      %26 = vsyncadd [#allocation3], %s25
      %s27 = sshll.u32 [#allocation2], 4
      %s28 = int_to_ptr.vmem [resolvable:$true] %s27
      %33 = dma.hbm_to_vmem [thread:$0]  %s1, 98304, %s28, [#allocation3], 768, 768, 48
    $region9: #{convnet_forward.1} parent=1 // pred_fallthru
      _
    // Predicated region
    $region10: #{convnet_forward.1} parent=1 // pred_check
      _
    $region11: #{convnet_forward.1} parent=1 // pred_check_branch
      %35 = sbr.rel (0) target = $region13
    $region12: #{convnet_forward.1} parent=1 // pred_region
      %s37 = ssub.s32 48, 48
      %38 = vsyncadd [#allocation6], %s37
      %s40 = sshll.u32 [#allocation5], 4
      %s41 = int_to_ptr.vmem [resolvable:$true] %s40
      %43 = dma.hbm_to_vmem [thread:$0]  %s2, 48, %s41, [#allocation6]
    $region13: #{convnet_forward.1} parent=1 // pred_fallthru
      _
    // Predicated region
    $region14: #{convnet_forward.1} parent=1 // pred_check
      _
    $region15: #{convnet_forward.1} parent=1 // pred_check_branch
      %45 = sbr.rel (0) target = $region17
    $region16: #{convnet_forward.1} parent=1 // pred_region
      %s47 = ssub.s32 12288, 12288
      %48 = vsyncadd [#allocation6], %s47
      %s49 = sshll.u32 [#allocation7], 4
      %s50 = int_to_ptr.vmem [resolvable:$true] %s49
      %55 = dma.hbm_to_vmem [thread:$0]  %s3, 12288, %s50, [#allocation6], 256, 256, 16
    $region17: #{convnet_forward.1} parent=1 // pred_fallthru
      _
    // Predicated region
    $region18: #{convnet_forward.1} parent=1 // pred_check
      _
    $region19: #{convnet_forward.1} parent=1 // pred_check_branch
      %57 = sbr.rel (0) target = $region21
    $region20: #{convnet_forward.1} parent=1 // pred_region
      %s59 = ssub.s32 16, 16
      %60 = vsyncadd [#allocation9], %s59
      %s62 = sshll.u32 [#allocation8], 4
      %s63 = int_to_ptr.vmem [resolvable:$true] %s62
      %65 = dma.hbm_to_vmem [thread:$0]  %s4, 16, %s63, [#allocation9]
    $region21: #{convnet_forward.1} parent=1 // pred_fallthru
      _
    // Predicated region
    $region22: #{convnet_forward.1} parent=1 // pred_check
      _
    $region23: #{convnet_forward.1} parent=1 // pred_check_branch
      %67 = sbr.rel (0) target = $region25
    $region24: #{convnet_forward.1} parent=1 // pred_region
      %s69 = ssub.s32 1024, 1024
      %70 = vsyncadd [#allocation9], %s69
      %s71 = sshll.u32 [#allocation10], 4
      %s72 = int_to_ptr.vmem [resolvable:$true] %s71
      %77 = dma.hbm_to_vmem [thread:$0]  %s5, 1024, %s72, [#allocation9], 64, 64, 4
    $region25: #{convnet_forward.1} parent=1 // pred_fallthru
      _
    // Predicated region
    $region26: #{convnet_forward.1} parent=1 // pred_check
      _
    $region27: #{convnet_forward.1} parent=1 // pred_check_branch
      %79 = sbr.rel (0) target = $region29
    $region28: #{convnet_forward.1} parent=1 // pred_region
      %s81 = ssub.s32 16, 16
      %82 = vsyncadd [#allocation12], %s81
      %s84 = sshll.u32 [#allocation11], 4
      %s85 = int_to_ptr.vmem [resolvable:$true] %s84
      %87 = dma.hbm_to_vmem [thread:$0]  %s6, 16, %s85, [#allocation12]
    $region29: #{convnet_forward.1} parent=1 // pred_fallthru
      _
    // Predicated region
    $region30: #{convnet_forward.1} parent=1 // pred_check
      _
    $region31: #{convnet_forward.1} parent=1 // pred_check_branch
      %89 = sbr.rel (0) target = $region33
    $region32: #{convnet_forward.1} parent=1 // pred_region
      %s91 = ssub.s32 1024, 1024
      %92 = vsyncadd [#allocation12], %s91
      %s93 = sshll.u32 [#allocation13], 4
      %s94 = int_to_ptr.vmem [resolvable:$true] %s93
      %99 = dma.hbm_to_vmem [thread:$0]  %s7, 1024, %s94, [#allocation12], 64, 64, 4
    $region33: #{convnet_forward.1} parent=1 // pred_fallthru
      _
    // Predicated region
    $region34: #{convnet_forward.1} parent=1 // pred_check
      _
    $region35: #{convnet_forward.1} parent=1 // pred_check_branch
      %101 = sbr.rel (0) target = $region37
    $region36: #{convnet_forward.1} parent=1 // pred_region
      %s103 = ssub.s32 16, 16
      %104 = vsyncadd [#allocation15], %s103
      %s106 = sshll.u32 [#allocation14], 4
      %s107 = int_to_ptr.vmem [resolvable:$true] %s106
      %109 = dma.hbm_to_vmem [thread:$0]  %s8, 16, %s107, [#allocation15]
    $region37: #{convnet_forward.1} parent=1 // pred_fallthru
      _
    // Predicated region
    $region38: #{convnet_forward.1} parent=1 // pred_check
      _
    $region39: #{convnet_forward.1} parent=1 // pred_check_branch
      %111 = sbr.rel (0) target = $region41
    $region40: #{convnet_forward.1} parent=1 // pred_region
      %112 = dma.done [#allocation3], 98304
    $region41: #{convnet_forward.1} parent=1 // pred_fallthru
      _
    // Predicated region
    $region42: #{convnet_forward.1} parent=1 // pred_check
      _
    $region43: #{convnet_forward.1} parent=1 // pred_check_branch
      %114 = sbr.rel (0) target = $region45
    $region44: #{convnet_forward.1} parent=1 // pred_region
      %115 = dma.done [#allocation6], 48
    $region45: #{convnet_forward.1} parent=1 // pred_fallthru
      _
    // Predicated region
    $region46: #{convnet_forward.1} parent=1 // pred_check
      _
    $region47: #{convnet_forward.1} parent=1 // pred_check_branch
      %117 = sbr.rel (0) target = $region49
    $region48: #{convnet_forward.1} parent=1 // pred_region
      %118 = dma.done [#allocation6], 12288
    $region49: #{convnet_forward.1} parent=1 // pred_fallthru
      _
    // Predicated region
    $region50: #{convnet_forward.1} parent=1 // pred_check
      _
    $region51: #{convnet_forward.1} parent=1 // pred_check_branch
      %120 = sbr.rel (0) target = $region53
    $region52: #{convnet_forward.1} parent=1 // pred_region
      %121 = dma.done [#allocation9], 16
    $region53: #{convnet_forward.1} parent=1 // pred_fallthru
      _
    // Predicated region
    $region54: #{convnet_forward.1} parent=1 // pred_check
      _
    $region55: #{convnet_forward.1} parent=1 // pred_check_branch
      %123 = sbr.rel (0) target = $region57
    $region56: #{convnet_forward.1} parent=1 // pred_region
      %124 = dma.done [#allocation9], 1024
    $region57: #{convnet_forward.1} parent=1 // pred_fallthru
      _
    // Predicated region
    $region58: #{convnet_forward.1} parent=1 // pred_check
      _
    $region59: #{convnet_forward.1} parent=1 // pred_check_branch
      %126 = sbr.rel (0) target = $region61
    $region60: #{convnet_forward.1} parent=1 // pred_region
      %127 = dma.done [#allocation12], 16
    $region61: #{convnet_forward.1} parent=1 // pred_fallthru
      _
    // Predicated region
    $region62: #{convnet_forward.1} parent=1 // pred_check
      _
    $region63: #{convnet_forward.1} parent=1 // pred_check_branch
      %129 = sbr.rel (0) target = $region65
    $region64: #{convnet_forward.1} parent=1 // pred_region
      %130 = dma.done [#allocation12], 1024
    $region65: #{convnet_forward.1} parent=1 // pred_fallthru
      _
    // Predicated region
    $region66: #{convnet_forward.1} parent=1 // pred_check
      _
    $region67: #{convnet_forward.1} parent=1 // pred_check_branch
      %132 = sbr.rel (0) target = $region69
    $region68: #{convnet_forward.1} parent=1 // pred_region
      %133 = dma.done [#allocation15], 16
    $region69: #{convnet_forward.1} parent=1 // pred_fallthru
      _
    %v135 = vld [vmem:[%s0] sm:$0xff]
    %v136 = vld [vmem:[%s0 + $0x8] sm:$0xff]
    %v139 = vcombine.high %v135, %v135
    %v141 = vunpack.c.l.s4 1983009808
    %v142 = vunpack.c.0.s8 %v141
    %v143 = vlaneseq
    %v144 = vshrl.u32 %v143, 7
    %v145 = vsub.s32 %v142, %v144
    %v146 = vrot.slane %v135, %v145
    %v148 = vunpack.c.l.s4 1983009808
    %v149 = vunpack.c.0.s8 %v148
    %v150 = vlaneseq
    %v151 = vshrl.u32 %v150, 7
    %v152 = vsub.s32 %v149, %v151
    %v153 = vrot.slane %v139, %v152
    %v154 = vcombine.high %v146, %v146
    %v155 = vcombine.high %v153, %v153
    %v156 = vcombine.high %v136, %v136
    %v158 = vunpack.c.l.s4 1983009808
    %v159 = vunpack.c.0.s8 %v158
    %v160 = vlaneseq
    %v161 = vshrl.u32 %v160, 7
    %v162 = vsub.s32 %v159, %v161
    %v163 = vrot.slane %v136, %v162
    %v165 = vunpack.c.l.s4 1983009808
    %v166 = vunpack.c.0.s8 %v165
    %v167 = vlaneseq
    %v168 = vshrl.u32 %v167, 7
    %v169 = vsub.s32 %v166, %v168
    %v170 = vrot.slane %v156, %v169
    %v171 = vcombine.high %v163, %v163
    %v172 = vcombine.high %v170, %v170
    %v181 = vpack.c.bf16 %v146, %v146
    %v182 = vpack.c.bf16 %v154, %v154
    %v183 = vpack.c.bf16 %v153, %v153
    %v184 = vpack.c.bf16 %v155, %v155
    %v185 = vpack.c.bf16 %v163, %v163
    %v186 = vpack.c.bf16 %v171, %v171
    %v187 = vpack.c.bf16 %v170, %v170
    %v188 = vpack.c.bf16 %v172, %v172
    %v189 = vld [vmem:[#allocation2] sm:$0xff]
    %v190 = vld [vmem:[#allocation2 + $0x8] sm:$0xff]
    %v191 = vld [vmem:[#allocation2 + $0x10] sm:$0xff]
    %v192 = vld [vmem:[#allocation2 + $0x18] sm:$0xff]
    %v193 = vld [vmem:[#allocation2 + $0x20] sm:$0xff]
    %v194 = vld [vmem:[#allocation2 + $0x28] sm:$0xff]
    %v195 = vld [vmem:[#allocation2 + $0x30] sm:$0xff]
    %v196 = vld [vmem:[#allocation2 + $0x38] sm:$0xff]
    %v197 = vld [vmem:[#allocation2 + $0x40] sm:$0xff]
    %v198 = vld [vmem:[#allocation2 + $0x48] sm:$0xff]
    %v199 = vld [vmem:[#allocation2 + $0x50] sm:$0xff]
    %v200 = vld [vmem:[#allocation2 + $0x58] sm:$0xff]
    %v201 = vld [vmem:[#allocation2 + $0x60] sm:$0xff]
    %v202 = vld [vmem:[#allocation2 + $0x68] sm:$0xff]
    %v203 = vld [vmem:[#allocation2 + $0x70] sm:$0xff]
    %v204 = vld [vmem:[#allocation2 + $0x78] sm:$0xff]
    %v205 = vld [vmem:[#allocation2 + $0x80] sm:$0xff]
    %v206 = vld [vmem:[#allocation2 + $0x88] sm:$0xff]
    %v207 = vld [vmem:[#allocation2 + $0x90] sm:$0xff]
    %v208 = vld [vmem:[#allocation2 + $0x98] sm:$0xff]
    %v209 = vld [vmem:[#allocation2 + $0xa0] sm:$0xff]
    %v210 = vld [vmem:[#allocation2 + $0xa8] sm:$0xff]
    %v211 = vld [vmem:[#allocation2 + $0xb0] sm:$0xff]
    %v212 = vld [vmem:[#allocation2 + $0xb8] sm:$0xff]
    %v213 = vld [vmem:[#allocation2 + $0xc0] sm:$0xff]
    %v214 = vld [vmem:[#allocation2 + $0xc8] sm:$0xff]
    %v215 = vld [vmem:[#allocation2 + $0xd0] sm:$0xff]
    %v216 = vld [vmem:[#allocation2 + $0xd8] sm:$0xff]
    %v217 = vld [vmem:[#allocation2 + $0xe0] sm:$0xff]
    %v218 = vld [vmem:[#allocation2 + $0xe8] sm:$0xff]
    %v219 = vld [vmem:[#allocation2 + $0xf0] sm:$0xff]
    %v220 = vld [vmem:[#allocation2 + $0xf8] sm:$0xff]
    %v221 = vld [vmem:[#allocation2 + $0x100] sm:$0xff]
    %v222 = vld [vmem:[#allocation2 + $0x108] sm:$0xff]
    %v223 = vld [vmem:[#allocation2 + $0x110] sm:$0xff]
    %v224 = vld [vmem:[#allocation2 + $0x118] sm:$0xff]
    %v225 = vld [vmem:[#allocation2 + $0x120] sm:$0xff]
    %v226 = vld [vmem:[#allocation2 + $0x128] sm:$0xff]
    %v227 = vld [vmem:[#allocation2 + $0x130] sm:$0xff]
    %v228 = vld [vmem:[#allocation2 + $0x138] sm:$0xff]
    %v229 = vld [vmem:[#allocation2 + $0x140] sm:$0xff]
    %v230 = vld [vmem:[#allocation2 + $0x148] sm:$0xff]
    %v231 = vld [vmem:[#allocation2 + $0x150] sm:$0xff]
    %v232 = vld [vmem:[#allocation2 + $0x158] sm:$0xff]
    %v233 = vld [vmem:[#allocation2 + $0x160] sm:$0xff]
    %v234 = vld [vmem:[#allocation2 + $0x168] sm:$0xff]
    %v235 = vld [vmem:[#allocation2 + $0x170] sm:$0xff]
    %v236 = vld [vmem:[#allocation2 + $0x178] sm:$0xff]
    %v237 = vld [vmem:[#allocation2 + $0x180] sm:$0xff]
    %v238 = vld [vmem:[#allocation2 + $0x188] sm:$0xff]
    %v239 = vld [vmem:[#allocation2 + $0x190] sm:$0xff]
    %v240 = vld [vmem:[#allocation2 + $0x198] sm:$0xff]
    %v241 = vld [vmem:[#allocation2 + $0x1a0] sm:$0xff]
    %v242 = vld [vmem:[#allocation2 + $0x1a8] sm:$0xff]
    %v243 = vld [vmem:[#allocation2 + $0x1b0] sm:$0xff]
    %v244 = vld [vmem:[#allocation2 + $0x1b8] sm:$0xff]
    %v245 = vld [vmem:[#allocation2 + $0x1c0] sm:$0xff]
    %v246 = vld [vmem:[#allocation2 + $0x1c8] sm:$0xff]
    %v247 = vld [vmem:[#allocation2 + $0x1d0] sm:$0xff]
    %v248 = vld [vmem:[#allocation2 + $0x1d8] sm:$0xff]
    %v249 = vld [vmem:[#allocation2 + $0x1e0] sm:$0xff]
    %v250 = vld [vmem:[#allocation2 + $0x1e8] sm:$0xff]
    %v251 = vld [vmem:[#allocation2 + $0x1f0] sm:$0xff]
    %v252 = vld [vmem:[#allocation2 + $0x1f8] sm:$0xff]
    %v253 = vld [vmem:[#allocation2 + $0x200] sm:$0xff]
    %v254 = vld [vmem:[#allocation2 + $0x208] sm:$0xff]
    %v255 = vld [vmem:[#allocation2 + $0x210] sm:$0xff]
    %v256 = vld [vmem:[#allocation2 + $0x218] sm:$0xff]
    %v257 = vld [vmem:[#allocation2 + $0x220] sm:$0xff]
    %v258 = vld [vmem:[#allocation2 + $0x228] sm:$0xff]
    %v259 = vld [vmem:[#allocation2 + $0x230] sm:$0xff]
    %v260 = vld [vmem:[#allocation2 + $0x238] sm:$0xff]
    %v261 = vld [vmem:[#allocation2 + $0x240] sm:$0xff]
    %v262 = vld [vmem:[#allocation2 + $0x248] sm:$0xff]
    %v263 = vld [vmem:[#allocation2 + $0x250] sm:$0xff]
    %v264 = vld [vmem:[#allocation2 + $0x258] sm:$0xff]
    %v265 = vld [vmem:[#allocation2 + $0x260] sm:$0xff]
    %v266 = vld [vmem:[#allocation2 + $0x268] sm:$0xff]
    %v267 = vld [vmem:[#allocation2 + $0x270] sm:$0xff]
    %v268 = vld [vmem:[#allocation2 + $0x278] sm:$0xff]
    %v269 = vld [vmem:[#allocation2 + $0x280] sm:$0xff]
    %v270 = vld [vmem:[#allocation2 + $0x288] sm:$0xff]
    %v271 = vld [vmem:[#allocation2 + $0x290] sm:$0xff]
    %v272 = vld [vmem:[#allocation2 + $0x298] sm:$0xff]
    %v273 = vld [vmem:[#allocation2 + $0x2a0] sm:$0xff]
    %v274 = vld [vmem:[#allocation2 + $0x2a8] sm:$0xff]
    %v275 = vld [vmem:[#allocation2 + $0x2b0] sm:$0xff]
    %v276 = vld [vmem:[#allocation2 + $0x2b8] sm:$0xff]
    %v277 = vld [vmem:[#allocation2 + $0x2c0] sm:$0xff]
    %v278 = vld [vmem:[#allocation2 + $0x2c8] sm:$0xff]
    %v279 = vld [vmem:[#allocation2 + $0x2d0] sm:$0xff]
    %v280 = vld [vmem:[#allocation2 + $0x2d8] sm:$0xff]
    %v281 = vld [vmem:[#allocation2 + $0x2e0] sm:$0xff]
    %v282 = vld [vmem:[#allocation2 + $0x2e8] sm:$0xff]
    %v283 = vld [vmem:[#allocation2 + $0x2f0] sm:$0xff]
    %v284 = vld [vmem:[#allocation2 + $0x2f8] sm:$0xff]
    %v285 = vld [vmem:[#allocation2 + $0x300] sm:$0xff]
    %v286 = vld [vmem:[#allocation2 + $0x308] sm:$0xff]
    %v287 = vld [vmem:[#allocation2 + $0x310] sm:$0xff]
    %v288 = vld [vmem:[#allocation2 + $0x318] sm:$0xff]
    %v289 = vld [vmem:[#allocation2 + $0x320] sm:$0xff]
    %v290 = vld [vmem:[#allocation2 + $0x328] sm:$0xff]
    %v291 = vld [vmem:[#allocation2 + $0x330] sm:$0xff]
    %v292 = vld [vmem:[#allocation2 + $0x338] sm:$0xff]
    %v293 = vld [vmem:[#allocation2 + $0x340] sm:$0xff]
    %v294 = vld [vmem:[#allocation2 + $0x348] sm:$0xff]
    %v295 = vld [vmem:[#allocation2 + $0x350] sm:$0xff]
    %v296 = vld [vmem:[#allocation2 + $0x358] sm:$0xff]
    %v297 = vld [vmem:[#allocation2 + $0x360] sm:$0xff]
    %v298 = vld [vmem:[#allocation2 + $0x368] sm:$0xff]
    %v299 = vld [vmem:[#allocation2 + $0x370] sm:$0xff]
    %v300 = vld [vmem:[#allocation2 + $0x378] sm:$0xff]
    %v301 = vld [vmem:[#allocation2 + $0x380] sm:$0xff]
    %v302 = vld [vmem:[#allocation2 + $0x388] sm:$0xff]
    %v303 = vld [vmem:[#allocation2 + $0x390] sm:$0xff]
    %v304 = vld [vmem:[#allocation2 + $0x398] sm:$0xff]
    %v305 = vld [vmem:[#allocation2 + $0x3a0] sm:$0xff]
    %v306 = vld [vmem:[#allocation2 + $0x3a8] sm:$0xff]
    %v307 = vld [vmem:[#allocation2 + $0x3b0] sm:$0xff]
    %v308 = vld [vmem:[#allocation2 + $0x3b8] sm:$0xff]
    %v309 = vld [vmem:[#allocation2 + $0x3c0] sm:$0xff]
    %v310 = vld [vmem:[#allocation2 + $0x3c8] sm:$0xff]
    %v311 = vld [vmem:[#allocation2 + $0x3d0] sm:$0xff]
    %v312 = vld [vmem:[#allocation2 + $0x3d8] sm:$0xff]
    %v313 = vld [vmem:[#allocation2 + $0x3e0] sm:$0xff]
    %v314 = vld [vmem:[#allocation2 + $0x3e8] sm:$0xff]
    %v315 = vld [vmem:[#allocation2 + $0x3f0] sm:$0xff]
    %v316 = vld [vmem:[#allocation2 + $0x3f8] sm:$0xff]
    %v317 = vld [vmem:[#allocation2 + $0x400] sm:$0xff]
    %v318 = vld [vmem:[#allocation2 + $0x408] sm:$0xff]
    %v319 = vld [vmem:[#allocation2 + $0x410] sm:$0xff]
    %v320 = vld [vmem:[#allocation2 + $0x418] sm:$0xff]
    %v321 = vld [vmem:[#allocation2 + $0x420] sm:$0xff]
    %v322 = vld [vmem:[#allocation2 + $0x428] sm:$0xff]
    %v323 = vld [vmem:[#allocation2 + $0x430] sm:$0xff]
    %v324 = vld [vmem:[#allocation2 + $0x438] sm:$0xff]
    %v325 = vld [vmem:[#allocation2 + $0x440] sm:$0xff]
    %v326 = vld [vmem:[#allocation2 + $0x448] sm:$0xff]
    %v327 = vld [vmem:[#allocation2 + $0x450] sm:$0xff]
    %v328 = vld [vmem:[#allocation2 + $0x458] sm:$0xff]
    %v329 = vld [vmem:[#allocation2 + $0x460] sm:$0xff]
    %v330 = vld [vmem:[#allocation2 + $0x468] sm:$0xff]
    %v331 = vld [vmem:[#allocation2 + $0x470] sm:$0xff]
    %v332 = vld [vmem:[#allocation2 + $0x478] sm:$0xff]
    %v333 = vld [vmem:[#allocation2 + $0x480] sm:$0xff]
    %v334 = vld [vmem:[#allocation2 + $0x488] sm:$0xff]
    %v335 = vld [vmem:[#allocation2 + $0x490] sm:$0xff]
    %v336 = vld [vmem:[#allocation2 + $0x498] sm:$0xff]
    %v337 = vld [vmem:[#allocation2 + $0x4a0] sm:$0xff]
    %v338 = vld [vmem:[#allocation2 + $0x4a8] sm:$0xff]
    %v339 = vld [vmem:[#allocation2 + $0x4b0] sm:$0xff]
    %v340 = vld [vmem:[#allocation2 + $0x4b8] sm:$0xff]
    %v341 = vld [vmem:[#allocation2 + $0x4c0] sm:$0xff]
    %v342 = vld [vmem:[#allocation2 + $0x4c8] sm:$0xff]
    %v343 = vld [vmem:[#allocation2 + $0x4d0] sm:$0xff]
    %v344 = vld [vmem:[#allocation2 + $0x4d8] sm:$0xff]
    %v345 = vld [vmem:[#allocation2 + $0x4e0] sm:$0xff]
    %v346 = vld [vmem:[#allocation2 + $0x4e8] sm:$0xff]
    %v347 = vld [vmem:[#allocation2 + $0x4f0] sm:$0xff]
    %v348 = vld [vmem:[#allocation2 + $0x4f8] sm:$0xff]
    %v349 = vld [vmem:[#allocation2 + $0x500] sm:$0xff]
    %v350 = vld [vmem:[#allocation2 + $0x508] sm:$0xff]
    %v351 = vld [vmem:[#allocation2 + $0x510] sm:$0xff]
    %v352 = vld [vmem:[#allocation2 + $0x518] sm:$0xff]
    %v353 = vld [vmem:[#allocation2 + $0x520] sm:$0xff]
    %v354 = vld [vmem:[#allocation2 + $0x528] sm:$0xff]
    %v355 = vld [vmem:[#allocation2 + $0x530] sm:$0xff]
    %v356 = vld [vmem:[#allocation2 + $0x538] sm:$0xff]
    %v357 = vld [vmem:[#allocation2 + $0x540] sm:$0xff]
    %v358 = vld [vmem:[#allocation2 + $0x548] sm:$0xff]
    %v359 = vld [vmem:[#allocation2 + $0x550] sm:$0xff]
    %v360 = vld [vmem:[#allocation2 + $0x558] sm:$0xff]
    %v361 = vld [vmem:[#allocation2 + $0x560] sm:$0xff]
    %v362 = vld [vmem:[#allocation2 + $0x568] sm:$0xff]
    %v363 = vld [vmem:[#allocation2 + $0x570] sm:$0xff]
    %v364 = vld [vmem:[#allocation2 + $0x578] sm:$0xff]
    %v365 = vld [vmem:[#allocation2 + $0x580] sm:$0xff]
    %v366 = vld [vmem:[#allocation2 + $0x588] sm:$0xff]
    %v367 = vld [vmem:[#allocation2 + $0x590] sm:$0xff]
    %v368 = vld [vmem:[#allocation2 + $0x598] sm:$0xff]
    %v369 = vld [vmem:[#allocation2 + $0x5a0] sm:$0xff]
    %v370 = vld [vmem:[#allocation2 + $0x5a8] sm:$0xff]
    %v371 = vld [vmem:[#allocation2 + $0x5b0] sm:$0xff]
    %v372 = vld [vmem:[#allocation2 + $0x5b8] sm:$0xff]
    %v373 = vld [vmem:[#allocation2 + $0x5c0] sm:$0xff]
    %v374 = vld [vmem:[#allocation2 + $0x5c8] sm:$0xff]
    %v375 = vld [vmem:[#allocation2 + $0x5d0] sm:$0xff]
    %v376 = vld [vmem:[#allocation2 + $0x5d8] sm:$0xff]
    %v377 = vld [vmem:[#allocation2 + $0x5e0] sm:$0xff]
    %v378 = vld [vmem:[#allocation2 + $0x5e8] sm:$0xff]
    %v379 = vld [vmem:[#allocation2 + $0x5f0] sm:$0xff]
    %v380 = vld [vmem:[#allocation2 + $0x5f8] sm:$0xff]
    %v381 = vld [vmem:[#allocation2 + $0x600] sm:$0xff]
    %v382 = vld [vmem:[#allocation2 + $0x608] sm:$0xff]
    %v383 = vld [vmem:[#allocation2 + $0x610] sm:$0xff]
    %v384 = vld [vmem:[#allocation2 + $0x618] sm:$0xff]
    %v385 = vld [vmem:[#allocation2 + $0x620] sm:$0xff]
    %v386 = vld [vmem:[#allocation2 + $0x628] sm:$0xff]
    %v387 = vld [vmem:[#allocation2 + $0x630] sm:$0xff]
    %v388 = vld [vmem:[#allocation2 + $0x638] sm:$0xff]
    %v389 = vld [vmem:[#allocation2 + $0x640] sm:$0xff]
    %v390 = vld [vmem:[#allocation2 + $0x648] sm:$0xff]
    %v391 = vld [vmem:[#allocation2 + $0x650] sm:$0xff]
    %v392 = vld [vmem:[#allocation2 + $0x658] sm:$0xff]
    %v393 = vld [vmem:[#allocation2 + $0x660] sm:$0xff]
    %v394 = vld [vmem:[#allocation2 + $0x668] sm:$0xff]
    %v395 = vld [vmem:[#allocation2 + $0x670] sm:$0xff]
    %v396 = vld [vmem:[#allocation2 + $0x678] sm:$0xff]
    %v397 = vld [vmem:[#allocation2 + $0x680] sm:$0xff]
    %v398 = vld [vmem:[#allocation2 + $0x688] sm:$0xff]
    %v399 = vld [vmem:[#allocation2 + $0x690] sm:$0xff]
    %v400 = vld [vmem:[#allocation2 + $0x698] sm:$0xff]
    %v401 = vld [vmem:[#allocation2 + $0x6a0] sm:$0xff]
    %v402 = vld [vmem:[#allocation2 + $0x6a8] sm:$0xff]
    %v403 = vld [vmem:[#allocation2 + $0x6b0] sm:$0xff]
    %v404 = vld [vmem:[#allocation2 + $0x6b8] sm:$0xff]
    %v405 = vld [vmem:[#allocation2 + $0x6c0] sm:$0xff]
    %v406 = vld [vmem:[#allocation2 + $0x6c8] sm:$0xff]
    %v407 = vld [vmem:[#allocation2 + $0x6d0] sm:$0xff]
    %v408 = vld [vmem:[#allocation2 + $0x6d8] sm:$0xff]
    %v409 = vld [vmem:[#allocation2 + $0x6e0] sm:$0xff]
    %v410 = vld [vmem:[#allocation2 + $0x6e8] sm:$0xff]
    %v411 = vld [vmem:[#allocation2 + $0x6f0] sm:$0xff]
    %v412 = vld [vmem:[#allocation2 + $0x6f8] sm:$0xff]
    %v413 = vld [vmem:[#allocation2 + $0x700] sm:$0xff]
    %v414 = vld [vmem:[#allocation2 + $0x708] sm:$0xff]
    %v415 = vld [vmem:[#allocation2 + $0x710] sm:$0xff]
    %v416 = vld [vmem:[#allocation2 + $0x718] sm:$0xff]
    %v417 = vld [vmem:[#allocation2 + $0x720] sm:$0xff]
    %v418 = vld [vmem:[#allocation2 + $0x728] sm:$0xff]
    %v419 = vld [vmem:[#allocation2 + $0x730] sm:$0xff]
    %v420 = vld [vmem:[#allocation2 + $0x738] sm:$0xff]
    %v421 = vld [vmem:[#allocation2 + $0x740] sm:$0xff]
    %v422 = vld [vmem:[#allocation2 + $0x748] sm:$0xff]
    %v423 = vld [vmem:[#allocation2 + $0x750] sm:$0xff]
    %v424 = vld [vmem:[#allocation2 + $0x758] sm:$0xff]
    %v425 = vld [vmem:[#allocation2 + $0x760] sm:$0xff]
    %v426 = vld [vmem:[#allocation2 + $0x768] sm:$0xff]
    %v427 = vld [vmem:[#allocation2 + $0x770] sm:$0xff]
    %v428 = vld [vmem:[#allocation2 + $0x778] sm:$0xff]
    %v429 = vld [vmem:[#allocation2 + $0x780] sm:$0xff]
    %v430 = vld [vmem:[#allocation2 + $0x788] sm:$0xff]
    %v431 = vld [vmem:[#allocation2 + $0x790] sm:$0xff]
    %v432 = vld [vmem:[#allocation2 + $0x798] sm:$0xff]
    %v433 = vld [vmem:[#allocation2 + $0x7a0] sm:$0xff]
    %v434 = vld [vmem:[#allocation2 + $0x7a8] sm:$0xff]
    %v435 = vld [vmem:[#allocation2 + $0x7b0] sm:$0xff]
    %v436 = vld [vmem:[#allocation2 + $0x7b8] sm:$0xff]
    %v437 = vld [vmem:[#allocation2 + $0x7c0] sm:$0xff]
    %v438 = vld [vmem:[#allocation2 + $0x7c8] sm:$0xff]
    %v439 = vld [vmem:[#allocation2 + $0x7d0] sm:$0xff]
    %v440 = vld [vmem:[#allocation2 + $0x7d8] sm:$0xff]
    %v441 = vld [vmem:[#allocation2 + $0x7e0] sm:$0xff]
    %v442 = vld [vmem:[#allocation2 + $0x7e8] sm:$0xff]
    %v443 = vld [vmem:[#allocation2 + $0x7f0] sm:$0xff]
    %v444 = vld [vmem:[#allocation2 + $0x7f8] sm:$0xff]
    %v445 = vld [vmem:[#allocation2 + $0x800] sm:$0xff]
    %v446 = vld [vmem:[#allocation2 + $0x808] sm:$0xff]
    %v447 = vld [vmem:[#allocation2 + $0x810] sm:$0xff]
    %v448 = vld [vmem:[#allocation2 + $0x818] sm:$0xff]
    %v449 = vld [vmem:[#allocation2 + $0x820] sm:$0xff]
    %v450 = vld [vmem:[#allocation2 + $0x828] sm:$0xff]
    %v451 = vld [vmem:[#allocation2 + $0x830] sm:$0xff]
    %v452 = vld [vmem:[#allocation2 + $0x838] sm:$0xff]
    %v453 = vld [vmem:[#allocation2 + $0x840] sm:$0xff]
    %v454 = vld [vmem:[#allocation2 + $0x848] sm:$0xff]
    %v455 = vld [vmem:[#allocation2 + $0x850] sm:$0xff]
    %v456 = vld [vmem:[#allocation2 + $0x858] sm:$0xff]
    %v457 = vld [vmem:[#allocation2 + $0x860] sm:$0xff]
    %v458 = vld [vmem:[#allocation2 + $0x868] sm:$0xff]
    %v459 = vld [vmem:[#allocation2 + $0x870] sm:$0xff]
    %v460 = vld [vmem:[#allocation2 + $0x878] sm:$0xff]
    %v461 = vld [vmem:[#allocation2 + $0x880] sm:$0xff]
    %v462 = vld [vmem:[#allocation2 + $0x888] sm:$0xff]
    %v463 = vld [vmem:[#allocation2 + $0x890] sm:$0xff]
    %v464 = vld [vmem:[#allocation2 + $0x898] sm:$0xff]
    %v465 = vld [vmem:[#allocation2 + $0x8a0] sm:$0xff]
    %v466 = vld [vmem:[#allocation2 + $0x8a8] sm:$0xff]
    %v467 = vld [vmem:[#allocation2 + $0x8b0] sm:$0xff]
    %v468 = vld [vmem:[#allocation2 + $0x8b8] sm:$0xff]
    %v469 = vld [vmem:[#allocation2 + $0x8c0] sm:$0xff]
    %v470 = vld [vmem:[#allocation2 + $0x8c8] sm:$0xff]
    %v471 = vld [vmem:[#allocation2 + $0x8d0] sm:$0xff]
    %v472 = vld [vmem:[#allocation2 + $0x8d8] sm:$0xff]
    %v473 = vld [vmem:[#allocation2 + $0x8e0] sm:$0xff]
    %v474 = vld [vmem:[#allocation2 + $0x8e8] sm:$0xff]
    %v475 = vld [vmem:[#allocation2 + $0x8f0] sm:$0xff]
    %v476 = vld [vmem:[#allocation2 + $0x8f8] sm:$0xff]
    %v477 = vld [vmem:[#allocation2 + $0x900] sm:$0xff]
    %v478 = vld [vmem:[#allocation2 + $0x908] sm:$0xff]
    %v479 = vld [vmem:[#allocation2 + $0x910] sm:$0xff]
    %v480 = vld [vmem:[#allocation2 + $0x918] sm:$0xff]
    %v481 = vld [vmem:[#allocation2 + $0x920] sm:$0xff]
    %v482 = vld [vmem:[#allocation2 + $0x928] sm:$0xff]
    %v483 = vld [vmem:[#allocation2 + $0x930] sm:$0xff]
    %v484 = vld [vmem:[#allocation2 + $0x938] sm:$0xff]
    %v485 = vld [vmem:[#allocation2 + $0x940] sm:$0xff]
    %v486 = vld [vmem:[#allocation2 + $0x948] sm:$0xff]
    %v487 = vld [vmem:[#allocation2 + $0x950] sm:$0xff]
    %v488 = vld [vmem:[#allocation2 + $0x958] sm:$0xff]
    %v489 = vld [vmem:[#allocation2 + $0x960] sm:$0xff]
    %v490 = vld [vmem:[#allocation2 + $0x968] sm:$0xff]
    %v491 = vld [vmem:[#allocation2 + $0x970] sm:$0xff]
    %v492 = vld [vmem:[#allocation2 + $0x978] sm:$0xff]
    %v493 = vld [vmem:[#allocation2 + $0x980] sm:$0xff]
    %v494 = vld [vmem:[#allocation2 + $0x988] sm:$0xff]
    %v495 = vld [vmem:[#allocation2 + $0x990] sm:$0xff]
    %v496 = vld [vmem:[#allocation2 + $0x998] sm:$0xff]
    %v497 = vld [vmem:[#allocation2 + $0x9a0] sm:$0xff]
    %v498 = vld [vmem:[#allocation2 + $0x9a8] sm:$0xff]
    %v499 = vld [vmem:[#allocation2 + $0x9b0] sm:$0xff]
    %v500 = vld [vmem:[#allocation2 + $0x9b8] sm:$0xff]
    %v501 = vld [vmem:[#allocation2 + $0x9c0] sm:$0xff]
    %v502 = vld [vmem:[#allocation2 + $0x9c8] sm:$0xff]
    %v503 = vld [vmem:[#allocation2 + $0x9d0] sm:$0xff]
    %v504 = vld [vmem:[#allocation2 + $0x9d8] sm:$0xff]
    %v505 = vld [vmem:[#allocation2 + $0x9e0] sm:$0xff]
    %v506 = vld [vmem:[#allocation2 + $0x9e8] sm:$0xff]
    %v507 = vld [vmem:[#allocation2 + $0x9f0] sm:$0xff]
    %v508 = vld [vmem:[#allocation2 + $0x9f8] sm:$0xff]
    %v509 = vld [vmem:[#allocation2 + $0xa00] sm:$0xff]
    %v510 = vld [vmem:[#allocation2 + $0xa08] sm:$0xff]
    %v511 = vld [vmem:[#allocation2 + $0xa10] sm:$0xff]
    %v512 = vld [vmem:[#allocation2 + $0xa18] sm:$0xff]
    %v513 = vld [vmem:[#allocation2 + $0xa20] sm:$0xff]
    %v514 = vld [vmem:[#allocation2 + $0xa28] sm:$0xff]
    %v515 = vld [vmem:[#allocation2 + $0xa30] sm:$0xff]
    %v516 = vld [vmem:[#allocation2 + $0xa38] sm:$0xff]
    %v517 = vld [vmem:[#allocation2 + $0xa40] sm:$0xff]
    %v518 = vld [vmem:[#allocation2 + $0xa48] sm:$0xff]
    %v519 = vld [vmem:[#allocation2 + $0xa50] sm:$0xff]
    %v520 = vld [vmem:[#allocation2 + $0xa58] sm:$0xff]
    %v521 = vld [vmem:[#allocation2 + $0xa60] sm:$0xff]
    %v522 = vld [vmem:[#allocation2 + $0xa68] sm:$0xff]
    %v523 = vld [vmem:[#allocation2 + $0xa70] sm:$0xff]
    %v524 = vld [vmem:[#allocation2 + $0xa78] sm:$0xff]
    %v525 = vld [vmem:[#allocation2 + $0xa80] sm:$0xff]
    %v526 = vld [vmem:[#allocation2 + $0xa88] sm:$0xff]
    %v527 = vld [vmem:[#allocation2 + $0xa90] sm:$0xff]
    %v528 = vld [vmem:[#allocation2 + $0xa98] sm:$0xff]
    %v529 = vld [vmem:[#allocation2 + $0xaa0] sm:$0xff]
    %v530 = vld [vmem:[#allocation2 + $0xaa8] sm:$0xff]
    %v531 = vld [vmem:[#allocation2 + $0xab0] sm:$0xff]
    %v532 = vld [vmem:[#allocation2 + $0xab8] sm:$0xff]
    %v533 = vld [vmem:[#allocation2 + $0xac0] sm:$0xff]
    %v534 = vld [vmem:[#allocation2 + $0xac8] sm:$0xff]
    %v535 = vld [vmem:[#allocation2 + $0xad0] sm:$0xff]
    %v536 = vld [vmem:[#allocation2 + $0xad8] sm:$0xff]
    %v537 = vld [vmem:[#allocation2 + $0xae0] sm:$0xff]
    %v538 = vld [vmem:[#allocation2 + $0xae8] sm:$0xff]
    %v539 = vld [vmem:[#allocation2 + $0xaf0] sm:$0xff]
    %v540 = vld [vmem:[#allocation2 + $0xaf8] sm:$0xff]
    %v541 = vld [vmem:[#allocation2 + $0xb00] sm:$0xff]
    %v542 = vld [vmem:[#allocation2 + $0xb08] sm:$0xff]
    %v543 = vld [vmem:[#allocation2 + $0xb10] sm:$0xff]
    %v544 = vld [vmem:[#allocation2 + $0xb18] sm:$0xff]
    %v545 = vld [vmem:[#allocation2 + $0xb20] sm:$0xff]
    %v546 = vld [vmem:[#allocation2 + $0xb28] sm:$0xff]
    %v547 = vld [vmem:[#allocation2 + $0xb30] sm:$0xff]
    %v548 = vld [vmem:[#allocation2 + $0xb38] sm:$0xff]
    %v549 = vld [vmem:[#allocation2 + $0xb40] sm:$0xff]
    %v550 = vld [vmem:[#allocation2 + $0xb48] sm:$0xff]
    %v551 = vld [vmem:[#allocation2 + $0xb50] sm:$0xff]
    %v552 = vld [vmem:[#allocation2 + $0xb58] sm:$0xff]
    %v553 = vld [vmem:[#allocation2 + $0xb60] sm:$0xff]
    %v554 = vld [vmem:[#allocation2 + $0xb68] sm:$0xff]
    %v555 = vld [vmem:[#allocation2 + $0xb70] sm:$0xff]
    %v556 = vld [vmem:[#allocation2 + $0xb78] sm:$0xff]
    %v557 = vld [vmem:[#allocation2 + $0xb80] sm:$0xff]
    %v558 = vld [vmem:[#allocation2 + $0xb88] sm:$0xff]
    %v559 = vld [vmem:[#allocation2 + $0xb90] sm:$0xff]
    %v560 = vld [vmem:[#allocation2 + $0xb98] sm:$0xff]
    %v561 = vld [vmem:[#allocation2 + $0xba0] sm:$0xff]
    %v562 = vld [vmem:[#allocation2 + $0xba8] sm:$0xff]
    %v563 = vld [vmem:[#allocation2 + $0xbb0] sm:$0xff]
    %v564 = vld [vmem:[#allocation2 + $0xbb8] sm:$0xff]
    %v565 = vld [vmem:[#allocation2 + $0xbc0] sm:$0xff]
    %v566 = vld [vmem:[#allocation2 + $0xbc8] sm:$0xff]
    %v567 = vld [vmem:[#allocation2 + $0xbd0] sm:$0xff]
    %v568 = vld [vmem:[#allocation2 + $0xbd8] sm:$0xff]
    %v569 = vld [vmem:[#allocation2 + $0xbe0] sm:$0xff]
    %v570 = vld [vmem:[#allocation2 + $0xbe8] sm:$0xff]
    %v571 = vld [vmem:[#allocation2 + $0xbf0] sm:$0xff]
    %v572 = vld [vmem:[#allocation2 + $0xbf8] sm:$0xff]
    %v573 = vld [vmem:[#allocation2 + $0xc00] sm:$0xff]
    %v574 = vld [vmem:[#allocation2 + $0xc08] sm:$0xff]
    %v575 = vld [vmem:[#allocation2 + $0xc10] sm:$0xff]
    %v576 = vld [vmem:[#allocation2 + $0xc18] sm:$0xff]
    %v577 = vld [vmem:[#allocation2 + $0xc20] sm:$0xff]
    %v578 = vld [vmem:[#allocation2 + $0xc28] sm:$0xff]
    %v579 = vld [vmem:[#allocation2 + $0xc30] sm:$0xff]
    %v580 = vld [vmem:[#allocation2 + $0xc38] sm:$0xff]
    %v581 = vld [vmem:[#allocation2 + $0xc40] sm:$0xff]
    %v582 = vld [vmem:[#allocation2 + $0xc48] sm:$0xff]
    %v583 = vld [vmem:[#allocation2 + $0xc50] sm:$0xff]
    %v584 = vld [vmem:[#allocation2 + $0xc58] sm:$0xff]
    %v585 = vld [vmem:[#allocation2 + $0xc60] sm:$0xff]
    %v586 = vld [vmem:[#allocation2 + $0xc68] sm:$0xff]
    %v587 = vld [vmem:[#allocation2 + $0xc70] sm:$0xff]
    %v588 = vld [vmem:[#allocation2 + $0xc78] sm:$0xff]
    %v589 = vld [vmem:[#allocation2 + $0xc80] sm:$0xff]
    %v590 = vld [vmem:[#allocation2 + $0xc88] sm:$0xff]
    %v591 = vld [vmem:[#allocation2 + $0xc90] sm:$0xff]
    %v592 = vld [vmem:[#allocation2 + $0xc98] sm:$0xff]
    %v593 = vld [vmem:[#allocation2 + $0xca0] sm:$0xff]
    %v594 = vld [vmem:[#allocation2 + $0xca8] sm:$0xff]
    %v595 = vld [vmem:[#allocation2 + $0xcb0] sm:$0xff]
    %v596 = vld [vmem:[#allocation2 + $0xcb8] sm:$0xff]
    %v597 = vld [vmem:[#allocation2 + $0xcc0] sm:$0xff]
    %v598 = vld [vmem:[#allocation2 + $0xcc8] sm:$0xff]
    %v599 = vld [vmem:[#allocation2 + $0xcd0] sm:$0xff]
    %v600 = vld [vmem:[#allocation2 + $0xcd8] sm:$0xff]
    %v601 = vld [vmem:[#allocation2 + $0xce0] sm:$0xff]
    %v602 = vld [vmem:[#allocation2 + $0xce8] sm:$0xff]
    %v603 = vld [vmem:[#allocation2 + $0xcf0] sm:$0xff]
    %v604 = vld [vmem:[#allocation2 + $0xcf8] sm:$0xff]
    %v605 = vld [vmem:[#allocation2 + $0xd00] sm:$0xff]
    %v606 = vld [vmem:[#allocation2 + $0xd08] sm:$0xff]
    %v607 = vld [vmem:[#allocation2 + $0xd10] sm:$0xff]
    %v608 = vld [vmem:[#allocation2 + $0xd18] sm:$0xff]
    %v609 = vld [vmem:[#allocation2 + $0xd20] sm:$0xff]
    %v610 = vld [vmem:[#allocation2 + $0xd28] sm:$0xff]
    %v611 = vld [vmem:[#allocation2 + $0xd30] sm:$0xff]
    %v612 = vld [vmem:[#allocation2 + $0xd38] sm:$0xff]
    %v613 = vld [vmem:[#allocation2 + $0xd40] sm:$0xff]
    %v614 = vld [vmem:[#allocation2 + $0xd48] sm:$0xff]
    %v615 = vld [vmem:[#allocation2 + $0xd50] sm:$0xff]
    %v616 = vld [vmem:[#allocation2 + $0xd58] sm:$0xff]
    %v617 = vld [vmem:[#allocation2 + $0xd60] sm:$0xff]
    %v618 = vld [vmem:[#allocation2 + $0xd68] sm:$0xff]
    %v619 = vld [vmem:[#allocation2 + $0xd70] sm:$0xff]
    %v620 = vld [vmem:[#allocation2 + $0xd78] sm:$0xff]
    %v621 = vld [vmem:[#allocation2 + $0xd80] sm:$0xff]
    %v622 = vld [vmem:[#allocation2 + $0xd88] sm:$0xff]
    %v623 = vld [vmem:[#allocation2 + $0xd90] sm:$0xff]
    %v624 = vld [vmem:[#allocation2 + $0xd98] sm:$0xff]
    %v625 = vld [vmem:[#allocation2 + $0xda0] sm:$0xff]
    %v626 = vld [vmem:[#allocation2 + $0xda8] sm:$0xff]
    %v627 = vld [vmem:[#allocation2 + $0xdb0] sm:$0xff]
    %v628 = vld [vmem:[#allocation2 + $0xdb8] sm:$0xff]
    %v629 = vld [vmem:[#allocation2 + $0xdc0] sm:$0xff]
    %v630 = vld [vmem:[#allocation2 + $0xdc8] sm:$0xff]
    %v631 = vld [vmem:[#allocation2 + $0xdd0] sm:$0xff]
    %v632 = vld [vmem:[#allocation2 + $0xdd8] sm:$0xff]
    %v633 = vld [vmem:[#allocation2 + $0xde0] sm:$0xff]
    %v634 = vld [vmem:[#allocation2 + $0xde8] sm:$0xff]
    %v635 = vld [vmem:[#allocation2 + $0xdf0] sm:$0xff]
    %v636 = vld [vmem:[#allocation2 + $0xdf8] sm:$0xff]
    %v637 = vld [vmem:[#allocation2 + $0xe00] sm:$0xff]
    %v638 = vld [vmem:[#allocation2 + $0xe08] sm:$0xff]
    %v639 = vld [vmem:[#allocation2 + $0xe10] sm:$0xff]
    %v640 = vld [vmem:[#allocation2 + $0xe18] sm:$0xff]
    %v641 = vld [vmem:[#allocation2 + $0xe20] sm:$0xff]
    %v642 = vld [vmem:[#allocation2 + $0xe28] sm:$0xff]
    %v643 = vld [vmem:[#allocation2 + $0xe30] sm:$0xff]
    %v644 = vld [vmem:[#allocation2 + $0xe38] sm:$0xff]
    %v645 = vld [vmem:[#allocation2 + $0xe40] sm:$0xff]
    %v646 = vld [vmem:[#allocation2 + $0xe48] sm:$0xff]
    %v647 = vld [vmem:[#allocation2 + $0xe50] sm:$0xff]
    %v648 = vld [vmem:[#allocation2 + $0xe58] sm:$0xff]
    %v649 = vld [vmem:[#allocation2 + $0xe60] sm:$0xff]
    %v650 = vld [vmem:[#allocation2 + $0xe68] sm:$0xff]
    %v651 = vld [vmem:[#allocation2 + $0xe70] sm:$0xff]
    %v652 = vld [vmem:[#allocation2 + $0xe78] sm:$0xff]
    %v653 = vld [vmem:[#allocation2 + $0xe80] sm:$0xff]
    %v654 = vld [vmem:[#allocation2 + $0xe88] sm:$0xff]
    %v655 = vld [vmem:[#allocation2 + $0xe90] sm:$0xff]
    %v656 = vld [vmem:[#allocation2 + $0xe98] sm:$0xff]
    %v657 = vld [vmem:[#allocation2 + $0xea0] sm:$0xff]
    %v658 = vld [vmem:[#allocation2 + $0xea8] sm:$0xff]
    %v659 = vld [vmem:[#allocation2 + $0xeb0] sm:$0xff]
    %v660 = vld [vmem:[#allocation2 + $0xeb8] sm:$0xff]
    %v661 = vld [vmem:[#allocation2 + $0xec0] sm:$0xff]
    %v662 = vld [vmem:[#allocation2 + $0xec8] sm:$0xff]
    %v663 = vld [vmem:[#allocation2 + $0xed0] sm:$0xff]
    %v664 = vld [vmem:[#allocation2 + $0xed8] sm:$0xff]
    %v665 = vld [vmem:[#allocation2 + $0xee0] sm:$0xff]
    %v666 = vld [vmem:[#allocation2 + $0xee8] sm:$0xff]
    %v667 = vld [vmem:[#allocation2 + $0xef0] sm:$0xff]
    %v668 = vld [vmem:[#allocation2 + $0xef8] sm:$0xff]
    %v669 = vld [vmem:[#allocation2 + $0xf00] sm:$0xff]
    %v670 = vld [vmem:[#allocation2 + $0xf08] sm:$0xff]
    %v671 = vld [vmem:[#allocation2 + $0xf10] sm:$0xff]
    %v672 = vld [vmem:[#allocation2 + $0xf18] sm:$0xff]
    %v673 = vld [vmem:[#allocation2 + $0xf20] sm:$0xff]
    %v674 = vld [vmem:[#allocation2 + $0xf28] sm:$0xff]
    %v675 = vld [vmem:[#allocation2 + $0xf30] sm:$0xff]
    %v676 = vld [vmem:[#allocation2 + $0xf38] sm:$0xff]
    %v677 = vld [vmem:[#allocation2 + $0xf40] sm:$0xff]
    %v678 = vld [vmem:[#allocation2 + $0xf48] sm:$0xff]
    %v679 = vld [vmem:[#allocation2 + $0xf50] sm:$0xff]
    %v680 = vld [vmem:[#allocation2 + $0xf58] sm:$0xff]
    %v681 = vld [vmem:[#allocation2 + $0xf60] sm:$0xff]
    %v682 = vld [vmem:[#allocation2 + $0xf68] sm:$0xff]
    %v683 = vld [vmem:[#allocation2 + $0xf70] sm:$0xff]
    %v684 = vld [vmem:[#allocation2 + $0xf78] sm:$0xff]
    %v685 = vld [vmem:[#allocation2 + $0xf80] sm:$0xff]
    %v686 = vld [vmem:[#allocation2 + $0xf88] sm:$0xff]
    %v687 = vld [vmem:[#allocation2 + $0xf90] sm:$0xff]
    %v688 = vld [vmem:[#allocation2 + $0xf98] sm:$0xff]
    %v689 = vld [vmem:[#allocation2 + $0xfa0] sm:$0xff]
    %v690 = vld [vmem:[#allocation2 + $0xfa8] sm:$0xff]
    %v691 = vld [vmem:[#allocation2 + $0xfb0] sm:$0xff]
    %v692 = vld [vmem:[#allocation2 + $0xfb8] sm:$0xff]
    %v693 = vld [vmem:[#allocation2 + $0xfc0] sm:$0xff]
    %v694 = vld [vmem:[#allocation2 + $0xfc8] sm:$0xff]
    %v695 = vld [vmem:[#allocation2 + $0xfd0] sm:$0xff]
    %v696 = vld [vmem:[#allocation2 + $0xfd8] sm:$0xff]
    %v697 = vld [vmem:[#allocation2 + $0xfe0] sm:$0xff]
    %v698 = vld [vmem:[#allocation2 + $0xfe8] sm:$0xff]
    %v699 = vld [vmem:[#allocation2 + $0xff0] sm:$0xff]
    %v700 = vld [vmem:[#allocation2 + $0xff8] sm:$0xff]
    %v701 = vld [vmem:[#allocation2 + $0x1000] sm:$0xff]
    %v702 = vld [vmem:[#allocation2 + $0x1008] sm:$0xff]
    %v703 = vld [vmem:[#allocation2 + $0x1010] sm:$0xff]
    %v704 = vld [vmem:[#allocation2 + $0x1018] sm:$0xff]
    %v705 = vld [vmem:[#allocation2 + $0x1020] sm:$0xff]
    %v706 = vld [vmem:[#allocation2 + $0x1028] sm:$0xff]
    %v707 = vld [vmem:[#allocation2 + $0x1030] sm:$0xff]
    %v708 = vld [vmem:[#allocation2 + $0x1038] sm:$0xff]
    %v709 = vld [vmem:[#allocation2 + $0x1040] sm:$0xff]
    %v710 = vld [vmem:[#allocation2 + $0x1048] sm:$0xff]
    %v711 = vld [vmem:[#allocation2 + $0x1050] sm:$0xff]
    %v712 = vld [vmem:[#allocation2 + $0x1058] sm:$0xff]
    %v713 = vld [vmem:[#allocation2 + $0x1060] sm:$0xff]
    %v714 = vld [vmem:[#allocation2 + $0x1068] sm:$0xff]
    %v715 = vld [vmem:[#allocation2 + $0x1070] sm:$0xff]
    %v716 = vld [vmem:[#allocation2 + $0x1078] sm:$0xff]
    %v717 = vld [vmem:[#allocation2 + $0x1080] sm:$0xff]
    %v718 = vld [vmem:[#allocation2 + $0x1088] sm:$0xff]
    %v719 = vld [vmem:[#allocation2 + $0x1090] sm:$0xff]
    %v720 = vld [vmem:[#allocation2 + $0x1098] sm:$0xff]
    %v721 = vld [vmem:[#allocation2 + $0x10a0] sm:$0xff]
    %v722 = vld [vmem:[#allocation2 + $0x10a8] sm:$0xff]
    %v723 = vld [vmem:[#allocation2 + $0x10b0] sm:$0xff]
    %v724 = vld [vmem:[#allocation2 + $0x10b8] sm:$0xff]
    %v725 = vld [vmem:[#allocation2 + $0x10c0] sm:$0xff]
    %v726 = vld [vmem:[#allocation2 + $0x10c8] sm:$0xff]
    %v727 = vld [vmem:[#allocation2 + $0x10d0] sm:$0xff]
    %v728 = vld [vmem:[#allocation2 + $0x10d8] sm:$0xff]
    %v729 = vld [vmem:[#allocation2 + $0x10e0] sm:$0xff]
    %v730 = vld [vmem:[#allocation2 + $0x10e8] sm:$0xff]
    %v731 = vld [vmem:[#allocation2 + $0x10f0] sm:$0xff]
    %v732 = vld [vmem:[#allocation2 + $0x10f8] sm:$0xff]
    %v733 = vld [vmem:[#allocation2 + $0x1100] sm:$0xff]
    %v734 = vld [vmem:[#allocation2 + $0x1108] sm:$0xff]
    %v735 = vld [vmem:[#allocation2 + $0x1110] sm:$0xff]
    %v736 = vld [vmem:[#allocation2 + $0x1118] sm:$0xff]
    %v737 = vld [vmem:[#allocation2 + $0x1120] sm:$0xff]
    %v738 = vld [vmem:[#allocation2 + $0x1128] sm:$0xff]
    %v739 = vld [vmem:[#allocation2 + $0x1130] sm:$0xff]
    %v740 = vld [vmem:[#allocation2 + $0x1138] sm:$0xff]
    %v741 = vld [vmem:[#allocation2 + $0x1140] sm:$0xff]
    %v742 = vld [vmem:[#allocation2 + $0x1148] sm:$0xff]
    %v743 = vld [vmem:[#allocation2 + $0x1150] sm:$0xff]
    %v744 = vld [vmem:[#allocation2 + $0x1158] sm:$0xff]
    %v745 = vld [vmem:[#allocation2 + $0x1160] sm:$0xff]
    %v746 = vld [vmem:[#allocation2 + $0x1168] sm:$0xff]
    %v747 = vld [vmem:[#allocation2 + $0x1170] sm:$0xff]
    %v748 = vld [vmem:[#allocation2 + $0x1178] sm:$0xff]
    %v749 = vld [vmem:[#allocation2 + $0x1180] sm:$0xff]
    %v750 = vld [vmem:[#allocation2 + $0x1188] sm:$0xff]
    %v751 = vld [vmem:[#allocation2 + $0x1190] sm:$0xff]
    %v752 = vld [vmem:[#allocation2 + $0x1198] sm:$0xff]
    %v753 = vld [vmem:[#allocation2 + $0x11a0] sm:$0xff]
    %v754 = vld [vmem:[#allocation2 + $0x11a8] sm:$0xff]
    %v755 = vld [vmem:[#allocation2 + $0x11b0] sm:$0xff]
    %v756 = vld [vmem:[#allocation2 + $0x11b8] sm:$0xff]
    %v757 = vld [vmem:[#allocation2 + $0x11c0] sm:$0xff]
    %v758 = vld [vmem:[#allocation2 + $0x11c8] sm:$0xff]
    %v759 = vld [vmem:[#allocation2 + $0x11d0] sm:$0xff]
    %v760 = vld [vmem:[#allocation2 + $0x11d8] sm:$0xff]
    %v761 = vld [vmem:[#allocation2 + $0x11e0] sm:$0xff]
    %v762 = vld [vmem:[#allocation2 + $0x11e8] sm:$0xff]
    %v763 = vld [vmem:[#allocation2 + $0x11f0] sm:$0xff]
    %v764 = vld [vmem:[#allocation2 + $0x11f8] sm:$0xff]
    %v765 = vld [vmem:[#allocation2 + $0x1200] sm:$0xff]
    %v766 = vld [vmem:[#allocation2 + $0x1208] sm:$0xff]
    %v767 = vld [vmem:[#allocation2 + $0x1210] sm:$0xff]
    %v768 = vld [vmem:[#allocation2 + $0x1218] sm:$0xff]
    %v769 = vld [vmem:[#allocation2 + $0x1220] sm:$0xff]
    %v770 = vld [vmem:[#allocation2 + $0x1228] sm:$0xff]
    %v771 = vld [vmem:[#allocation2 + $0x1230] sm:$0xff]
    %v772 = vld [vmem:[#allocation2 + $0x1238] sm:$0xff]
    %v773 = vld [vmem:[#allocation2 + $0x1240] sm:$0xff]
    %v774 = vld [vmem:[#allocation2 + $0x1248] sm:$0xff]
    %v775 = vld [vmem:[#allocation2 + $0x1250] sm:$0xff]
    %v776 = vld [vmem:[#allocation2 + $0x1258] sm:$0xff]
    %v777 = vld [vmem:[#allocation2 + $0x1260] sm:$0xff]
    %v778 = vld [vmem:[#allocation2 + $0x1268] sm:$0xff]
    %v779 = vld [vmem:[#allocation2 + $0x1270] sm:$0xff]
    %v780 = vld [vmem:[#allocation2 + $0x1278] sm:$0xff]
    %v781 = vld [vmem:[#allocation2 + $0x1280] sm:$0xff]
    %v782 = vld [vmem:[#allocation2 + $0x1288] sm:$0xff]
    %v783 = vld [vmem:[#allocation2 + $0x1290] sm:$0xff]
    %v784 = vld [vmem:[#allocation2 + $0x1298] sm:$0xff]
    %v785 = vld [vmem:[#allocation2 + $0x12a0] sm:$0xff]
    %v786 = vld [vmem:[#allocation2 + $0x12a8] sm:$0xff]
    %v787 = vld [vmem:[#allocation2 + $0x12b0] sm:$0xff]
    %v788 = vld [vmem:[#allocation2 + $0x12b8] sm:$0xff]
    %v789 = vld [vmem:[#allocation2 + $0x12c0] sm:$0xff]
    %v790 = vld [vmem:[#allocation2 + $0x12c8] sm:$0xff]
    %v791 = vld [vmem:[#allocation2 + $0x12d0] sm:$0xff]
    %v792 = vld [vmem:[#allocation2 + $0x12d8] sm:$0xff]
    %v793 = vld [vmem:[#allocation2 + $0x12e0] sm:$0xff]
    %v794 = vld [vmem:[#allocation2 + $0x12e8] sm:$0xff]
    %v795 = vld [vmem:[#allocation2 + $0x12f0] sm:$0xff]
    %v796 = vld [vmem:[#allocation2 + $0x12f8] sm:$0xff]
    %v797 = vld [vmem:[#allocation2 + $0x1300] sm:$0xff]
    %v798 = vld [vmem:[#allocation2 + $0x1308] sm:$0xff]
    %v799 = vld [vmem:[#allocation2 + $0x1310] sm:$0xff]
    %v800 = vld [vmem:[#allocation2 + $0x1318] sm:$0xff]
    %v801 = vld [vmem:[#allocation2 + $0x1320] sm:$0xff]
    %v802 = vld [vmem:[#allocation2 + $0x1328] sm:$0xff]
    %v803 = vld [vmem:[#allocation2 + $0x1330] sm:$0xff]
    %v804 = vld [vmem:[#allocation2 + $0x1338] sm:$0xff]
    %v805 = vld [vmem:[#allocation2 + $0x1340] sm:$0xff]
    %v806 = vld [vmem:[#allocation2 + $0x1348] sm:$0xff]
    %v807 = vld [vmem:[#allocation2 + $0x1350] sm:$0xff]
    %v808 = vld [vmem:[#allocation2 + $0x1358] sm:$0xff]
    %v809 = vld [vmem:[#allocation2 + $0x1360] sm:$0xff]
    %v810 = vld [vmem:[#allocation2 + $0x1368] sm:$0xff]
    %v811 = vld [vmem:[#allocation2 + $0x1370] sm:$0xff]
    %v812 = vld [vmem:[#allocation2 + $0x1378] sm:$0xff]
    %v813 = vld [vmem:[#allocation2 + $0x1380] sm:$0xff]
    %v814 = vld [vmem:[#allocation2 + $0x1388] sm:$0xff]
    %v815 = vld [vmem:[#allocation2 + $0x1390] sm:$0xff]
    %v816 = vld [vmem:[#allocation2 + $0x1398] sm:$0xff]
    %v817 = vld [vmem:[#allocation2 + $0x13a0] sm:$0xff]
    %v818 = vld [vmem:[#allocation2 + $0x13a8] sm:$0xff]
    %v819 = vld [vmem:[#allocation2 + $0x13b0] sm:$0xff]
    %v820 = vld [vmem:[#allocation2 + $0x13b8] sm:$0xff]
    %v821 = vld [vmem:[#allocation2 + $0x13c0] sm:$0xff]
    %v822 = vld [vmem:[#allocation2 + $0x13c8] sm:$0xff]
    %v823 = vld [vmem:[#allocation2 + $0x13d0] sm:$0xff]
    %v824 = vld [vmem:[#allocation2 + $0x13d8] sm:$0xff]
    %v825 = vld [vmem:[#allocation2 + $0x13e0] sm:$0xff]
    %v826 = vld [vmem:[#allocation2 + $0x13e8] sm:$0xff]
    %v827 = vld [vmem:[#allocation2 + $0x13f0] sm:$0xff]
    %v828 = vld [vmem:[#allocation2 + $0x13f8] sm:$0xff]
    %v829 = vld [vmem:[#allocation2 + $0x1400] sm:$0xff]
    %v830 = vld [vmem:[#allocation2 + $0x1408] sm:$0xff]
    %v831 = vld [vmem:[#allocation2 + $0x1410] sm:$0xff]
    %v832 = vld [vmem:[#allocation2 + $0x1418] sm:$0xff]
    %v833 = vld [vmem:[#allocation2 + $0x1420] sm:$0xff]
    %v834 = vld [vmem:[#allocation2 + $0x1428] sm:$0xff]
    %v835 = vld [vmem:[#allocation2 + $0x1430] sm:$0xff]
    %v836 = vld [vmem:[#allocation2 + $0x1438] sm:$0xff]
    %v837 = vld [vmem:[#allocation2 + $0x1440] sm:$0xff]
    %v838 = vld [vmem:[#allocation2 + $0x1448] sm:$0xff]
    %v839 = vld [vmem:[#allocation2 + $0x1450] sm:$0xff]
    %v840 = vld [vmem:[#allocation2 + $0x1458] sm:$0xff]
    %v841 = vld [vmem:[#allocation2 + $0x1460] sm:$0xff]
    %v842 = vld [vmem:[#allocation2 + $0x1468] sm:$0xff]
    %v843 = vld [vmem:[#allocation2 + $0x1470] sm:$0xff]
    %v844 = vld [vmem:[#allocation2 + $0x1478] sm:$0xff]
    %v845 = vld [vmem:[#allocation2 + $0x1480] sm:$0xff]
    %v846 = vld [vmem:[#allocation2 + $0x1488] sm:$0xff]
    %v847 = vld [vmem:[#allocation2 + $0x1490] sm:$0xff]
    %v848 = vld [vmem:[#allocation2 + $0x1498] sm:$0xff]
    %v849 = vld [vmem:[#allocation2 + $0x14a0] sm:$0xff]
    %v850 = vld [vmem:[#allocation2 + $0x14a8] sm:$0xff]
    %v851 = vld [vmem:[#allocation2 + $0x14b0] sm:$0xff]
    %v852 = vld [vmem:[#allocation2 + $0x14b8] sm:$0xff]
    %v853 = vld [vmem:[#allocation2 + $0x14c0] sm:$0xff]
    %v854 = vld [vmem:[#allocation2 + $0x14c8] sm:$0xff]
    %v855 = vld [vmem:[#allocation2 + $0x14d0] sm:$0xff]
    %v856 = vld [vmem:[#allocation2 + $0x14d8] sm:$0xff]
    %v857 = vld [vmem:[#allocation2 + $0x14e0] sm:$0xff]
    %v858 = vld [vmem:[#allocation2 + $0x14e8] sm:$0xff]
    %v859 = vld [vmem:[#allocation2 + $0x14f0] sm:$0xff]
    %v860 = vld [vmem:[#allocation2 + $0x14f8] sm:$0xff]
    %v861 = vld [vmem:[#allocation2 + $0x1500] sm:$0xff]
    %v862 = vld [vmem:[#allocation2 + $0x1508] sm:$0xff]
    %v863 = vld [vmem:[#allocation2 + $0x1510] sm:$0xff]
    %v864 = vld [vmem:[#allocation2 + $0x1518] sm:$0xff]
    %v865 = vld [vmem:[#allocation2 + $0x1520] sm:$0xff]
    %v866 = vld [vmem:[#allocation2 + $0x1528] sm:$0xff]
    %v867 = vld [vmem:[#allocation2 + $0x1530] sm:$0xff]
    %v868 = vld [vmem:[#allocation2 + $0x1538] sm:$0xff]
    %v869 = vld [vmem:[#allocation2 + $0x1540] sm:$0xff]
    %v870 = vld [vmem:[#allocation2 + $0x1548] sm:$0xff]
    %v871 = vld [vmem:[#allocation2 + $0x1550] sm:$0xff]
    %v872 = vld [vmem:[#allocation2 + $0x1558] sm:$0xff]
    %v873 = vld [vmem:[#allocation2 + $0x1560] sm:$0xff]
    %v874 = vld [vmem:[#allocation2 + $0x1568] sm:$0xff]
    %v875 = vld [vmem:[#allocation2 + $0x1570] sm:$0xff]
    %v876 = vld [vmem:[#allocation2 + $0x1578] sm:$0xff]
    %v877 = vld [vmem:[#allocation2 + $0x1580] sm:$0xff]
    %v878 = vld [vmem:[#allocation2 + $0x1588] sm:$0xff]
    %v879 = vld [vmem:[#allocation2 + $0x1590] sm:$0xff]
    %v880 = vld [vmem:[#allocation2 + $0x1598] sm:$0xff]
    %v881 = vld [vmem:[#allocation2 + $0x15a0] sm:$0xff]
    %v882 = vld [vmem:[#allocation2 + $0x15a8] sm:$0xff]
    %v883 = vld [vmem:[#allocation2 + $0x15b0] sm:$0xff]
    %v884 = vld [vmem:[#allocation2 + $0x15b8] sm:$0xff]
    %v885 = vld [vmem:[#allocation2 + $0x15c0] sm:$0xff]
    %v886 = vld [vmem:[#allocation2 + $0x15c8] sm:$0xff]
    %v887 = vld [vmem:[#allocation2 + $0x15d0] sm:$0xff]
    %v888 = vld [vmem:[#allocation2 + $0x15d8] sm:$0xff]
    %v889 = vld [vmem:[#allocation2 + $0x15e0] sm:$0xff]
    %v890 = vld [vmem:[#allocation2 + $0x15e8] sm:$0xff]
    %v891 = vld [vmem:[#allocation2 + $0x15f0] sm:$0xff]
    %v892 = vld [vmem:[#allocation2 + $0x15f8] sm:$0xff]
    %v893 = vld [vmem:[#allocation2 + $0x1600] sm:$0xff]
    %v894 = vld [vmem:[#allocation2 + $0x1608] sm:$0xff]
    %v895 = vld [vmem:[#allocation2 + $0x1610] sm:$0xff]
    %v896 = vld [vmem:[#allocation2 + $0x1618] sm:$0xff]
    %v897 = vld [vmem:[#allocation2 + $0x1620] sm:$0xff]
    %v898 = vld [vmem:[#allocation2 + $0x1628] sm:$0xff]
    %v899 = vld [vmem:[#allocation2 + $0x1630] sm:$0xff]
    %v900 = vld [vmem:[#allocation2 + $0x1638] sm:$0xff]
    %v901 = vld [vmem:[#allocation2 + $0x1640] sm:$0xff]
    %v902 = vld [vmem:[#allocation2 + $0x1648] sm:$0xff]
    %v903 = vld [vmem:[#allocation2 + $0x1650] sm:$0xff]
    %v904 = vld [vmem:[#allocation2 + $0x1658] sm:$0xff]
    %v905 = vld [vmem:[#allocation2 + $0x1660] sm:$0xff]
    %v906 = vld [vmem:[#allocation2 + $0x1668] sm:$0xff]
    %v907 = vld [vmem:[#allocation2 + $0x1670] sm:$0xff]
    %v908 = vld [vmem:[#allocation2 + $0x1678] sm:$0xff]
    %v909 = vld [vmem:[#allocation2 + $0x1680] sm:$0xff]
    %v910 = vld [vmem:[#allocation2 + $0x1688] sm:$0xff]
    %v911 = vld [vmem:[#allocation2 + $0x1690] sm:$0xff]
    %v912 = vld [vmem:[#allocation2 + $0x1698] sm:$0xff]
    %v913 = vld [vmem:[#allocation2 + $0x16a0] sm:$0xff]
    %v914 = vld [vmem:[#allocation2 + $0x16a8] sm:$0xff]
    %v915 = vld [vmem:[#allocation2 + $0x16b0] sm:$0xff]
    %v916 = vld [vmem:[#allocation2 + $0x16b8] sm:$0xff]
    %v917 = vld [vmem:[#allocation2 + $0x16c0] sm:$0xff]
    %v918 = vld [vmem:[#allocation2 + $0x16c8] sm:$0xff]
    %v919 = vld [vmem:[#allocation2 + $0x16d0] sm:$0xff]
    %v920 = vld [vmem:[#allocation2 + $0x16d8] sm:$0xff]
    %v921 = vld [vmem:[#allocation2 + $0x16e0] sm:$0xff]
    %v922 = vld [vmem:[#allocation2 + $0x16e8] sm:$0xff]
    %v923 = vld [vmem:[#allocation2 + $0x16f0] sm:$0xff]
    %v924 = vld [vmem:[#allocation2 + $0x16f8] sm:$0xff]
    %v925 = vld [vmem:[#allocation2 + $0x1700] sm:$0xff]
    %v926 = vld [vmem:[#allocation2 + $0x1708] sm:$0xff]
    %v927 = vld [vmem:[#allocation2 + $0x1710] sm:$0xff]
    %v928 = vld [vmem:[#allocation2 + $0x1718] sm:$0xff]
    %v929 = vld [vmem:[#allocation2 + $0x1720] sm:$0xff]
    %v930 = vld [vmem:[#allocation2 + $0x1728] sm:$0xff]
    %v931 = vld [vmem:[#allocation2 + $0x1730] sm:$0xff]
    %v932 = vld [vmem:[#allocation2 + $0x1738] sm:$0xff]
    %v933 = vld [vmem:[#allocation2 + $0x1740] sm:$0xff]
    %v934 = vld [vmem:[#allocation2 + $0x1748] sm:$0xff]
    %v935 = vld [vmem:[#allocation2 + $0x1750] sm:$0xff]
    %v936 = vld [vmem:[#allocation2 + $0x1758] sm:$0xff]
    %v937 = vld [vmem:[#allocation2 + $0x1760] sm:$0xff]
    %v938 = vld [vmem:[#allocation2 + $0x1768] sm:$0xff]
    %v939 = vld [vmem:[#allocation2 + $0x1770] sm:$0xff]
    %v940 = vld [vmem:[#allocation2 + $0x1778] sm:$0xff]
    %v941 = vld [vmem:[#allocation2 + $0x1780] sm:$0xff]
    %v942 = vld [vmem:[#allocation2 + $0x1788] sm:$0xff]
    %v943 = vld [vmem:[#allocation2 + $0x1790] sm:$0xff]
    %v944 = vld [vmem:[#allocation2 + $0x1798] sm:$0xff]
    %v945 = vld [vmem:[#allocation2 + $0x17a0] sm:$0xff]
    %v946 = vld [vmem:[#allocation2 + $0x17a8] sm:$0xff]
    %v947 = vld [vmem:[#allocation2 + $0x17b0] sm:$0xff]
    %v948 = vld [vmem:[#allocation2 + $0x17b8] sm:$0xff]
    %v949 = vld [vmem:[#allocation2 + $0x17c0] sm:$0xff]
    %v950 = vld [vmem:[#allocation2 + $0x17c8] sm:$0xff]
    %v951 = vld [vmem:[#allocation2 + $0x17d0] sm:$0xff]
    %v952 = vld [vmem:[#allocation2 + $0x17d8] sm:$0xff]
    %v953 = vld [vmem:[#allocation2 + $0x17e0] sm:$0xff]
    %v954 = vld [vmem:[#allocation2 + $0x17e8] sm:$0xff]
    %v955 = vld [vmem:[#allocation2 + $0x17f0] sm:$0xff]
    %v956 = vld [vmem:[#allocation2 + $0x17f8] sm:$0xff]
    %v1725 = vunpack.c.l.b16 %v189
    %v1726 = vunpack.c.h.b16 %v189
    %v1727 = vunpack.c.l.b16 %v190
    %v1728 = vunpack.c.h.b16 %v190
    %v1729 = vunpack.c.l.b16 %v191
    %v1730 = vunpack.c.h.b16 %v191
    %v1731 = vunpack.c.l.b16 %v192
    %v1732 = vunpack.c.h.b16 %v192
    %v1733 = vunpack.c.l.b16 %v193
    %v1734 = vunpack.c.h.b16 %v193
    %v1735 = vunpack.c.l.b16 %v194
    %v1736 = vunpack.c.h.b16 %v194
    %v1737 = vunpack.c.l.b16 %v195
    %v1738 = vunpack.c.h.b16 %v195
    %v1739 = vunpack.c.l.b16 %v196
    %v1740 = vunpack.c.h.b16 %v196
    %v1741 = vunpack.c.l.b16 %v197
    %v1742 = vunpack.c.h.b16 %v197
    %v1743 = vunpack.c.l.b16 %v198
    %v1744 = vunpack.c.h.b16 %v198
    %v1745 = vunpack.c.l.b16 %v199
    %v1746 = vunpack.c.h.b16 %v199
    %v1747 = vunpack.c.l.b16 %v200
    %v1748 = vunpack.c.h.b16 %v200
    %v1749 = vunpack.c.l.b16 %v201
    %v1750 = vunpack.c.h.b16 %v201
    %v1751 = vunpack.c.l.b16 %v202
    %v1752 = vunpack.c.h.b16 %v202
    %v1753 = vunpack.c.l.b16 %v203
    %v1754 = vunpack.c.h.b16 %v203
    %v1755 = vunpack.c.l.b16 %v204
    %v1756 = vunpack.c.h.b16 %v204
    %v1757 = vunpack.c.l.b16 %v205
    %v1758 = vunpack.c.h.b16 %v205
    %v1759 = vunpack.c.l.b16 %v206
    %v1760 = vunpack.c.h.b16 %v206
    %v1761 = vunpack.c.l.b16 %v207
    %v1762 = vunpack.c.h.b16 %v207
    %v1763 = vunpack.c.l.b16 %v208
    %v1764 = vunpack.c.h.b16 %v208
    %v1765 = vunpack.c.l.b16 %v209
    %v1766 = vunpack.c.h.b16 %v209
    %v1767 = vunpack.c.l.b16 %v210
    %v1768 = vunpack.c.h.b16 %v210
    %v1769 = vunpack.c.l.b16 %v211
    %v1770 = vunpack.c.h.b16 %v211
    %v1771 = vunpack.c.l.b16 %v212
    %v1772 = vunpack.c.h.b16 %v212
    %v1773 = vunpack.c.l.b16 %v213
    %v1774 = vunpack.c.h.b16 %v213
    %v1775 = vunpack.c.l.b16 %v214
    %v1776 = vunpack.c.h.b16 %v214
    %v1777 = vunpack.c.l.b16 %v215
    %v1778 = vunpack.c.h.b16 %v215
    %v1779 = vunpack.c.l.b16 %v216
    %v1780 = vunpack.c.h.b16 %v216
    %v1781 = vunpack.c.l.b16 %v217
    %v1782 = vunpack.c.h.b16 %v217
    %v1783 = vunpack.c.l.b16 %v218
    %v1784 = vunpack.c.h.b16 %v218
    %v1785 = vunpack.c.l.b16 %v219
    %v1786 = vunpack.c.h.b16 %v219
    %v1787 = vunpack.c.l.b16 %v220
    %v1788 = vunpack.c.h.b16 %v220
    %v1789 = vunpack.c.l.b16 %v221
    %v1790 = vunpack.c.h.b16 %v221
    %v1791 = vunpack.c.l.b16 %v222
    %v1792 = vunpack.c.h.b16 %v222
    %v1793 = vunpack.c.l.b16 %v223
    %v1794 = vunpack.c.h.b16 %v223
    %v1795 = vunpack.c.l.b16 %v224
    %v1796 = vunpack.c.h.b16 %v224
    %v1797 = vunpack.c.l.b16 %v225
    %v1798 = vunpack.c.h.b16 %v225
    %v1799 = vunpack.c.l.b16 %v226
    %v1800 = vunpack.c.h.b16 %v226
    %v1801 = vunpack.c.l.b16 %v227
    %v1802 = vunpack.c.h.b16 %v227
    %v1803 = vunpack.c.l.b16 %v228
    %v1804 = vunpack.c.h.b16 %v228
    %v1805 = vunpack.c.l.b16 %v229
    %v1806 = vunpack.c.h.b16 %v229
    %v1807 = vunpack.c.l.b16 %v230
    %v1808 = vunpack.c.h.b16 %v230
    %v1809 = vunpack.c.l.b16 %v231
    %v1810 = vunpack.c.h.b16 %v231
    %v1811 = vunpack.c.l.b16 %v232
    %v1812 = vunpack.c.h.b16 %v232
    %v1813 = vunpack.c.l.b16 %v233
    %v1814 = vunpack.c.h.b16 %v233
    %v1815 = vunpack.c.l.b16 %v234
    %v1816 = vunpack.c.h.b16 %v234
    %v1817 = vunpack.c.l.b16 %v235
    %v1818 = vunpack.c.h.b16 %v235
    %v1819 = vunpack.c.l.b16 %v236
    %v1820 = vunpack.c.h.b16 %v236
    %v1821 = vunpack.c.l.b16 %v237
    %v1822 = vunpack.c.h.b16 %v237
    %v1823 = vunpack.c.l.b16 %v238
    %v1824 = vunpack.c.h.b16 %v238
    %v1825 = vunpack.c.l.b16 %v239
    %v1826 = vunpack.c.h.b16 %v239
    %v1827 = vunpack.c.l.b16 %v240
    %v1828 = vunpack.c.h.b16 %v240
    %v1829 = vunpack.c.l.b16 %v241
    %v1830 = vunpack.c.h.b16 %v241
    %v1831 = vunpack.c.l.b16 %v242
    %v1832 = vunpack.c.h.b16 %v242
    %v1833 = vunpack.c.l.b16 %v243
    %v1834 = vunpack.c.h.b16 %v243
    %v1835 = vunpack.c.l.b16 %v244
    %v1836 = vunpack.c.h.b16 %v244
    %v1837 = vunpack.c.l.b16 %v245
    %v1838 = vunpack.c.h.b16 %v245
    %v1839 = vunpack.c.l.b16 %v246
    %v1840 = vunpack.c.h.b16 %v246
    %v1841 = vunpack.c.l.b16 %v247
    %v1842 = vunpack.c.h.b16 %v247
    %v1843 = vunpack.c.l.b16 %v248
    %v1844 = vunpack.c.h.b16 %v248
    %v1845 = vunpack.c.l.b16 %v249
    %v1846 = vunpack.c.h.b16 %v249
    %v1847 = vunpack.c.l.b16 %v250
    %v1848 = vunpack.c.h.b16 %v250
    %v1849 = vunpack.c.l.b16 %v251
    %v1850 = vunpack.c.h.b16 %v251
    %v1851 = vunpack.c.l.b16 %v252
    %v1852 = vunpack.c.h.b16 %v252
    %v1853 = vunpack.c.l.b16 %v253
    %v1854 = vunpack.c.h.b16 %v253
    %v1855 = vunpack.c.l.b16 %v254
    %v1856 = vunpack.c.h.b16 %v254
    %v1857 = vunpack.c.l.b16 %v255
    %v1858 = vunpack.c.h.b16 %v255
    %v1859 = vunpack.c.l.b16 %v256
    %v1860 = vunpack.c.h.b16 %v256
    %v1861 = vunpack.c.l.b16 %v257
    %v1862 = vunpack.c.h.b16 %v257
    %v1863 = vunpack.c.l.b16 %v258
    %v1864 = vunpack.c.h.b16 %v258
    %v1865 = vunpack.c.l.b16 %v259
    %v1866 = vunpack.c.h.b16 %v259
    %v1867 = vunpack.c.l.b16 %v260
    %v1868 = vunpack.c.h.b16 %v260
    %v1869 = vunpack.c.l.b16 %v261
    %v1870 = vunpack.c.h.b16 %v261
    %v1871 = vunpack.c.l.b16 %v262
    %v1872 = vunpack.c.h.b16 %v262
    %v1873 = vunpack.c.l.b16 %v263
    %v1874 = vunpack.c.h.b16 %v263
    %v1875 = vunpack.c.l.b16 %v264
    %v1876 = vunpack.c.h.b16 %v264
    %v1877 = vunpack.c.l.b16 %v265
    %v1878 = vunpack.c.h.b16 %v265
    %v1879 = vunpack.c.l.b16 %v266
    %v1880 = vunpack.c.h.b16 %v266
    %v1881 = vunpack.c.l.b16 %v267
    %v1882 = vunpack.c.h.b16 %v267
    %v1883 = vunpack.c.l.b16 %v268
    %v1884 = vunpack.c.h.b16 %v268
    %v1885 = vunpack.c.l.b16 %v269
    %v1886 = vunpack.c.h.b16 %v269
    %v1887 = vunpack.c.l.b16 %v270
    %v1888 = vunpack.c.h.b16 %v270
    %v1889 = vunpack.c.l.b16 %v271
    %v1890 = vunpack.c.h.b16 %v271
    %v1891 = vunpack.c.l.b16 %v272
    %v1892 = vunpack.c.h.b16 %v272
    %v1893 = vunpack.c.l.b16 %v273
    %v1894 = vunpack.c.h.b16 %v273
    %v1895 = vunpack.c.l.b16 %v274
    %v1896 = vunpack.c.h.b16 %v274
    %v1897 = vunpack.c.l.b16 %v275
    %v1898 = vunpack.c.h.b16 %v275
    %v1899 = vunpack.c.l.b16 %v276
    %v1900 = vunpack.c.h.b16 %v276
    %v1901 = vunpack.c.l.b16 %v277
    %v1902 = vunpack.c.h.b16 %v277
    %v1903 = vunpack.c.l.b16 %v278
    %v1904 = vunpack.c.h.b16 %v278
    %v1905 = vunpack.c.l.b16 %v279
    %v1906 = vunpack.c.h.b16 %v279
    %v1907 = vunpack.c.l.b16 %v280
    %v1908 = vunpack.c.h.b16 %v280
    %v1909 = vunpack.c.l.b16 %v281
    %v1910 = vunpack.c.h.b16 %v281
    %v1911 = vunpack.c.l.b16 %v282
    %v1912 = vunpack.c.h.b16 %v282
    %v1913 = vunpack.c.l.b16 %v283
    %v1914 = vunpack.c.h.b16 %v283
    %v1915 = vunpack.c.l.b16 %v284
    %v1916 = vunpack.c.h.b16 %v284
    %v1917 = vunpack.c.l.b16 %v285
    %v1918 = vunpack.c.h.b16 %v285
    %v1919 = vunpack.c.l.b16 %v286
    %v1920 = vunpack.c.h.b16 %v286
    %v1921 = vunpack.c.l.b16 %v287
    %v1922 = vunpack.c.h.b16 %v287
    %v1923 = vunpack.c.l.b16 %v288
    %v1924 = vunpack.c.h.b16 %v288
    %v1925 = vunpack.c.l.b16 %v289
    %v1926 = vunpack.c.h.b16 %v289
    %v1927 = vunpack.c.l.b16 %v290
    %v1928 = vunpack.c.h.b16 %v290
    %v1929 = vunpack.c.l.b16 %v291
    %v1930 = vunpack.c.h.b16 %v291
    %v1931 = vunpack.c.l.b16 %v292
    %v1932 = vunpack.c.h.b16 %v292
    %v1933 = vunpack.c.l.b16 %v293
    %v1934 = vunpack.c.h.b16 %v293
    %v1935 = vunpack.c.l.b16 %v294
    %v1936 = vunpack.c.h.b16 %v294
    %v1937 = vunpack.c.l.b16 %v295
    %v1938 = vunpack.c.h.b16 %v295
    %v1939 = vunpack.c.l.b16 %v296
    %v1940 = vunpack.c.h.b16 %v296
    %v1941 = vunpack.c.l.b16 %v297
    %v1942 = vunpack.c.h.b16 %v297
    %v1943 = vunpack.c.l.b16 %v298
    %v1944 = vunpack.c.h.b16 %v298
    %v1945 = vunpack.c.l.b16 %v299
    %v1946 = vunpack.c.h.b16 %v299
    %v1947 = vunpack.c.l.b16 %v300
    %v1948 = vunpack.c.h.b16 %v300
    %v1949 = vunpack.c.l.b16 %v301
    %v1950 = vunpack.c.h.b16 %v301
    %v1951 = vunpack.c.l.b16 %v302
    %v1952 = vunpack.c.h.b16 %v302
    %v1953 = vunpack.c.l.b16 %v303
    %v1954 = vunpack.c.h.b16 %v303
    %v1955 = vunpack.c.l.b16 %v304
    %v1956 = vunpack.c.h.b16 %v304
    %v1957 = vunpack.c.l.b16 %v305
    %v1958 = vunpack.c.h.b16 %v305
    %v1959 = vunpack.c.l.b16 %v306
    %v1960 = vunpack.c.h.b16 %v306
    %v1961 = vunpack.c.l.b16 %v307
    %v1962 = vunpack.c.h.b16 %v307
    %v1963 = vunpack.c.l.b16 %v308
    %v1964 = vunpack.c.h.b16 %v308
    %v1965 = vunpack.c.l.b16 %v309
    %v1966 = vunpack.c.h.b16 %v309
    %v1967 = vunpack.c.l.b16 %v310
    %v1968 = vunpack.c.h.b16 %v310
    %v1969 = vunpack.c.l.b16 %v311
    %v1970 = vunpack.c.h.b16 %v311
    %v1971 = vunpack.c.l.b16 %v312
    %v1972 = vunpack.c.h.b16 %v312
    %v1973 = vunpack.c.l.b16 %v313
    %v1974 = vunpack.c.h.b16 %v313
    %v1975 = vunpack.c.l.b16 %v314
    %v1976 = vunpack.c.h.b16 %v314
    %v1977 = vunpack.c.l.b16 %v315
    %v1978 = vunpack.c.h.b16 %v315
    %v1979 = vunpack.c.l.b16 %v316
    %v1980 = vunpack.c.h.b16 %v316
    %v1981 = vunpack.c.l.b16 %v317
    %v1982 = vunpack.c.h.b16 %v317
    %v1983 = vunpack.c.l.b16 %v318
    %v1984 = vunpack.c.h.b16 %v318
    %v1985 = vunpack.c.l.b16 %v319
    %v1986 = vunpack.c.h.b16 %v319
    %v1987 = vunpack.c.l.b16 %v320
    %v1988 = vunpack.c.h.b16 %v320
    %v1989 = vunpack.c.l.b16 %v321
    %v1990 = vunpack.c.h.b16 %v321
    %v1991 = vunpack.c.l.b16 %v322
    %v1992 = vunpack.c.h.b16 %v322
    %v1993 = vunpack.c.l.b16 %v323
    %v1994 = vunpack.c.h.b16 %v323
    %v1995 = vunpack.c.l.b16 %v324
    %v1996 = vunpack.c.h.b16 %v324
    %v1997 = vunpack.c.l.b16 %v325
    %v1998 = vunpack.c.h.b16 %v325
    %v1999 = vunpack.c.l.b16 %v326
    %v2000 = vunpack.c.h.b16 %v326
    %v2001 = vunpack.c.l.b16 %v327
    %v2002 = vunpack.c.h.b16 %v327
    %v2003 = vunpack.c.l.b16 %v328
    %v2004 = vunpack.c.h.b16 %v328
    %v2005 = vunpack.c.l.b16 %v329
    %v2006 = vunpack.c.h.b16 %v329
    %v2007 = vunpack.c.l.b16 %v330
    %v2008 = vunpack.c.h.b16 %v330
    %v2009 = vunpack.c.l.b16 %v331
    %v2010 = vunpack.c.h.b16 %v331
    %v2011 = vunpack.c.l.b16 %v332
    %v2012 = vunpack.c.h.b16 %v332
    %v2013 = vunpack.c.l.b16 %v333
    %v2014 = vunpack.c.h.b16 %v333
    %v2015 = vunpack.c.l.b16 %v334
    %v2016 = vunpack.c.h.b16 %v334
    %v2017 = vunpack.c.l.b16 %v335
    %v2018 = vunpack.c.h.b16 %v335
    %v2019 = vunpack.c.l.b16 %v336
    %v2020 = vunpack.c.h.b16 %v336
    %v2021 = vunpack.c.l.b16 %v337
    %v2022 = vunpack.c.h.b16 %v337
    %v2023 = vunpack.c.l.b16 %v338
    %v2024 = vunpack.c.h.b16 %v338
    %v2025 = vunpack.c.l.b16 %v339
    %v2026 = vunpack.c.h.b16 %v339
    %v2027 = vunpack.c.l.b16 %v340
    %v2028 = vunpack.c.h.b16 %v340
    %v2029 = vunpack.c.l.b16 %v341
    %v2030 = vunpack.c.h.b16 %v341
    %v2031 = vunpack.c.l.b16 %v342
    %v2032 = vunpack.c.h.b16 %v342
    %v2033 = vunpack.c.l.b16 %v343
    %v2034 = vunpack.c.h.b16 %v343
    %v2035 = vunpack.c.l.b16 %v344
    %v2036 = vunpack.c.h.b16 %v344
    %v2037 = vunpack.c.l.b16 %v345
    %v2038 = vunpack.c.h.b16 %v345
    %v2039 = vunpack.c.l.b16 %v346
    %v2040 = vunpack.c.h.b16 %v346
    %v2041 = vunpack.c.l.b16 %v347
    %v2042 = vunpack.c.h.b16 %v347
    %v2043 = vunpack.c.l.b16 %v348
    %v2044 = vunpack.c.h.b16 %v348
    %v2045 = vunpack.c.l.b16 %v349
    %v2046 = vunpack.c.h.b16 %v349
    %v2047 = vunpack.c.l.b16 %v350
    %v2048 = vunpack.c.h.b16 %v350
    %v2049 = vunpack.c.l.b16 %v351
    %v2050 = vunpack.c.h.b16 %v351
    %v2051 = vunpack.c.l.b16 %v352
    %v2052 = vunpack.c.h.b16 %v352
    %v2053 = vunpack.c.l.b16 %v353
    %v2054 = vunpack.c.h.b16 %v353
    %v2055 = vunpack.c.l.b16 %v354
    %v2056 = vunpack.c.h.b16 %v354
    %v2057 = vunpack.c.l.b16 %v355
    %v2058 = vunpack.c.h.b16 %v355
    %v2059 = vunpack.c.l.b16 %v356
    %v2060 = vunpack.c.h.b16 %v356
    %v2061 = vunpack.c.l.b16 %v357
    %v2062 = vunpack.c.h.b16 %v357
    %v2063 = vunpack.c.l.b16 %v358
    %v2064 = vunpack.c.h.b16 %v358
    %v2065 = vunpack.c.l.b16 %v359
    %v2066 = vunpack.c.h.b16 %v359
    %v2067 = vunpack.c.l.b16 %v360
    %v2068 = vunpack.c.h.b16 %v360
    %v2069 = vunpack.c.l.b16 %v361
    %v2070 = vunpack.c.h.b16 %v361
    %v2071 = vunpack.c.l.b16 %v362
    %v2072 = vunpack.c.h.b16 %v362
    %v2073 = vunpack.c.l.b16 %v363
    %v2074 = vunpack.c.h.b16 %v363
    %v2075 = vunpack.c.l.b16 %v364
    %v2076 = vunpack.c.h.b16 %v364
    %v2077 = vunpack.c.l.b16 %v365
    %v2078 = vunpack.c.h.b16 %v365
    %v2079 = vunpack.c.l.b16 %v366
    %v2080 = vunpack.c.h.b16 %v366
    %v2081 = vunpack.c.l.b16 %v367
    %v2082 = vunpack.c.h.b16 %v367
    %v2083 = vunpack.c.l.b16 %v368
    %v2084 = vunpack.c.h.b16 %v368
    %v2085 = vunpack.c.l.b16 %v369
    %v2086 = vunpack.c.h.b16 %v369
    %v2087 = vunpack.c.l.b16 %v370
    %v2088 = vunpack.c.h.b16 %v370
    %v2089 = vunpack.c.l.b16 %v371
    %v2090 = vunpack.c.h.b16 %v371
    %v2091 = vunpack.c.l.b16 %v372
    %v2092 = vunpack.c.h.b16 %v372
    %v2093 = vunpack.c.l.b16 %v373
    %v2094 = vunpack.c.h.b16 %v373
    %v2095 = vunpack.c.l.b16 %v374
    %v2096 = vunpack.c.h.b16 %v374
    %v2097 = vunpack.c.l.b16 %v375
    %v2098 = vunpack.c.h.b16 %v375
    %v2099 = vunpack.c.l.b16 %v376
    %v2100 = vunpack.c.h.b16 %v376
    %v2101 = vunpack.c.l.b16 %v377
    %v2102 = vunpack.c.h.b16 %v377
    %v2103 = vunpack.c.l.b16 %v378
    %v2104 = vunpack.c.h.b16 %v378
    %v2105 = vunpack.c.l.b16 %v379
    %v2106 = vunpack.c.h.b16 %v379
    %v2107 = vunpack.c.l.b16 %v380
    %v2108 = vunpack.c.h.b16 %v380
    %v2109 = vunpack.c.l.b16 %v381
    %v2110 = vunpack.c.h.b16 %v381
    %v2111 = vunpack.c.l.b16 %v382
    %v2112 = vunpack.c.h.b16 %v382
    %v2113 = vunpack.c.l.b16 %v383
    %v2114 = vunpack.c.h.b16 %v383
    %v2115 = vunpack.c.l.b16 %v384
    %v2116 = vunpack.c.h.b16 %v384
    %v2117 = vunpack.c.l.b16 %v385
    %v2118 = vunpack.c.h.b16 %v385
    %v2119 = vunpack.c.l.b16 %v386
    %v2120 = vunpack.c.h.b16 %v386
    %v2121 = vunpack.c.l.b16 %v387
    %v2122 = vunpack.c.h.b16 %v387
    %v2123 = vunpack.c.l.b16 %v388
    %v2124 = vunpack.c.h.b16 %v388
    %v2125 = vunpack.c.l.b16 %v389
    %v2126 = vunpack.c.h.b16 %v389
    %v2127 = vunpack.c.l.b16 %v390
    %v2128 = vunpack.c.h.b16 %v390
    %v2129 = vunpack.c.l.b16 %v391
    %v2130 = vunpack.c.h.b16 %v391
    %v2131 = vunpack.c.l.b16 %v392
    %v2132 = vunpack.c.h.b16 %v392
    %v2133 = vunpack.c.l.b16 %v393
    %v2134 = vunpack.c.h.b16 %v393
    %v2135 = vunpack.c.l.b16 %v394
    %v2136 = vunpack.c.h.b16 %v394
    %v2137 = vunpack.c.l.b16 %v395
    %v2138 = vunpack.c.h.b16 %v395
    %v2139 = vunpack.c.l.b16 %v396
    %v2140 = vunpack.c.h.b16 %v396
    %v2141 = vunpack.c.l.b16 %v397
    %v2142 = vunpack.c.h.b16 %v397
    %v2143 = vunpack.c.l.b16 %v398
    %v2144 = vunpack.c.h.b16 %v398
    %v2145 = vunpack.c.l.b16 %v399
    %v2146 = vunpack.c.h.b16 %v399
    %v2147 = vunpack.c.l.b16 %v400
    %v2148 = vunpack.c.h.b16 %v400
    %v2149 = vunpack.c.l.b16 %v401
    %v2150 = vunpack.c.h.b16 %v401
    %v2151 = vunpack.c.l.b16 %v402
    %v2152 = vunpack.c.h.b16 %v402
    %v2153 = vunpack.c.l.b16 %v403
    %v2154 = vunpack.c.h.b16 %v403
    %v2155 = vunpack.c.l.b16 %v404
    %v2156 = vunpack.c.h.b16 %v404
    %v2157 = vunpack.c.l.b16 %v405
    %v2158 = vunpack.c.h.b16 %v405
    %v2159 = vunpack.c.l.b16 %v406
    %v2160 = vunpack.c.h.b16 %v406
    %v2161 = vunpack.c.l.b16 %v407
    %v2162 = vunpack.c.h.b16 %v407
    %v2163 = vunpack.c.l.b16 %v408
    %v2164 = vunpack.c.h.b16 %v408
    %v2165 = vunpack.c.l.b16 %v409
    %v2166 = vunpack.c.h.b16 %v409
    %v2167 = vunpack.c.l.b16 %v410
    %v2168 = vunpack.c.h.b16 %v410
    %v2169 = vunpack.c.l.b16 %v411
    %v2170 = vunpack.c.h.b16 %v411
    %v2171 = vunpack.c.l.b16 %v412
    %v2172 = vunpack.c.h.b16 %v412
    %v2173 = vunpack.c.l.b16 %v413
    %v2174 = vunpack.c.h.b16 %v413
    %v2175 = vunpack.c.l.b16 %v414
    %v2176 = vunpack.c.h.b16 %v414
    %v2177 = vunpack.c.l.b16 %v415
    %v2178 = vunpack.c.h.b16 %v415
    %v2179 = vunpack.c.l.b16 %v416
    %v2180 = vunpack.c.h.b16 %v416
    %v2181 = vunpack.c.l.b16 %v417
    %v2182 = vunpack.c.h.b16 %v417
    %v2183 = vunpack.c.l.b16 %v418
    %v2184 = vunpack.c.h.b16 %v418
    %v2185 = vunpack.c.l.b16 %v419
    %v2186 = vunpack.c.h.b16 %v419
    %v2187 = vunpack.c.l.b16 %v420
    %v2188 = vunpack.c.h.b16 %v420
    %v2189 = vunpack.c.l.b16 %v421
    %v2190 = vunpack.c.h.b16 %v421
    %v2191 = vunpack.c.l.b16 %v422
    %v2192 = vunpack.c.h.b16 %v422
    %v2193 = vunpack.c.l.b16 %v423
    %v2194 = vunpack.c.h.b16 %v423
    %v2195 = vunpack.c.l.b16 %v424
    %v2196 = vunpack.c.h.b16 %v424
    %v2197 = vunpack.c.l.b16 %v425
    %v2198 = vunpack.c.h.b16 %v425
    %v2199 = vunpack.c.l.b16 %v426
    %v2200 = vunpack.c.h.b16 %v426
    %v2201 = vunpack.c.l.b16 %v427
    %v2202 = vunpack.c.h.b16 %v427
    %v2203 = vunpack.c.l.b16 %v428
    %v2204 = vunpack.c.h.b16 %v428
    %v2205 = vunpack.c.l.b16 %v429
    %v2206 = vunpack.c.h.b16 %v429
    %v2207 = vunpack.c.l.b16 %v430
    %v2208 = vunpack.c.h.b16 %v430
    %v2209 = vunpack.c.l.b16 %v431
    %v2210 = vunpack.c.h.b16 %v431
    %v2211 = vunpack.c.l.b16 %v432
    %v2212 = vunpack.c.h.b16 %v432
    %v2213 = vunpack.c.l.b16 %v433
    %v2214 = vunpack.c.h.b16 %v433
    %v2215 = vunpack.c.l.b16 %v434
    %v2216 = vunpack.c.h.b16 %v434
    %v2217 = vunpack.c.l.b16 %v435
    %v2218 = vunpack.c.h.b16 %v435
    %v2219 = vunpack.c.l.b16 %v436
    %v2220 = vunpack.c.h.b16 %v436
    %v2221 = vunpack.c.l.b16 %v437
    %v2222 = vunpack.c.h.b16 %v437
    %v2223 = vunpack.c.l.b16 %v438
    %v2224 = vunpack.c.h.b16 %v438
    %v2225 = vunpack.c.l.b16 %v439
    %v2226 = vunpack.c.h.b16 %v439
    %v2227 = vunpack.c.l.b16 %v440
    %v2228 = vunpack.c.h.b16 %v440
    %v2229 = vunpack.c.l.b16 %v441
    %v2230 = vunpack.c.h.b16 %v441
    %v2231 = vunpack.c.l.b16 %v442
    %v2232 = vunpack.c.h.b16 %v442
    %v2233 = vunpack.c.l.b16 %v443
    %v2234 = vunpack.c.h.b16 %v443
    %v2235 = vunpack.c.l.b16 %v444
    %v2236 = vunpack.c.h.b16 %v444
    %v2237 = vunpack.c.l.b16 %v445
    %v2238 = vunpack.c.h.b16 %v445
    %v2239 = vunpack.c.l.b16 %v446
    %v2240 = vunpack.c.h.b16 %v446
    %v2241 = vunpack.c.l.b16 %v447
    %v2242 = vunpack.c.h.b16 %v447
    %v2243 = vunpack.c.l.b16 %v448
    %v2244 = vunpack.c.h.b16 %v448
    %v2245 = vunpack.c.l.b16 %v449
    %v2246 = vunpack.c.h.b16 %v449
    %v2247 = vunpack.c.l.b16 %v450
    %v2248 = vunpack.c.h.b16 %v450
    %v2249 = vunpack.c.l.b16 %v451
    %v2250 = vunpack.c.h.b16 %v451
    %v2251 = vunpack.c.l.b16 %v452
    %v2252 = vunpack.c.h.b16 %v452
    %v2253 = vunpack.c.l.b16 %v453
    %v2254 = vunpack.c.h.b16 %v453
    %v2255 = vunpack.c.l.b16 %v454
    %v2256 = vunpack.c.h.b16 %v454
    %v2257 = vunpack.c.l.b16 %v455
    %v2258 = vunpack.c.h.b16 %v455
    %v2259 = vunpack.c.l.b16 %v456
    %v2260 = vunpack.c.h.b16 %v456
    %v2261 = vunpack.c.l.b16 %v457
    %v2262 = vunpack.c.h.b16 %v457
    %v2263 = vunpack.c.l.b16 %v458
    %v2264 = vunpack.c.h.b16 %v458
    %v2265 = vunpack.c.l.b16 %v459
    %v2266 = vunpack.c.h.b16 %v459
    %v2267 = vunpack.c.l.b16 %v460
    %v2268 = vunpack.c.h.b16 %v460
    %v2269 = vunpack.c.l.b16 %v461
    %v2270 = vunpack.c.h.b16 %v461
    %v2271 = vunpack.c.l.b16 %v462
    %v2272 = vunpack.c.h.b16 %v462
    %v2273 = vunpack.c.l.b16 %v463
    %v2274 = vunpack.c.h.b16 %v463
    %v2275 = vunpack.c.l.b16 %v464
    %v2276 = vunpack.c.h.b16 %v464
    %v2277 = vunpack.c.l.b16 %v465
    %v2278 = vunpack.c.h.b16 %v465
    %v2279 = vunpack.c.l.b16 %v466
    %v2280 = vunpack.c.h.b16 %v466
    %v2281 = vunpack.c.l.b16 %v467
    %v2282 = vunpack.c.h.b16 %v467
    %v2283 = vunpack.c.l.b16 %v468
    %v2284 = vunpack.c.h.b16 %v468
    %v2285 = vunpack.c.l.b16 %v469
    %v2286 = vunpack.c.h.b16 %v469
    %v2287 = vunpack.c.l.b16 %v470
    %v2288 = vunpack.c.h.b16 %v470
    %v2289 = vunpack.c.l.b16 %v471
    %v2290 = vunpack.c.h.b16 %v471
    %v2291 = vunpack.c.l.b16 %v472
    %v2292 = vunpack.c.h.b16 %v472
    %v2293 = vunpack.c.l.b16 %v473
    %v2294 = vunpack.c.h.b16 %v473
    %v2295 = vunpack.c.l.b16 %v474
    %v2296 = vunpack.c.h.b16 %v474
    %v2297 = vunpack.c.l.b16 %v475
    %v2298 = vunpack.c.h.b16 %v475
    %v2299 = vunpack.c.l.b16 %v476
    %v2300 = vunpack.c.h.b16 %v476
    %v2301 = vunpack.c.l.b16 %v477
    %v2302 = vunpack.c.h.b16 %v477
    %v2303 = vunpack.c.l.b16 %v478
    %v2304 = vunpack.c.h.b16 %v478
    %v2305 = vunpack.c.l.b16 %v479
    %v2306 = vunpack.c.h.b16 %v479
    %v2307 = vunpack.c.l.b16 %v480
    %v2308 = vunpack.c.h.b16 %v480
    %v2309 = vunpack.c.l.b16 %v481
    %v2310 = vunpack.c.h.b16 %v481
    %v2311 = vunpack.c.l.b16 %v482
    %v2312 = vunpack.c.h.b16 %v482
    %v2313 = vunpack.c.l.b16 %v483
    %v2314 = vunpack.c.h.b16 %v483
    %v2315 = vunpack.c.l.b16 %v484
    %v2316 = vunpack.c.h.b16 %v484
    %v2317 = vunpack.c.l.b16 %v485
    %v2318 = vunpack.c.h.b16 %v485
    %v2319 = vunpack.c.l.b16 %v486
    %v2320 = vunpack.c.h.b16 %v486
    %v2321 = vunpack.c.l.b16 %v487
    %v2322 = vunpack.c.h.b16 %v487
    %v2323 = vunpack.c.l.b16 %v488
    %v2324 = vunpack.c.h.b16 %v488
    %v2325 = vunpack.c.l.b16 %v489
    %v2326 = vunpack.c.h.b16 %v489
    %v2327 = vunpack.c.l.b16 %v490
    %v2328 = vunpack.c.h.b16 %v490
    %v2329 = vunpack.c.l.b16 %v491
    %v2330 = vunpack.c.h.b16 %v491
    %v2331 = vunpack.c.l.b16 %v492
    %v2332 = vunpack.c.h.b16 %v492
    %v2333 = vunpack.c.l.b16 %v493
    %v2334 = vunpack.c.h.b16 %v493
    %v2335 = vunpack.c.l.b16 %v494
    %v2336 = vunpack.c.h.b16 %v494
    %v2337 = vunpack.c.l.b16 %v495
    %v2338 = vunpack.c.h.b16 %v495
    %v2339 = vunpack.c.l.b16 %v496
    %v2340 = vunpack.c.h.b16 %v496
    %v2341 = vunpack.c.l.b16 %v497
    %v2342 = vunpack.c.h.b16 %v497
    %v2343 = vunpack.c.l.b16 %v498
    %v2344 = vunpack.c.h.b16 %v498
    %v2345 = vunpack.c.l.b16 %v499
    %v2346 = vunpack.c.h.b16 %v499
    %v2347 = vunpack.c.l.b16 %v500
    %v2348 = vunpack.c.h.b16 %v500
    %v2349 = vunpack.c.l.b16 %v501
    %v2350 = vunpack.c.h.b16 %v501
    %v2351 = vunpack.c.l.b16 %v502
    %v2352 = vunpack.c.h.b16 %v502
    %v2353 = vunpack.c.l.b16 %v503
    %v2354 = vunpack.c.h.b16 %v503
    %v2355 = vunpack.c.l.b16 %v504
    %v2356 = vunpack.c.h.b16 %v504
    %v2357 = vunpack.c.l.b16 %v505
    %v2358 = vunpack.c.h.b16 %v505
    %v2359 = vunpack.c.l.b16 %v506
    %v2360 = vunpack.c.h.b16 %v506
    %v2361 = vunpack.c.l.b16 %v507
    %v2362 = vunpack.c.h.b16 %v507
    %v2363 = vunpack.c.l.b16 %v508
    %v2364 = vunpack.c.h.b16 %v508
    %v2365 = vunpack.c.l.b16 %v509
    %v2366 = vunpack.c.h.b16 %v509
    %v2367 = vunpack.c.l.b16 %v510
    %v2368 = vunpack.c.h.b16 %v510
    %v2369 = vunpack.c.l.b16 %v511
    %v2370 = vunpack.c.h.b16 %v511
    %v2371 = vunpack.c.l.b16 %v512
    %v2372 = vunpack.c.h.b16 %v512
    %v2373 = vunpack.c.l.b16 %v513
    %v2374 = vunpack.c.h.b16 %v513
    %v2375 = vunpack.c.l.b16 %v514
    %v2376 = vunpack.c.h.b16 %v514
    %v2377 = vunpack.c.l.b16 %v515
    %v2378 = vunpack.c.h.b16 %v515
    %v2379 = vunpack.c.l.b16 %v516
    %v2380 = vunpack.c.h.b16 %v516
    %v2381 = vunpack.c.l.b16 %v517
    %v2382 = vunpack.c.h.b16 %v517
    %v2383 = vunpack.c.l.b16 %v518
    %v2384 = vunpack.c.h.b16 %v518
    %v2385 = vunpack.c.l.b16 %v519
    %v2386 = vunpack.c.h.b16 %v519
    %v2387 = vunpack.c.l.b16 %v520
    %v2388 = vunpack.c.h.b16 %v520
    %v2389 = vunpack.c.l.b16 %v521
    %v2390 = vunpack.c.h.b16 %v521
    %v2391 = vunpack.c.l.b16 %v522
    %v2392 = vunpack.c.h.b16 %v522
    %v2393 = vunpack.c.l.b16 %v523
    %v2394 = vunpack.c.h.b16 %v523
    %v2395 = vunpack.c.l.b16 %v524
    %v2396 = vunpack.c.h.b16 %v524
    %v2397 = vunpack.c.l.b16 %v525
    %v2398 = vunpack.c.h.b16 %v525
    %v2399 = vunpack.c.l.b16 %v526
    %v2400 = vunpack.c.h.b16 %v526
    %v2401 = vunpack.c.l.b16 %v527
    %v2402 = vunpack.c.h.b16 %v527
    %v2403 = vunpack.c.l.b16 %v528
    %v2404 = vunpack.c.h.b16 %v528
    %v2405 = vunpack.c.l.b16 %v529
    %v2406 = vunpack.c.h.b16 %v529
    %v2407 = vunpack.c.l.b16 %v530
    %v2408 = vunpack.c.h.b16 %v530
    %v2409 = vunpack.c.l.b16 %v531
    %v2410 = vunpack.c.h.b16 %v531
    %v2411 = vunpack.c.l.b16 %v532
    %v2412 = vunpack.c.h.b16 %v532
    %v2413 = vunpack.c.l.b16 %v533
    %v2414 = vunpack.c.h.b16 %v533
    %v2415 = vunpack.c.l.b16 %v534
    %v2416 = vunpack.c.h.b16 %v534
    %v2417 = vunpack.c.l.b16 %v535
    %v2418 = vunpack.c.h.b16 %v535
    %v2419 = vunpack.c.l.b16 %v536
    %v2420 = vunpack.c.h.b16 %v536
    %v2421 = vunpack.c.l.b16 %v537
    %v2422 = vunpack.c.h.b16 %v537
    %v2423 = vunpack.c.l.b16 %v538
    %v2424 = vunpack.c.h.b16 %v538
    %v2425 = vunpack.c.l.b16 %v539
    %v2426 = vunpack.c.h.b16 %v539
    %v2427 = vunpack.c.l.b16 %v540
    %v2428 = vunpack.c.h.b16 %v540
    %v2429 = vunpack.c.l.b16 %v541
    %v2430 = vunpack.c.h.b16 %v541
    %v2431 = vunpack.c.l.b16 %v542
    %v2432 = vunpack.c.h.b16 %v542
    %v2433 = vunpack.c.l.b16 %v543
    %v2434 = vunpack.c.h.b16 %v543
    %v2435 = vunpack.c.l.b16 %v544
    %v2436 = vunpack.c.h.b16 %v544
    %v2437 = vunpack.c.l.b16 %v545
    %v2438 = vunpack.c.h.b16 %v545
    %v2439 = vunpack.c.l.b16 %v546
    %v2440 = vunpack.c.h.b16 %v546
    %v2441 = vunpack.c.l.b16 %v547
    %v2442 = vunpack.c.h.b16 %v547
    %v2443 = vunpack.c.l.b16 %v548
    %v2444 = vunpack.c.h.b16 %v548
    %v2445 = vunpack.c.l.b16 %v549
    %v2446 = vunpack.c.h.b16 %v549
    %v2447 = vunpack.c.l.b16 %v550
    %v2448 = vunpack.c.h.b16 %v550
    %v2449 = vunpack.c.l.b16 %v551
    %v2450 = vunpack.c.h.b16 %v551
    %v2451 = vunpack.c.l.b16 %v552
    %v2452 = vunpack.c.h.b16 %v552
    %v2453 = vunpack.c.l.b16 %v553
    %v2454 = vunpack.c.h.b16 %v553
    %v2455 = vunpack.c.l.b16 %v554
    %v2456 = vunpack.c.h.b16 %v554
    %v2457 = vunpack.c.l.b16 %v555
    %v2458 = vunpack.c.h.b16 %v555
    %v2459 = vunpack.c.l.b16 %v556
    %v2460 = vunpack.c.h.b16 %v556
    %v2461 = vunpack.c.l.b16 %v557
    %v2462 = vunpack.c.h.b16 %v557
    %v2463 = vunpack.c.l.b16 %v558
    %v2464 = vunpack.c.h.b16 %v558
    %v2465 = vunpack.c.l.b16 %v559
    %v2466 = vunpack.c.h.b16 %v559
    %v2467 = vunpack.c.l.b16 %v560
    %v2468 = vunpack.c.h.b16 %v560
    %v2469 = vunpack.c.l.b16 %v561
    %v2470 = vunpack.c.h.b16 %v561
    %v2471 = vunpack.c.l.b16 %v562
    %v2472 = vunpack.c.h.b16 %v562
    %v2473 = vunpack.c.l.b16 %v563
    %v2474 = vunpack.c.h.b16 %v563
    %v2475 = vunpack.c.l.b16 %v564
    %v2476 = vunpack.c.h.b16 %v564
    %v2477 = vunpack.c.l.b16 %v565
    %v2478 = vunpack.c.h.b16 %v565
    %v2479 = vunpack.c.l.b16 %v566
    %v2480 = vunpack.c.h.b16 %v566
    %v2481 = vunpack.c.l.b16 %v567
    %v2482 = vunpack.c.h.b16 %v567
    %v2483 = vunpack.c.l.b16 %v568
    %v2484 = vunpack.c.h.b16 %v568
    %v2485 = vunpack.c.l.b16 %v569
    %v2486 = vunpack.c.h.b16 %v569
    %v2487 = vunpack.c.l.b16 %v570
    %v2488 = vunpack.c.h.b16 %v570
    %v2489 = vunpack.c.l.b16 %v571
    %v2490 = vunpack.c.h.b16 %v571
    %v2491 = vunpack.c.l.b16 %v572
    %v2492 = vunpack.c.h.b16 %v572
    %v2493 = vunpack.c.l.b16 %v573
    %v2494 = vunpack.c.h.b16 %v573
    %v2495 = vunpack.c.l.b16 %v574
    %v2496 = vunpack.c.h.b16 %v574
    %v2497 = vunpack.c.l.b16 %v575
    %v2498 = vunpack.c.h.b16 %v575
    %v2499 = vunpack.c.l.b16 %v576
    %v2500 = vunpack.c.h.b16 %v576
    %v2501 = vunpack.c.l.b16 %v577
    %v2502 = vunpack.c.h.b16 %v577
    %v2503 = vunpack.c.l.b16 %v578
    %v2504 = vunpack.c.h.b16 %v578
    %v2505 = vunpack.c.l.b16 %v579
    %v2506 = vunpack.c.h.b16 %v579
    %v2507 = vunpack.c.l.b16 %v580
    %v2508 = vunpack.c.h.b16 %v580
    %v2509 = vunpack.c.l.b16 %v581
    %v2510 = vunpack.c.h.b16 %v581
    %v2511 = vunpack.c.l.b16 %v582
    %v2512 = vunpack.c.h.b16 %v582
    %v2513 = vunpack.c.l.b16 %v583
    %v2514 = vunpack.c.h.b16 %v583
    %v2515 = vunpack.c.l.b16 %v584
    %v2516 = vunpack.c.h.b16 %v584
    %v2517 = vunpack.c.l.b16 %v585
    %v2518 = vunpack.c.h.b16 %v585
    %v2519 = vunpack.c.l.b16 %v586
    %v2520 = vunpack.c.h.b16 %v586
    %v2521 = vunpack.c.l.b16 %v587
    %v2522 = vunpack.c.h.b16 %v587
    %v2523 = vunpack.c.l.b16 %v588
    %v2524 = vunpack.c.h.b16 %v588
    %v2525 = vunpack.c.l.b16 %v589
    %v2526 = vunpack.c.h.b16 %v589
    %v2527 = vunpack.c.l.b16 %v590
    %v2528 = vunpack.c.h.b16 %v590
    %v2529 = vunpack.c.l.b16 %v591
    %v2530 = vunpack.c.h.b16 %v591
    %v2531 = vunpack.c.l.b16 %v592
    %v2532 = vunpack.c.h.b16 %v592
    %v2533 = vunpack.c.l.b16 %v593
    %v2534 = vunpack.c.h.b16 %v593
    %v2535 = vunpack.c.l.b16 %v594
    %v2536 = vunpack.c.h.b16 %v594
    %v2537 = vunpack.c.l.b16 %v595
    %v2538 = vunpack.c.h.b16 %v595
    %v2539 = vunpack.c.l.b16 %v596
    %v2540 = vunpack.c.h.b16 %v596
    %v2541 = vunpack.c.l.b16 %v597
    %v2542 = vunpack.c.h.b16 %v597
    %v2543 = vunpack.c.l.b16 %v598
    %v2544 = vunpack.c.h.b16 %v598
    %v2545 = vunpack.c.l.b16 %v599
    %v2546 = vunpack.c.h.b16 %v599
    %v2547 = vunpack.c.l.b16 %v600
    %v2548 = vunpack.c.h.b16 %v600
    %v2549 = vunpack.c.l.b16 %v601
    %v2550 = vunpack.c.h.b16 %v601
    %v2551 = vunpack.c.l.b16 %v602
    %v2552 = vunpack.c.h.b16 %v602
    %v2553 = vunpack.c.l.b16 %v603
    %v2554 = vunpack.c.h.b16 %v603
    %v2555 = vunpack.c.l.b16 %v604
    %v2556 = vunpack.c.h.b16 %v604
    %v2557 = vunpack.c.l.b16 %v605
    %v2558 = vunpack.c.h.b16 %v605
    %v2559 = vunpack.c.l.b16 %v606
    %v2560 = vunpack.c.h.b16 %v606
    %v2561 = vunpack.c.l.b16 %v607
    %v2562 = vunpack.c.h.b16 %v607
    %v2563 = vunpack.c.l.b16 %v608
    %v2564 = vunpack.c.h.b16 %v608
    %v2565 = vunpack.c.l.b16 %v609
    %v2566 = vunpack.c.h.b16 %v609
    %v2567 = vunpack.c.l.b16 %v610
    %v2568 = vunpack.c.h.b16 %v610
    %v2569 = vunpack.c.l.b16 %v611
    %v2570 = vunpack.c.h.b16 %v611
    %v2571 = vunpack.c.l.b16 %v612
    %v2572 = vunpack.c.h.b16 %v612
    %v2573 = vunpack.c.l.b16 %v613
    %v2574 = vunpack.c.h.b16 %v613
    %v2575 = vunpack.c.l.b16 %v614
    %v2576 = vunpack.c.h.b16 %v614
    %v2577 = vunpack.c.l.b16 %v615
    %v2578 = vunpack.c.h.b16 %v615
    %v2579 = vunpack.c.l.b16 %v616
    %v2580 = vunpack.c.h.b16 %v616
    %v2581 = vunpack.c.l.b16 %v617
    %v2582 = vunpack.c.h.b16 %v617
    %v2583 = vunpack.c.l.b16 %v618
    %v2584 = vunpack.c.h.b16 %v618
    %v2585 = vunpack.c.l.b16 %v619
    %v2586 = vunpack.c.h.b16 %v619
    %v2587 = vunpack.c.l.b16 %v620
    %v2588 = vunpack.c.h.b16 %v620
    %v2589 = vunpack.c.l.b16 %v621
    %v2590 = vunpack.c.h.b16 %v621
    %v2591 = vunpack.c.l.b16 %v622
    %v2592 = vunpack.c.h.b16 %v622
    %v2593 = vunpack.c.l.b16 %v623
    %v2594 = vunpack.c.h.b16 %v623
    %v2595 = vunpack.c.l.b16 %v624
    %v2596 = vunpack.c.h.b16 %v624
    %v2597 = vunpack.c.l.b16 %v625
    %v2598 = vunpack.c.h.b16 %v625
    %v2599 = vunpack.c.l.b16 %v626
    %v2600 = vunpack.c.h.b16 %v626
    %v2601 = vunpack.c.l.b16 %v627
    %v2602 = vunpack.c.h.b16 %v627
    %v2603 = vunpack.c.l.b16 %v628
    %v2604 = vunpack.c.h.b16 %v628
    %v2605 = vunpack.c.l.b16 %v629
    %v2606 = vunpack.c.h.b16 %v629
    %v2607 = vunpack.c.l.b16 %v630
    %v2608 = vunpack.c.h.b16 %v630
    %v2609 = vunpack.c.l.b16 %v631
    %v2610 = vunpack.c.h.b16 %v631
    %v2611 = vunpack.c.l.b16 %v632
    %v2612 = vunpack.c.h.b16 %v632
    %v2613 = vunpack.c.l.b16 %v633
    %v2614 = vunpack.c.h.b16 %v633
    %v2615 = vunpack.c.l.b16 %v634
    %v2616 = vunpack.c.h.b16 %v634
    %v2617 = vunpack.c.l.b16 %v635
    %v2618 = vunpack.c.h.b16 %v635
    %v2619 = vunpack.c.l.b16 %v636
    %v2620 = vunpack.c.h.b16 %v636
    %v2621 = vunpack.c.l.b16 %v637
    %v2622 = vunpack.c.h.b16 %v637
    %v2623 = vunpack.c.l.b16 %v638
    %v2624 = vunpack.c.h.b16 %v638
    %v2625 = vunpack.c.l.b16 %v639
    %v2626 = vunpack.c.h.b16 %v639
    %v2627 = vunpack.c.l.b16 %v640
    %v2628 = vunpack.c.h.b16 %v640
    %v2629 = vunpack.c.l.b16 %v641
    %v2630 = vunpack.c.h.b16 %v641
    %v2631 = vunpack.c.l.b16 %v642
    %v2632 = vunpack.c.h.b16 %v642
    %v2633 = vunpack.c.l.b16 %v643
    %v2634 = vunpack.c.h.b16 %v643
    %v2635 = vunpack.c.l.b16 %v644
    %v2636 = vunpack.c.h.b16 %v644
    %v2637 = vunpack.c.l.b16 %v645
    %v2638 = vunpack.c.h.b16 %v645
    %v2639 = vunpack.c.l.b16 %v646
    %v2640 = vunpack.c.h.b16 %v646
    %v2641 = vunpack.c.l.b16 %v647
    %v2642 = vunpack.c.h.b16 %v647
    %v2643 = vunpack.c.l.b16 %v648
    %v2644 = vunpack.c.h.b16 %v648
    %v2645 = vunpack.c.l.b16 %v649
    %v2646 = vunpack.c.h.b16 %v649
    %v2647 = vunpack.c.l.b16 %v650
    %v2648 = vunpack.c.h.b16 %v650
    %v2649 = vunpack.c.l.b16 %v651
    %v2650 = vunpack.c.h.b16 %v651
    %v2651 = vunpack.c.l.b16 %v652
    %v2652 = vunpack.c.h.b16 %v652
    %v2653 = vunpack.c.l.b16 %v653
    %v2654 = vunpack.c.h.b16 %v653
    %v2655 = vunpack.c.l.b16 %v654
    %v2656 = vunpack.c.h.b16 %v654
    %v2657 = vunpack.c.l.b16 %v655
    %v2658 = vunpack.c.h.b16 %v655
    %v2659 = vunpack.c.l.b16 %v656
    %v2660 = vunpack.c.h.b16 %v656
    %v2661 = vunpack.c.l.b16 %v657
    %v2662 = vunpack.c.h.b16 %v657
    %v2663 = vunpack.c.l.b16 %v658
    %v2664 = vunpack.c.h.b16 %v658
    %v2665 = vunpack.c.l.b16 %v659
    %v2666 = vunpack.c.h.b16 %v659
    %v2667 = vunpack.c.l.b16 %v660
    %v2668 = vunpack.c.h.b16 %v660
    %v2669 = vunpack.c.l.b16 %v661
    %v2670 = vunpack.c.h.b16 %v661
    %v2671 = vunpack.c.l.b16 %v662
    %v2672 = vunpack.c.h.b16 %v662
    %v2673 = vunpack.c.l.b16 %v663
    %v2674 = vunpack.c.h.b16 %v663
    %v2675 = vunpack.c.l.b16 %v664
    %v2676 = vunpack.c.h.b16 %v664
    %v2677 = vunpack.c.l.b16 %v665
    %v2678 = vunpack.c.h.b16 %v665
    %v2679 = vunpack.c.l.b16 %v666
    %v2680 = vunpack.c.h.b16 %v666
    %v2681 = vunpack.c.l.b16 %v667
    %v2682 = vunpack.c.h.b16 %v667
    %v2683 = vunpack.c.l.b16 %v668
    %v2684 = vunpack.c.h.b16 %v668
    %v2685 = vunpack.c.l.b16 %v669
    %v2686 = vunpack.c.h.b16 %v669
    %v2687 = vunpack.c.l.b16 %v670
    %v2688 = vunpack.c.h.b16 %v670
    %v2689 = vunpack.c.l.b16 %v671
    %v2690 = vunpack.c.h.b16 %v671
    %v2691 = vunpack.c.l.b16 %v672
    %v2692 = vunpack.c.h.b16 %v672
    %v2693 = vunpack.c.l.b16 %v673
    %v2694 = vunpack.c.h.b16 %v673
    %v2695 = vunpack.c.l.b16 %v674
    %v2696 = vunpack.c.h.b16 %v674
    %v2697 = vunpack.c.l.b16 %v675
    %v2698 = vunpack.c.h.b16 %v675
    %v2699 = vunpack.c.l.b16 %v676
    %v2700 = vunpack.c.h.b16 %v676
    %v2701 = vunpack.c.l.b16 %v677
    %v2702 = vunpack.c.h.b16 %v677
    %v2703 = vunpack.c.l.b16 %v678
    %v2704 = vunpack.c.h.b16 %v678
    %v2705 = vunpack.c.l.b16 %v679
    %v2706 = vunpack.c.h.b16 %v679
    %v2707 = vunpack.c.l.b16 %v680
    %v2708 = vunpack.c.h.b16 %v680
    %v2709 = vunpack.c.l.b16 %v681
    %v2710 = vunpack.c.h.b16 %v681
    %v2711 = vunpack.c.l.b16 %v682
    %v2712 = vunpack.c.h.b16 %v682
    %v2713 = vunpack.c.l.b16 %v683
    %v2714 = vunpack.c.h.b16 %v683
    %v2715 = vunpack.c.l.b16 %v684
    %v2716 = vunpack.c.h.b16 %v684
    %v2717 = vunpack.c.l.b16 %v685
    %v2718 = vunpack.c.h.b16 %v685
    %v2719 = vunpack.c.l.b16 %v686
    %v2720 = vunpack.c.h.b16 %v686
    %v2721 = vunpack.c.l.b16 %v687
    %v2722 = vunpack.c.h.b16 %v687
    %v2723 = vunpack.c.l.b16 %v688
    %v2724 = vunpack.c.h.b16 %v688
    %v2725 = vunpack.c.l.b16 %v689
    %v2726 = vunpack.c.h.b16 %v689
    %v2727 = vunpack.c.l.b16 %v690
    %v2728 = vunpack.c.h.b16 %v690
    %v2729 = vunpack.c.l.b16 %v691
    %v2730 = vunpack.c.h.b16 %v691
    %v2731 = vunpack.c.l.b16 %v692
    %v2732 = vunpack.c.h.b16 %v692
    %v2733 = vunpack.c.l.b16 %v693
    %v2734 = vunpack.c.h.b16 %v693
    %v2735 = vunpack.c.l.b16 %v694
    %v2736 = vunpack.c.h.b16 %v694
    %v2737 = vunpack.c.l.b16 %v695
    %v2738 = vunpack.c.h.b16 %v695
    %v2739 = vunpack.c.l.b16 %v696
    %v2740 = vunpack.c.h.b16 %v696
    %v2741 = vunpack.c.l.b16 %v697
    %v2742 = vunpack.c.h.b16 %v697
    %v2743 = vunpack.c.l.b16 %v698
    %v2744 = vunpack.c.h.b16 %v698
    %v2745 = vunpack.c.l.b16 %v699
    %v2746 = vunpack.c.h.b16 %v699
    %v2747 = vunpack.c.l.b16 %v700
    %v2748 = vunpack.c.h.b16 %v700
    %v2749 = vunpack.c.l.b16 %v701
    %v2750 = vunpack.c.h.b16 %v701
    %v2751 = vunpack.c.l.b16 %v702
    %v2752 = vunpack.c.h.b16 %v702
    %v2753 = vunpack.c.l.b16 %v703
    %v2754 = vunpack.c.h.b16 %v703
    %v2755 = vunpack.c.l.b16 %v704
    %v2756 = vunpack.c.h.b16 %v704
    %v2757 = vunpack.c.l.b16 %v705
    %v2758 = vunpack.c.h.b16 %v705
    %v2759 = vunpack.c.l.b16 %v706
    %v2760 = vunpack.c.h.b16 %v706
    %v2761 = vunpack.c.l.b16 %v707
    %v2762 = vunpack.c.h.b16 %v707
    %v2763 = vunpack.c.l.b16 %v708
    %v2764 = vunpack.c.h.b16 %v708
    %v2765 = vunpack.c.l.b16 %v709
    %v2766 = vunpack.c.h.b16 %v709
    %v2767 = vunpack.c.l.b16 %v710
    %v2768 = vunpack.c.h.b16 %v710
    %v2769 = vunpack.c.l.b16 %v711
    %v2770 = vunpack.c.h.b16 %v711
    %v2771 = vunpack.c.l.b16 %v712
    %v2772 = vunpack.c.h.b16 %v712
    %v2773 = vunpack.c.l.b16 %v713
    %v2774 = vunpack.c.h.b16 %v713
    %v2775 = vunpack.c.l.b16 %v714
    %v2776 = vunpack.c.h.b16 %v714
    %v2777 = vunpack.c.l.b16 %v715
    %v2778 = vunpack.c.h.b16 %v715
    %v2779 = vunpack.c.l.b16 %v716
    %v2780 = vunpack.c.h.b16 %v716
    %v2781 = vunpack.c.l.b16 %v717
    %v2782 = vunpack.c.h.b16 %v717
    %v2783 = vunpack.c.l.b16 %v718
    %v2784 = vunpack.c.h.b16 %v718
    %v2785 = vunpack.c.l.b16 %v719
    %v2786 = vunpack.c.h.b16 %v719
    %v2787 = vunpack.c.l.b16 %v720
    %v2788 = vunpack.c.h.b16 %v720
    %v2789 = vunpack.c.l.b16 %v721
    %v2790 = vunpack.c.h.b16 %v721
    %v2791 = vunpack.c.l.b16 %v722
    %v2792 = vunpack.c.h.b16 %v722
    %v2793 = vunpack.c.l.b16 %v723
    %v2794 = vunpack.c.h.b16 %v723
    %v2795 = vunpack.c.l.b16 %v724
    %v2796 = vunpack.c.h.b16 %v724
    %v2797 = vunpack.c.l.b16 %v725
    %v2798 = vunpack.c.h.b16 %v725
    %v2799 = vunpack.c.l.b16 %v726
    %v2800 = vunpack.c.h.b16 %v726
    %v2801 = vunpack.c.l.b16 %v727
    %v2802 = vunpack.c.h.b16 %v727
    %v2803 = vunpack.c.l.b16 %v728
    %v2804 = vunpack.c.h.b16 %v728
    %v2805 = vunpack.c.l.b16 %v729
    %v2806 = vunpack.c.h.b16 %v729
    %v2807 = vunpack.c.l.b16 %v730
    %v2808 = vunpack.c.h.b16 %v730
    %v2809 = vunpack.c.l.b16 %v731
    %v2810 = vunpack.c.h.b16 %v731
    %v2811 = vunpack.c.l.b16 %v732
    %v2812 = vunpack.c.h.b16 %v732
    %v2813 = vunpack.c.l.b16 %v733
    %v2814 = vunpack.c.h.b16 %v733
    %v2815 = vunpack.c.l.b16 %v734
    %v2816 = vunpack.c.h.b16 %v734
    %v2817 = vunpack.c.l.b16 %v735
    %v2818 = vunpack.c.h.b16 %v735
    %v2819 = vunpack.c.l.b16 %v736
    %v2820 = vunpack.c.h.b16 %v736
    %v2821 = vunpack.c.l.b16 %v737
    %v2822 = vunpack.c.h.b16 %v737
    %v2823 = vunpack.c.l.b16 %v738
    %v2824 = vunpack.c.h.b16 %v738
    %v2825 = vunpack.c.l.b16 %v739
    %v2826 = vunpack.c.h.b16 %v739
    %v2827 = vunpack.c.l.b16 %v740
    %v2828 = vunpack.c.h.b16 %v740
    %v2829 = vunpack.c.l.b16 %v741
    %v2830 = vunpack.c.h.b16 %v741
    %v2831 = vunpack.c.l.b16 %v742
    %v2832 = vunpack.c.h.b16 %v742
    %v2833 = vunpack.c.l.b16 %v743
    %v2834 = vunpack.c.h.b16 %v743
    %v2835 = vunpack.c.l.b16 %v744
    %v2836 = vunpack.c.h.b16 %v744
    %v2837 = vunpack.c.l.b16 %v745
    %v2838 = vunpack.c.h.b16 %v745
    %v2839 = vunpack.c.l.b16 %v746
    %v2840 = vunpack.c.h.b16 %v746
    %v2841 = vunpack.c.l.b16 %v747
    %v2842 = vunpack.c.h.b16 %v747
    %v2843 = vunpack.c.l.b16 %v748
    %v2844 = vunpack.c.h.b16 %v748
    %v2845 = vunpack.c.l.b16 %v749
    %v2846 = vunpack.c.h.b16 %v749
    %v2847 = vunpack.c.l.b16 %v750
    %v2848 = vunpack.c.h.b16 %v750
    %v2849 = vunpack.c.l.b16 %v751
    %v2850 = vunpack.c.h.b16 %v751
    %v2851 = vunpack.c.l.b16 %v752
    %v2852 = vunpack.c.h.b16 %v752
    %v2853 = vunpack.c.l.b16 %v753
    %v2854 = vunpack.c.h.b16 %v753
    %v2855 = vunpack.c.l.b16 %v754
    %v2856 = vunpack.c.h.b16 %v754
    %v2857 = vunpack.c.l.b16 %v755
    %v2858 = vunpack.c.h.b16 %v755
    %v2859 = vunpack.c.l.b16 %v756
    %v2860 = vunpack.c.h.b16 %v756
    %v2861 = vunpack.c.l.b16 %v757
    %v2862 = vunpack.c.h.b16 %v757
    %v2863 = vunpack.c.l.b16 %v758
    %v2864 = vunpack.c.h.b16 %v758
    %v2865 = vunpack.c.l.b16 %v759
    %v2866 = vunpack.c.h.b16 %v759
    %v2867 = vunpack.c.l.b16 %v760
    %v2868 = vunpack.c.h.b16 %v760
    %v2869 = vunpack.c.l.b16 %v761
    %v2870 = vunpack.c.h.b16 %v761
    %v2871 = vunpack.c.l.b16 %v762
    %v2872 = vunpack.c.h.b16 %v762
    %v2873 = vunpack.c.l.b16 %v763
    %v2874 = vunpack.c.h.b16 %v763
    %v2875 = vunpack.c.l.b16 %v764
    %v2876 = vunpack.c.h.b16 %v764
    %v2877 = vunpack.c.l.b16 %v765
    %v2878 = vunpack.c.h.b16 %v765
    %v2879 = vunpack.c.l.b16 %v766
    %v2880 = vunpack.c.h.b16 %v766
    %v2881 = vunpack.c.l.b16 %v767
    %v2882 = vunpack.c.h.b16 %v767
    %v2883 = vunpack.c.l.b16 %v768
    %v2884 = vunpack.c.h.b16 %v768
    %v2885 = vunpack.c.l.b16 %v769
    %v2886 = vunpack.c.h.b16 %v769
    %v2887 = vunpack.c.l.b16 %v770
    %v2888 = vunpack.c.h.b16 %v770
    %v2889 = vunpack.c.l.b16 %v771
    %v2890 = vunpack.c.h.b16 %v771
    %v2891 = vunpack.c.l.b16 %v772
    %v2892 = vunpack.c.h.b16 %v772
    %v2893 = vunpack.c.l.b16 %v773
    %v2894 = vunpack.c.h.b16 %v773
    %v2895 = vunpack.c.l.b16 %v774
    %v2896 = vunpack.c.h.b16 %v774
    %v2897 = vunpack.c.l.b16 %v775
    %v2898 = vunpack.c.h.b16 %v775
    %v2899 = vunpack.c.l.b16 %v776
    %v2900 = vunpack.c.h.b16 %v776
    %v2901 = vunpack.c.l.b16 %v777
    %v2902 = vunpack.c.h.b16 %v777
    %v2903 = vunpack.c.l.b16 %v778
    %v2904 = vunpack.c.h.b16 %v778
    %v2905 = vunpack.c.l.b16 %v779
    %v2906 = vunpack.c.h.b16 %v779
    %v2907 = vunpack.c.l.b16 %v780
    %v2908 = vunpack.c.h.b16 %v780
    %v2909 = vunpack.c.l.b16 %v781
    %v2910 = vunpack.c.h.b16 %v781
    %v2911 = vunpack.c.l.b16 %v782
    %v2912 = vunpack.c.h.b16 %v782
    %v2913 = vunpack.c.l.b16 %v783
    %v2914 = vunpack.c.h.b16 %v783
    %v2915 = vunpack.c.l.b16 %v784
    %v2916 = vunpack.c.h.b16 %v784
    %v2917 = vunpack.c.l.b16 %v785
    %v2918 = vunpack.c.h.b16 %v785
    %v2919 = vunpack.c.l.b16 %v786
    %v2920 = vunpack.c.h.b16 %v786
    %v2921 = vunpack.c.l.b16 %v787
    %v2922 = vunpack.c.h.b16 %v787
    %v2923 = vunpack.c.l.b16 %v788
    %v2924 = vunpack.c.h.b16 %v788
    %v2925 = vunpack.c.l.b16 %v789
    %v2926 = vunpack.c.h.b16 %v789
    %v2927 = vunpack.c.l.b16 %v790
    %v2928 = vunpack.c.h.b16 %v790
    %v2929 = vunpack.c.l.b16 %v791
    %v2930 = vunpack.c.h.b16 %v791
    %v2931 = vunpack.c.l.b16 %v792
    %v2932 = vunpack.c.h.b16 %v792
    %v2933 = vunpack.c.l.b16 %v793
    %v2934 = vunpack.c.h.b16 %v793
    %v2935 = vunpack.c.l.b16 %v794
    %v2936 = vunpack.c.h.b16 %v794
    %v2937 = vunpack.c.l.b16 %v795
    %v2938 = vunpack.c.h.b16 %v795
    %v2939 = vunpack.c.l.b16 %v796
    %v2940 = vunpack.c.h.b16 %v796
    %v2941 = vunpack.c.l.b16 %v797
    %v2942 = vunpack.c.h.b16 %v797
    %v2943 = vunpack.c.l.b16 %v798
    %v2944 = vunpack.c.h.b16 %v798
    %v2945 = vunpack.c.l.b16 %v799
    %v2946 = vunpack.c.h.b16 %v799
    %v2947 = vunpack.c.l.b16 %v800
    %v2948 = vunpack.c.h.b16 %v800
    %v2949 = vunpack.c.l.b16 %v801
    %v2950 = vunpack.c.h.b16 %v801
    %v2951 = vunpack.c.l.b16 %v802
    %v2952 = vunpack.c.h.b16 %v802
    %v2953 = vunpack.c.l.b16 %v803
    %v2954 = vunpack.c.h.b16 %v803
    %v2955 = vunpack.c.l.b16 %v804
    %v2956 = vunpack.c.h.b16 %v804
    %v2957 = vunpack.c.l.b16 %v805
    %v2958 = vunpack.c.h.b16 %v805
    %v2959 = vunpack.c.l.b16 %v806
    %v2960 = vunpack.c.h.b16 %v806
    %v2961 = vunpack.c.l.b16 %v807
    %v2962 = vunpack.c.h.b16 %v807
    %v2963 = vunpack.c.l.b16 %v808
    %v2964 = vunpack.c.h.b16 %v808
    %v2965 = vunpack.c.l.b16 %v809
    %v2966 = vunpack.c.h.b16 %v809
    %v2967 = vunpack.c.l.b16 %v810
    %v2968 = vunpack.c.h.b16 %v810
    %v2969 = vunpack.c.l.b16 %v811
    %v2970 = vunpack.c.h.b16 %v811
    %v2971 = vunpack.c.l.b16 %v812
    %v2972 = vunpack.c.h.b16 %v812
    %v2973 = vunpack.c.l.b16 %v813
    %v2974 = vunpack.c.h.b16 %v813
    %v2975 = vunpack.c.l.b16 %v814
    %v2976 = vunpack.c.h.b16 %v814
    %v2977 = vunpack.c.l.b16 %v815
    %v2978 = vunpack.c.h.b16 %v815
    %v2979 = vunpack.c.l.b16 %v816
    %v2980 = vunpack.c.h.b16 %v816
    %v2981 = vunpack.c.l.b16 %v817
    %v2982 = vunpack.c.h.b16 %v817
    %v2983 = vunpack.c.l.b16 %v818
    %v2984 = vunpack.c.h.b16 %v818
    %v2985 = vunpack.c.l.b16 %v819
    %v2986 = vunpack.c.h.b16 %v819
    %v2987 = vunpack.c.l.b16 %v820
    %v2988 = vunpack.c.h.b16 %v820
    %v2989 = vunpack.c.l.b16 %v821
    %v2990 = vunpack.c.h.b16 %v821
    %v2991 = vunpack.c.l.b16 %v822
    %v2992 = vunpack.c.h.b16 %v822
    %v2993 = vunpack.c.l.b16 %v823
    %v2994 = vunpack.c.h.b16 %v823
    %v2995 = vunpack.c.l.b16 %v824
    %v2996 = vunpack.c.h.b16 %v824
    %v2997 = vunpack.c.l.b16 %v825
    %v2998 = vunpack.c.h.b16 %v825
    %v2999 = vunpack.c.l.b16 %v826
    %v3000 = vunpack.c.h.b16 %v826
    %v3001 = vunpack.c.l.b16 %v827
    %v3002 = vunpack.c.h.b16 %v827
    %v3003 = vunpack.c.l.b16 %v828
    %v3004 = vunpack.c.h.b16 %v828
    %v3005 = vunpack.c.l.b16 %v829
    %v3006 = vunpack.c.h.b16 %v829
    %v3007 = vunpack.c.l.b16 %v830
    %v3008 = vunpack.c.h.b16 %v830
    %v3009 = vunpack.c.l.b16 %v831
    %v3010 = vunpack.c.h.b16 %v831
    %v3011 = vunpack.c.l.b16 %v832
    %v3012 = vunpack.c.h.b16 %v832
    %v3013 = vunpack.c.l.b16 %v833
    %v3014 = vunpack.c.h.b16 %v833
    %v3015 = vunpack.c.l.b16 %v834
    %v3016 = vunpack.c.h.b16 %v834
    %v3017 = vunpack.c.l.b16 %v835
    %v3018 = vunpack.c.h.b16 %v835
    %v3019 = vunpack.c.l.b16 %v836
    %v3020 = vunpack.c.h.b16 %v836
    %v3021 = vunpack.c.l.b16 %v837
    %v3022 = vunpack.c.h.b16 %v837
    %v3023 = vunpack.c.l.b16 %v838
    %v3024 = vunpack.c.h.b16 %v838
    %v3025 = vunpack.c.l.b16 %v839
    %v3026 = vunpack.c.h.b16 %v839
    %v3027 = vunpack.c.l.b16 %v840
    %v3028 = vunpack.c.h.b16 %v840
    %v3029 = vunpack.c.l.b16 %v841
    %v3030 = vunpack.c.h.b16 %v841
    %v3031 = vunpack.c.l.b16 %v842
    %v3032 = vunpack.c.h.b16 %v842
    %v3033 = vunpack.c.l.b16 %v843
    %v3034 = vunpack.c.h.b16 %v843
    %v3035 = vunpack.c.l.b16 %v844
    %v3036 = vunpack.c.h.b16 %v844
    %v3037 = vunpack.c.l.b16 %v845
    %v3038 = vunpack.c.h.b16 %v845
    %v3039 = vunpack.c.l.b16 %v846
    %v3040 = vunpack.c.h.b16 %v846
    %v3041 = vunpack.c.l.b16 %v847
    %v3042 = vunpack.c.h.b16 %v847
    %v3043 = vunpack.c.l.b16 %v848
    %v3044 = vunpack.c.h.b16 %v848
    %v3045 = vunpack.c.l.b16 %v849
    %v3046 = vunpack.c.h.b16 %v849
    %v3047 = vunpack.c.l.b16 %v850
    %v3048 = vunpack.c.h.b16 %v850
    %v3049 = vunpack.c.l.b16 %v851
    %v3050 = vunpack.c.h.b16 %v851
    %v3051 = vunpack.c.l.b16 %v852
    %v3052 = vunpack.c.h.b16 %v852
    %v3053 = vunpack.c.l.b16 %v853
    %v3054 = vunpack.c.h.b16 %v853
    %v3055 = vunpack.c.l.b16 %v854
    %v3056 = vunpack.c.h.b16 %v854
    %v3057 = vunpack.c.l.b16 %v855
    %v3058 = vunpack.c.h.b16 %v855
    %v3059 = vunpack.c.l.b16 %v856
    %v3060 = vunpack.c.h.b16 %v856
    %v3061 = vunpack.c.l.b16 %v857
    %v3062 = vunpack.c.h.b16 %v857
    %v3063 = vunpack.c.l.b16 %v858
    %v3064 = vunpack.c.h.b16 %v858
    %v3065 = vunpack.c.l.b16 %v859
    %v3066 = vunpack.c.h.b16 %v859
    %v3067 = vunpack.c.l.b16 %v860
    %v3068 = vunpack.c.h.b16 %v860
    %v3069 = vunpack.c.l.b16 %v861
    %v3070 = vunpack.c.h.b16 %v861
    %v3071 = vunpack.c.l.b16 %v862
    %v3072 = vunpack.c.h.b16 %v862
    %v3073 = vunpack.c.l.b16 %v863
    %v3074 = vunpack.c.h.b16 %v863
    %v3075 = vunpack.c.l.b16 %v864
    %v3076 = vunpack.c.h.b16 %v864
    %v3077 = vunpack.c.l.b16 %v865
    %v3078 = vunpack.c.h.b16 %v865
    %v3079 = vunpack.c.l.b16 %v866
    %v3080 = vunpack.c.h.b16 %v866
    %v3081 = vunpack.c.l.b16 %v867
    %v3082 = vunpack.c.h.b16 %v867
    %v3083 = vunpack.c.l.b16 %v868
    %v3084 = vunpack.c.h.b16 %v868
    %v3085 = vunpack.c.l.b16 %v869
    %v3086 = vunpack.c.h.b16 %v869
    %v3087 = vunpack.c.l.b16 %v870
    %v3088 = vunpack.c.h.b16 %v870
    %v3089 = vunpack.c.l.b16 %v871
    %v3090 = vunpack.c.h.b16 %v871
    %v3091 = vunpack.c.l.b16 %v872
    %v3092 = vunpack.c.h.b16 %v872
    %v3093 = vunpack.c.l.b16 %v873
    %v3094 = vunpack.c.h.b16 %v873
    %v3095 = vunpack.c.l.b16 %v874
    %v3096 = vunpack.c.h.b16 %v874
    %v3097 = vunpack.c.l.b16 %v875
    %v3098 = vunpack.c.h.b16 %v875
    %v3099 = vunpack.c.l.b16 %v876
    %v3100 = vunpack.c.h.b16 %v876
    %v3101 = vunpack.c.l.b16 %v877
    %v3102 = vunpack.c.h.b16 %v877
    %v3103 = vunpack.c.l.b16 %v878
    %v3104 = vunpack.c.h.b16 %v878
    %v3105 = vunpack.c.l.b16 %v879
    %v3106 = vunpack.c.h.b16 %v879
    %v3107 = vunpack.c.l.b16 %v880
    %v3108 = vunpack.c.h.b16 %v880
    %v3109 = vunpack.c.l.b16 %v881
    %v3110 = vunpack.c.h.b16 %v881
    %v3111 = vunpack.c.l.b16 %v882
    %v3112 = vunpack.c.h.b16 %v882
    %v3113 = vunpack.c.l.b16 %v883
    %v3114 = vunpack.c.h.b16 %v883
    %v3115 = vunpack.c.l.b16 %v884
    %v3116 = vunpack.c.h.b16 %v884
    %v3117 = vunpack.c.l.b16 %v885
    %v3118 = vunpack.c.h.b16 %v885
    %v3119 = vunpack.c.l.b16 %v886
    %v3120 = vunpack.c.h.b16 %v886
    %v3121 = vunpack.c.l.b16 %v887
    %v3122 = vunpack.c.h.b16 %v887
    %v3123 = vunpack.c.l.b16 %v888
    %v3124 = vunpack.c.h.b16 %v888
    %v3125 = vunpack.c.l.b16 %v889
    %v3126 = vunpack.c.h.b16 %v889
    %v3127 = vunpack.c.l.b16 %v890
    %v3128 = vunpack.c.h.b16 %v890
    %v3129 = vunpack.c.l.b16 %v891
    %v3130 = vunpack.c.h.b16 %v891
    %v3131 = vunpack.c.l.b16 %v892
    %v3132 = vunpack.c.h.b16 %v892
    %v3133 = vunpack.c.l.b16 %v893
    %v3134 = vunpack.c.h.b16 %v893
    %v3135 = vunpack.c.l.b16 %v894
    %v3136 = vunpack.c.h.b16 %v894
    %v3137 = vunpack.c.l.b16 %v895
    %v3138 = vunpack.c.h.b16 %v895
    %v3139 = vunpack.c.l.b16 %v896
    %v3140 = vunpack.c.h.b16 %v896
    %v3141 = vunpack.c.l.b16 %v897
    %v3142 = vunpack.c.h.b16 %v897
    %v3143 = vunpack.c.l.b16 %v898
    %v3144 = vunpack.c.h.b16 %v898
    %v3145 = vunpack.c.l.b16 %v899
    %v3146 = vunpack.c.h.b16 %v899
    %v3147 = vunpack.c.l.b16 %v900
    %v3148 = vunpack.c.h.b16 %v900
    %v3149 = vunpack.c.l.b16 %v901
    %v3150 = vunpack.c.h.b16 %v901
    %v3151 = vunpack.c.l.b16 %v902
    %v3152 = vunpack.c.h.b16 %v902
    %v3153 = vunpack.c.l.b16 %v903
    %v3154 = vunpack.c.h.b16 %v903
    %v3155 = vunpack.c.l.b16 %v904
    %v3156 = vunpack.c.h.b16 %v904
    %v3157 = vunpack.c.l.b16 %v905
    %v3158 = vunpack.c.h.b16 %v905
    %v3159 = vunpack.c.l.b16 %v906
    %v3160 = vunpack.c.h.b16 %v906
    %v3161 = vunpack.c.l.b16 %v907
    %v3162 = vunpack.c.h.b16 %v907
    %v3163 = vunpack.c.l.b16 %v908
    %v3164 = vunpack.c.h.b16 %v908
    %v3165 = vunpack.c.l.b16 %v909
    %v3166 = vunpack.c.h.b16 %v909
    %v3167 = vunpack.c.l.b16 %v910
    %v3168 = vunpack.c.h.b16 %v910
    %v3169 = vunpack.c.l.b16 %v911
    %v3170 = vunpack.c.h.b16 %v911
    %v3171 = vunpack.c.l.b16 %v912
    %v3172 = vunpack.c.h.b16 %v912
    %v3173 = vunpack.c.l.b16 %v913
    %v3174 = vunpack.c.h.b16 %v913
    %v3175 = vunpack.c.l.b16 %v914
    %v3176 = vunpack.c.h.b16 %v914
    %v3177 = vunpack.c.l.b16 %v915
    %v3178 = vunpack.c.h.b16 %v915
    %v3179 = vunpack.c.l.b16 %v916
    %v3180 = vunpack.c.h.b16 %v916
    %v3181 = vunpack.c.l.b16 %v917
    %v3182 = vunpack.c.h.b16 %v917
    %v3183 = vunpack.c.l.b16 %v918
    %v3184 = vunpack.c.h.b16 %v918
    %v3185 = vunpack.c.l.b16 %v919
    %v3186 = vunpack.c.h.b16 %v919
    %v3187 = vunpack.c.l.b16 %v920
    %v3188 = vunpack.c.h.b16 %v920
    %v3189 = vunpack.c.l.b16 %v921
    %v3190 = vunpack.c.h.b16 %v921
    %v3191 = vunpack.c.l.b16 %v922
    %v3192 = vunpack.c.h.b16 %v922
    %v3193 = vunpack.c.l.b16 %v923
    %v3194 = vunpack.c.h.b16 %v923
    %v3195 = vunpack.c.l.b16 %v924
    %v3196 = vunpack.c.h.b16 %v924
    %v3197 = vunpack.c.l.b16 %v925
    %v3198 = vunpack.c.h.b16 %v925
    %v3199 = vunpack.c.l.b16 %v926
    %v3200 = vunpack.c.h.b16 %v926
    %v3201 = vunpack.c.l.b16 %v927
    %v3202 = vunpack.c.h.b16 %v927
    %v3203 = vunpack.c.l.b16 %v928
    %v3204 = vunpack.c.h.b16 %v928
    %v3205 = vunpack.c.l.b16 %v929
    %v3206 = vunpack.c.h.b16 %v929
    %v3207 = vunpack.c.l.b16 %v930
    %v3208 = vunpack.c.h.b16 %v930
    %v3209 = vunpack.c.l.b16 %v931
    %v3210 = vunpack.c.h.b16 %v931
    %v3211 = vunpack.c.l.b16 %v932
    %v3212 = vunpack.c.h.b16 %v932
    %v3213 = vunpack.c.l.b16 %v933
    %v3214 = vunpack.c.h.b16 %v933
    %v3215 = vunpack.c.l.b16 %v934
    %v3216 = vunpack.c.h.b16 %v934
    %v3217 = vunpack.c.l.b16 %v935
    %v3218 = vunpack.c.h.b16 %v935
    %v3219 = vunpack.c.l.b16 %v936
    %v3220 = vunpack.c.h.b16 %v936
    %v3221 = vunpack.c.l.b16 %v937
    %v3222 = vunpack.c.h.b16 %v937
    %v3223 = vunpack.c.l.b16 %v938
    %v3224 = vunpack.c.h.b16 %v938
    %v3225 = vunpack.c.l.b16 %v939
    %v3226 = vunpack.c.h.b16 %v939
    %v3227 = vunpack.c.l.b16 %v940
    %v3228 = vunpack.c.h.b16 %v940
    %v3229 = vunpack.c.l.b16 %v941
    %v3230 = vunpack.c.h.b16 %v941
    %v3231 = vunpack.c.l.b16 %v942
    %v3232 = vunpack.c.h.b16 %v942
    %v3233 = vunpack.c.l.b16 %v943
    %v3234 = vunpack.c.h.b16 %v943
    %v3235 = vunpack.c.l.b16 %v944
    %v3236 = vunpack.c.h.b16 %v944
    %v3237 = vunpack.c.l.b16 %v945
    %v3238 = vunpack.c.h.b16 %v945
    %v3239 = vunpack.c.l.b16 %v946
    %v3240 = vunpack.c.h.b16 %v946
    %v3241 = vunpack.c.l.b16 %v947
    %v3242 = vunpack.c.h.b16 %v947
    %v3243 = vunpack.c.l.b16 %v948
    %v3244 = vunpack.c.h.b16 %v948
    %v3245 = vunpack.c.l.b16 %v949
    %v3246 = vunpack.c.h.b16 %v949
    %v3247 = vunpack.c.l.b16 %v950
    %v3248 = vunpack.c.h.b16 %v950
    %v3249 = vunpack.c.l.b16 %v951
    %v3250 = vunpack.c.h.b16 %v951
    %v3251 = vunpack.c.l.b16 %v952
    %v3252 = vunpack.c.h.b16 %v952
    %v3253 = vunpack.c.l.b16 %v953
    %v3254 = vunpack.c.h.b16 %v953
    %v3255 = vunpack.c.l.b16 %v954
    %v3256 = vunpack.c.h.b16 %v954
    %v3257 = vunpack.c.l.b16 %v955
    %v3258 = vunpack.c.h.b16 %v955
    %v3259 = vunpack.c.l.b16 %v956
    %v3260 = vunpack.c.h.b16 %v956
    %v3261 = vpack.c.b16 %v1737, %v1725
    %v3262 = vpack.c.b16 %v1738, %v1726
    %v3263 = vpack.c.b16 %v1739, %v1727
    %v3264 = vpack.c.b16 %v1740, %v1728
    %v3265 = vpack.c.b16 %v1741, %v1729
    %v3266 = vpack.c.b16 %v1742, %v1730
    %v3267 = vpack.c.b16 %v1743, %v1731
    %v3268 = vpack.c.b16 %v1744, %v1732
    %v3269 = vpack.c.b16 %v1745, %v1733
    %v3270 = vpack.c.b16 %v1746, %v1734
    %v3271 = vpack.c.b16 %v1747, %v1735
    %v3272 = vpack.c.b16 %v1748, %v1736
    %v3273 = vpack.c.b16 %v1761, %v1749
    %v3274 = vpack.c.b16 %v1762, %v1750
    %v3275 = vpack.c.b16 %v1763, %v1751
    %v3276 = vpack.c.b16 %v1764, %v1752
    %v3277 = vpack.c.b16 %v1765, %v1753
    %v3278 = vpack.c.b16 %v1766, %v1754
    %v3279 = vpack.c.b16 %v1767, %v1755
    %v3280 = vpack.c.b16 %v1768, %v1756
    %v3281 = vpack.c.b16 %v1769, %v1757
    %v3282 = vpack.c.b16 %v1770, %v1758
    %v3283 = vpack.c.b16 %v1771, %v1759
    %v3284 = vpack.c.b16 %v1772, %v1760
    %v3285 = vpack.c.b16 %v1785, %v1773
    %v3286 = vpack.c.b16 %v1786, %v1774
    %v3287 = vpack.c.b16 %v1787, %v1775
    %v3288 = vpack.c.b16 %v1788, %v1776
    %v3289 = vpack.c.b16 %v1789, %v1777
    %v3290 = vpack.c.b16 %v1790, %v1778
    %v3291 = vpack.c.b16 %v1791, %v1779
    %v3292 = vpack.c.b16 %v1792, %v1780
    %v3293 = vpack.c.b16 %v1793, %v1781
    %v3294 = vpack.c.b16 %v1794, %v1782
    %v3295 = vpack.c.b16 %v1795, %v1783
    %v3296 = vpack.c.b16 %v1796, %v1784
    %v3297 = vpack.c.b16 %v1809, %v1797
    %v3298 = vpack.c.b16 %v1810, %v1798
    %v3299 = vpack.c.b16 %v1811, %v1799
    %v3300 = vpack.c.b16 %v1812, %v1800
    %v3301 = vpack.c.b16 %v1813, %v1801
    %v3302 = vpack.c.b16 %v1814, %v1802
    %v3303 = vpack.c.b16 %v1815, %v1803
    %v3304 = vpack.c.b16 %v1816, %v1804
    %v3305 = vpack.c.b16 %v1817, %v1805
    %v3306 = vpack.c.b16 %v1818, %v1806
    %v3307 = vpack.c.b16 %v1819, %v1807
    %v3308 = vpack.c.b16 %v1820, %v1808
    %v3309 = vpack.c.b16 %v1833, %v1821
    %v3310 = vpack.c.b16 %v1834, %v1822
    %v3311 = vpack.c.b16 %v1835, %v1823
    %v3312 = vpack.c.b16 %v1836, %v1824
    %v3313 = vpack.c.b16 %v1837, %v1825
    %v3314 = vpack.c.b16 %v1838, %v1826
    %v3315 = vpack.c.b16 %v1839, %v1827
    %v3316 = vpack.c.b16 %v1840, %v1828
    %v3317 = vpack.c.b16 %v1841, %v1829
    %v3318 = vpack.c.b16 %v1842, %v1830
    %v3319 = vpack.c.b16 %v1843, %v1831
    %v3320 = vpack.c.b16 %v1844, %v1832
    %v3321 = vpack.c.b16 %v1857, %v1845
    %v3322 = vpack.c.b16 %v1858, %v1846
    %v3323 = vpack.c.b16 %v1859, %v1847
    %v3324 = vpack.c.b16 %v1860, %v1848
    %v3325 = vpack.c.b16 %v1861, %v1849
    %v3326 = vpack.c.b16 %v1862, %v1850
    %v3327 = vpack.c.b16 %v1863, %v1851
    %v3328 = vpack.c.b16 %v1864, %v1852
    %v3329 = vpack.c.b16 %v1865, %v1853
    %v3330 = vpack.c.b16 %v1866, %v1854
    %v3331 = vpack.c.b16 %v1867, %v1855
    %v3332 = vpack.c.b16 %v1868, %v1856
    %v3333 = vpack.c.b16 %v1881, %v1869
    %v3334 = vpack.c.b16 %v1882, %v1870
    %v3335 = vpack.c.b16 %v1883, %v1871
    %v3336 = vpack.c.b16 %v1884, %v1872
    %v3337 = vpack.c.b16 %v1885, %v1873
    %v3338 = vpack.c.b16 %v1886, %v1874
    %v3339 = vpack.c.b16 %v1887, %v1875
    %v3340 = vpack.c.b16 %v1888, %v1876
    %v3341 = vpack.c.b16 %v1889, %v1877
    %v3342 = vpack.c.b16 %v1890, %v1878
    %v3343 = vpack.c.b16 %v1891, %v1879
    %v3344 = vpack.c.b16 %v1892, %v1880
    %v3345 = vpack.c.b16 %v1905, %v1893
    %v3346 = vpack.c.b16 %v1906, %v1894
    %v3347 = vpack.c.b16 %v1907, %v1895
    %v3348 = vpack.c.b16 %v1908, %v1896
    %v3349 = vpack.c.b16 %v1909, %v1897
    %v3350 = vpack.c.b16 %v1910, %v1898
    %v3351 = vpack.c.b16 %v1911, %v1899
    %v3352 = vpack.c.b16 %v1912, %v1900
    %v3353 = vpack.c.b16 %v1913, %v1901
    %v3354 = vpack.c.b16 %v1914, %v1902
    %v3355 = vpack.c.b16 %v1915, %v1903
    %v3356 = vpack.c.b16 %v1916, %v1904
    %v3357 = vpack.c.b16 %v1929, %v1917
    %v3358 = vpack.c.b16 %v1930, %v1918
    %v3359 = vpack.c.b16 %v1931, %v1919
    %v3360 = vpack.c.b16 %v1932, %v1920
    %v3361 = vpack.c.b16 %v1933, %v1921
    %v3362 = vpack.c.b16 %v1934, %v1922
    %v3363 = vpack.c.b16 %v1935, %v1923
    %v3364 = vpack.c.b16 %v1936, %v1924
    %v3365 = vpack.c.b16 %v1937, %v1925
    %v3366 = vpack.c.b16 %v1938, %v1926
    %v3367 = vpack.c.b16 %v1939, %v1927
    %v3368 = vpack.c.b16 %v1940, %v1928
    %v3369 = vpack.c.b16 %v1953, %v1941
    %v3370 = vpack.c.b16 %v1954, %v1942
    %v3371 = vpack.c.b16 %v1955, %v1943
    %v3372 = vpack.c.b16 %v1956, %v1944
    %v3373 = vpack.c.b16 %v1957, %v1945
    %v3374 = vpack.c.b16 %v1958, %v1946
    %v3375 = vpack.c.b16 %v1959, %v1947
    %v3376 = vpack.c.b16 %v1960, %v1948
    %v3377 = vpack.c.b16 %v1961, %v1949
    %v3378 = vpack.c.b16 %v1962, %v1950
    %v3379 = vpack.c.b16 %v1963, %v1951
    %v3380 = vpack.c.b16 %v1964, %v1952
    %v3381 = vpack.c.b16 %v1977, %v1965
    %v3382 = vpack.c.b16 %v1978, %v1966
    %v3383 = vpack.c.b16 %v1979, %v1967
    %v3384 = vpack.c.b16 %v1980, %v1968
    %v3385 = vpack.c.b16 %v1981, %v1969
    %v3386 = vpack.c.b16 %v1982, %v1970
    %v3387 = vpack.c.b16 %v1983, %v1971
    %v3388 = vpack.c.b16 %v1984, %v1972
    %v3389 = vpack.c.b16 %v1985, %v1973
    %v3390 = vpack.c.b16 %v1986, %v1974
    %v3391 = vpack.c.b16 %v1987, %v1975
    %v3392 = vpack.c.b16 %v1988, %v1976
    %v3393 = vpack.c.b16 %v2001, %v1989
    %v3394 = vpack.c.b16 %v2002, %v1990
    %v3395 = vpack.c.b16 %v2003, %v1991
    %v3396 = vpack.c.b16 %v2004, %v1992
    %v3397 = vpack.c.b16 %v2005, %v1993
    %v3398 = vpack.c.b16 %v2006, %v1994
    %v3399 = vpack.c.b16 %v2007, %v1995
    %v3400 = vpack.c.b16 %v2008, %v1996
    %v3401 = vpack.c.b16 %v2009, %v1997
    %v3402 = vpack.c.b16 %v2010, %v1998
    %v3403 = vpack.c.b16 %v2011, %v1999
    %v3404 = vpack.c.b16 %v2012, %v2000
    %v3405 = vpack.c.b16 %v2025, %v2013
    %v3406 = vpack.c.b16 %v2026, %v2014
    %v3407 = vpack.c.b16 %v2027, %v2015
    %v3408 = vpack.c.b16 %v2028, %v2016
    %v3409 = vpack.c.b16 %v2029, %v2017
    %v3410 = vpack.c.b16 %v2030, %v2018
    %v3411 = vpack.c.b16 %v2031, %v2019
    %v3412 = vpack.c.b16 %v2032, %v2020
    %v3413 = vpack.c.b16 %v2033, %v2021
    %v3414 = vpack.c.b16 %v2034, %v2022
    %v3415 = vpack.c.b16 %v2035, %v2023
    %v3416 = vpack.c.b16 %v2036, %v2024
    %v3417 = vpack.c.b16 %v2049, %v2037
    %v3418 = vpack.c.b16 %v2050, %v2038
    %v3419 = vpack.c.b16 %v2051, %v2039
    %v3420 = vpack.c.b16 %v2052, %v2040
    %v3421 = vpack.c.b16 %v2053, %v2041
    %v3422 = vpack.c.b16 %v2054, %v2042
    %v3423 = vpack.c.b16 %v2055, %v2043
    %v3424 = vpack.c.b16 %v2056, %v2044
    %v3425 = vpack.c.b16 %v2057, %v2045
    %v3426 = vpack.c.b16 %v2058, %v2046
    %v3427 = vpack.c.b16 %v2059, %v2047
    %v3428 = vpack.c.b16 %v2060, %v2048
    %v3429 = vpack.c.b16 %v2073, %v2061
    %v3430 = vpack.c.b16 %v2074, %v2062
    %v3431 = vpack.c.b16 %v2075, %v2063
    %v3432 = vpack.c.b16 %v2076, %v2064
    %v3433 = vpack.c.b16 %v2077, %v2065
    %v3434 = vpack.c.b16 %v2078, %v2066
    %v3435 = vpack.c.b16 %v2079, %v2067
    %v3436 = vpack.c.b16 %v2080, %v2068
    %v3437 = vpack.c.b16 %v2081, %v2069
    %v3438 = vpack.c.b16 %v2082, %v2070
    %v3439 = vpack.c.b16 %v2083, %v2071
    %v3440 = vpack.c.b16 %v2084, %v2072
    %v3441 = vpack.c.b16 %v2097, %v2085
    %v3442 = vpack.c.b16 %v2098, %v2086
    %v3443 = vpack.c.b16 %v2099, %v2087
    %v3444 = vpack.c.b16 %v2100, %v2088
    %v3445 = vpack.c.b16 %v2101, %v2089
    %v3446 = vpack.c.b16 %v2102, %v2090
    %v3447 = vpack.c.b16 %v2103, %v2091
    %v3448 = vpack.c.b16 %v2104, %v2092
    %v3449 = vpack.c.b16 %v2105, %v2093
    %v3450 = vpack.c.b16 %v2106, %v2094
    %v3451 = vpack.c.b16 %v2107, %v2095
    %v3452 = vpack.c.b16 %v2108, %v2096
    %v3453 = vpack.c.b16 %v2121, %v2109
    %v3454 = vpack.c.b16 %v2122, %v2110
    %v3455 = vpack.c.b16 %v2123, %v2111
    %v3456 = vpack.c.b16 %v2124, %v2112
    %v3457 = vpack.c.b16 %v2125, %v2113
    %v3458 = vpack.c.b16 %v2126, %v2114
    %v3459 = vpack.c.b16 %v2127, %v2115
    %v3460 = vpack.c.b16 %v2128, %v2116
    %v3461 = vpack.c.b16 %v2129, %v2117
    %v3462 = vpack.c.b16 %v2130, %v2118
    %v3463 = vpack.c.b16 %v2131, %v2119
    %v3464 = vpack.c.b16 %v2132, %v2120
    %v3465 = vpack.c.b16 %v2145, %v2133
    %v3466 = vpack.c.b16 %v2146, %v2134
    %v3467 = vpack.c.b16 %v2147, %v2135
    %v3468 = vpack.c.b16 %v2148, %v2136
    %v3469 = vpack.c.b16 %v2149, %v2137
    %v3470 = vpack.c.b16 %v2150, %v2138
    %v3471 = vpack.c.b16 %v2151, %v2139
    %v3472 = vpack.c.b16 %v2152, %v2140
    %v3473 = vpack.c.b16 %v2153, %v2141
    %v3474 = vpack.c.b16 %v2154, %v2142
    %v3475 = vpack.c.b16 %v2155, %v2143
    %v3476 = vpack.c.b16 %v2156, %v2144
    %v3477 = vpack.c.b16 %v2169, %v2157
    %v3478 = vpack.c.b16 %v2170, %v2158
    %v3479 = vpack.c.b16 %v2171, %v2159
    %v3480 = vpack.c.b16 %v2172, %v2160
    %v3481 = vpack.c.b16 %v2173, %v2161
    %v3482 = vpack.c.b16 %v2174, %v2162
    %v3483 = vpack.c.b16 %v2175, %v2163
    %v3484 = vpack.c.b16 %v2176, %v2164
    %v3485 = vpack.c.b16 %v2177, %v2165
    %v3486 = vpack.c.b16 %v2178, %v2166
    %v3487 = vpack.c.b16 %v2179, %v2167
    %v3488 = vpack.c.b16 %v2180, %v2168
    %v3489 = vpack.c.b16 %v2193, %v2181
    %v3490 = vpack.c.b16 %v2194, %v2182
    %v3491 = vpack.c.b16 %v2195, %v2183
    %v3492 = vpack.c.b16 %v2196, %v2184
    %v3493 = vpack.c.b16 %v2197, %v2185
    %v3494 = vpack.c.b16 %v2198, %v2186
    %v3495 = vpack.c.b16 %v2199, %v2187
    %v3496 = vpack.c.b16 %v2200, %v2188
    %v3497 = vpack.c.b16 %v2201, %v2189
    %v3498 = vpack.c.b16 %v2202, %v2190
    %v3499 = vpack.c.b16 %v2203, %v2191
    %v3500 = vpack.c.b16 %v2204, %v2192
    %v3501 = vpack.c.b16 %v2217, %v2205
    %v3502 = vpack.c.b16 %v2218, %v2206
    %v3503 = vpack.c.b16 %v2219, %v2207
    %v3504 = vpack.c.b16 %v2220, %v2208
    %v3505 = vpack.c.b16 %v2221, %v2209
    %v3506 = vpack.c.b16 %v2222, %v2210
    %v3507 = vpack.c.b16 %v2223, %v2211
    %v3508 = vpack.c.b16 %v2224, %v2212
    %v3509 = vpack.c.b16 %v2225, %v2213
    %v3510 = vpack.c.b16 %v2226, %v2214
    %v3511 = vpack.c.b16 %v2227, %v2215
    %v3512 = vpack.c.b16 %v2228, %v2216
    %v3513 = vpack.c.b16 %v2241, %v2229
    %v3514 = vpack.c.b16 %v2242, %v2230
    %v3515 = vpack.c.b16 %v2243, %v2231
    %v3516 = vpack.c.b16 %v2244, %v2232
    %v3517 = vpack.c.b16 %v2245, %v2233
    %v3518 = vpack.c.b16 %v2246, %v2234
    %v3519 = vpack.c.b16 %v2247, %v2235
    %v3520 = vpack.c.b16 %v2248, %v2236
    %v3521 = vpack.c.b16 %v2249, %v2237
    %v3522 = vpack.c.b16 %v2250, %v2238
    %v3523 = vpack.c.b16 %v2251, %v2239
    %v3524 = vpack.c.b16 %v2252, %v2240
    %v3525 = vpack.c.b16 %v2265, %v2253
    %v3526 = vpack.c.b16 %v2266, %v2254
    %v3527 = vpack.c.b16 %v2267, %v2255
    %v3528 = vpack.c.b16 %v2268, %v2256
    %v3529 = vpack.c.b16 %v2269, %v2257
    %v3530 = vpack.c.b16 %v2270, %v2258
    %v3531 = vpack.c.b16 %v2271, %v2259
    %v3532 = vpack.c.b16 %v2272, %v2260
    %v3533 = vpack.c.b16 %v2273, %v2261
    %v3534 = vpack.c.b16 %v2274, %v2262
    %v3535 = vpack.c.b16 %v2275, %v2263
    %v3536 = vpack.c.b16 %v2276, %v2264
    %v3537 = vpack.c.b16 %v2289, %v2277
    %v3538 = vpack.c.b16 %v2290, %v2278
    %v3539 = vpack.c.b16 %v2291, %v2279
    %v3540 = vpack.c.b16 %v2292, %v2280
    %v3541 = vpack.c.b16 %v2293, %v2281
    %v3542 = vpack.c.b16 %v2294, %v2282
    %v3543 = vpack.c.b16 %v2295, %v2283
    %v3544 = vpack.c.b16 %v2296, %v2284
    %v3545 = vpack.c.b16 %v2297, %v2285
    %v3546 = vpack.c.b16 %v2298, %v2286
    %v3547 = vpack.c.b16 %v2299, %v2287
    %v3548 = vpack.c.b16 %v2300, %v2288
    %v3549 = vpack.c.b16 %v2313, %v2301
    %v3550 = vpack.c.b16 %v2314, %v2302
    %v3551 = vpack.c.b16 %v2315, %v2303
    %v3552 = vpack.c.b16 %v2316, %v2304
    %v3553 = vpack.c.b16 %v2317, %v2305
    %v3554 = vpack.c.b16 %v2318, %v2306
    %v3555 = vpack.c.b16 %v2319, %v2307
    %v3556 = vpack.c.b16 %v2320, %v2308
    %v3557 = vpack.c.b16 %v2321, %v2309
    %v3558 = vpack.c.b16 %v2322, %v2310
    %v3559 = vpack.c.b16 %v2323, %v2311
    %v3560 = vpack.c.b16 %v2324, %v2312
    %v3561 = vpack.c.b16 %v2337, %v2325
    %v3562 = vpack.c.b16 %v2338, %v2326
    %v3563 = vpack.c.b16 %v2339, %v2327
    %v3564 = vpack.c.b16 %v2340, %v2328
    %v3565 = vpack.c.b16 %v2341, %v2329
    %v3566 = vpack.c.b16 %v2342, %v2330
    %v3567 = vpack.c.b16 %v2343, %v2331
    %v3568 = vpack.c.b16 %v2344, %v2332
    %v3569 = vpack.c.b16 %v2345, %v2333
    %v3570 = vpack.c.b16 %v2346, %v2334
    %v3571 = vpack.c.b16 %v2347, %v2335
    %v3572 = vpack.c.b16 %v2348, %v2336
    %v3573 = vpack.c.b16 %v2361, %v2349
    %v3574 = vpack.c.b16 %v2362, %v2350
    %v3575 = vpack.c.b16 %v2363, %v2351
    %v3576 = vpack.c.b16 %v2364, %v2352
    %v3577 = vpack.c.b16 %v2365, %v2353
    %v3578 = vpack.c.b16 %v2366, %v2354
    %v3579 = vpack.c.b16 %v2367, %v2355
    %v3580 = vpack.c.b16 %v2368, %v2356
    %v3581 = vpack.c.b16 %v2369, %v2357
    %v3582 = vpack.c.b16 %v2370, %v2358
    %v3583 = vpack.c.b16 %v2371, %v2359
    %v3584 = vpack.c.b16 %v2372, %v2360
    %v3585 = vpack.c.b16 %v2385, %v2373
    %v3586 = vpack.c.b16 %v2386, %v2374
    %v3587 = vpack.c.b16 %v2387, %v2375
    %v3588 = vpack.c.b16 %v2388, %v2376
    %v3589 = vpack.c.b16 %v2389, %v2377
    %v3590 = vpack.c.b16 %v2390, %v2378
    %v3591 = vpack.c.b16 %v2391, %v2379
    %v3592 = vpack.c.b16 %v2392, %v2380
    %v3593 = vpack.c.b16 %v2393, %v2381
    %v3594 = vpack.c.b16 %v2394, %v2382
    %v3595 = vpack.c.b16 %v2395, %v2383
    %v3596 = vpack.c.b16 %v2396, %v2384
    %v3597 = vpack.c.b16 %v2409, %v2397
    %v3598 = vpack.c.b16 %v2410, %v2398
    %v3599 = vpack.c.b16 %v2411, %v2399
    %v3600 = vpack.c.b16 %v2412, %v2400
    %v3601 = vpack.c.b16 %v2413, %v2401
    %v3602 = vpack.c.b16 %v2414, %v2402
    %v3603 = vpack.c.b16 %v2415, %v2403
    %v3604 = vpack.c.b16 %v2416, %v2404
    %v3605 = vpack.c.b16 %v2417, %v2405
    %v3606 = vpack.c.b16 %v2418, %v2406
    %v3607 = vpack.c.b16 %v2419, %v2407
    %v3608 = vpack.c.b16 %v2420, %v2408
    %v3609 = vpack.c.b16 %v2433, %v2421
    %v3610 = vpack.c.b16 %v2434, %v2422
    %v3611 = vpack.c.b16 %v2435, %v2423
    %v3612 = vpack.c.b16 %v2436, %v2424
    %v3613 = vpack.c.b16 %v2437, %v2425
    %v3614 = vpack.c.b16 %v2438, %v2426
    %v3615 = vpack.c.b16 %v2439, %v2427
    %v3616 = vpack.c.b16 %v2440, %v2428
    %v3617 = vpack.c.b16 %v2441, %v2429
    %v3618 = vpack.c.b16 %v2442, %v2430
    %v3619 = vpack.c.b16 %v2443, %v2431
    %v3620 = vpack.c.b16 %v2444, %v2432
    %v3621 = vpack.c.b16 %v2457, %v2445
    %v3622 = vpack.c.b16 %v2458, %v2446
    %v3623 = vpack.c.b16 %v2459, %v2447
    %v3624 = vpack.c.b16 %v2460, %v2448
    %v3625 = vpack.c.b16 %v2461, %v2449
    %v3626 = vpack.c.b16 %v2462, %v2450
    %v3627 = vpack.c.b16 %v2463, %v2451
    %v3628 = vpack.c.b16 %v2464, %v2452
    %v3629 = vpack.c.b16 %v2465, %v2453
    %v3630 = vpack.c.b16 %v2466, %v2454
    %v3631 = vpack.c.b16 %v2467, %v2455
    %v3632 = vpack.c.b16 %v2468, %v2456
    %v3633 = vpack.c.b16 %v2481, %v2469
    %v3634 = vpack.c.b16 %v2482, %v2470
    %v3635 = vpack.c.b16 %v2483, %v2471
    %v3636 = vpack.c.b16 %v2484, %v2472
    %v3637 = vpack.c.b16 %v2485, %v2473
    %v3638 = vpack.c.b16 %v2486, %v2474
    %v3639 = vpack.c.b16 %v2487, %v2475
    %v3640 = vpack.c.b16 %v2488, %v2476
    %v3641 = vpack.c.b16 %v2489, %v2477
    %v3642 = vpack.c.b16 %v2490, %v2478
    %v3643 = vpack.c.b16 %v2491, %v2479
    %v3644 = vpack.c.b16 %v2492, %v2480
    %v3645 = vpack.c.b16 %v2505, %v2493
    %v3646 = vpack.c.b16 %v2506, %v2494
    %v3647 = vpack.c.b16 %v2507, %v2495
    %v3648 = vpack.c.b16 %v2508, %v2496
    %v3649 = vpack.c.b16 %v2509, %v2497
    %v3650 = vpack.c.b16 %v2510, %v2498
    %v3651 = vpack.c.b16 %v2511, %v2499
    %v3652 = vpack.c.b16 %v2512, %v2500
    %v3653 = vpack.c.b16 %v2513, %v2501
    %v3654 = vpack.c.b16 %v2514, %v2502
    %v3655 = vpack.c.b16 %v2515, %v2503
    %v3656 = vpack.c.b16 %v2516, %v2504
    %v3657 = vpack.c.b16 %v2529, %v2517
    %v3658 = vpack.c.b16 %v2530, %v2518
    %v3659 = vpack.c.b16 %v2531, %v2519
    %v3660 = vpack.c.b16 %v2532, %v2520
    %v3661 = vpack.c.b16 %v2533, %v2521
    %v3662 = vpack.c.b16 %v2534, %v2522
    %v3663 = vpack.c.b16 %v2535, %v2523
    %v3664 = vpack.c.b16 %v2536, %v2524
    %v3665 = vpack.c.b16 %v2537, %v2525
    %v3666 = vpack.c.b16 %v2538, %v2526
    %v3667 = vpack.c.b16 %v2539, %v2527
    %v3668 = vpack.c.b16 %v2540, %v2528
    %v3669 = vpack.c.b16 %v2553, %v2541
    %v3670 = vpack.c.b16 %v2554, %v2542
    %v3671 = vpack.c.b16 %v2555, %v2543
    %v3672 = vpack.c.b16 %v2556, %v2544
    %v3673 = vpack.c.b16 %v2557, %v2545
    %v3674 = vpack.c.b16 %v2558, %v2546
    %v3675 = vpack.c.b16 %v2559, %v2547
    %v3676 = vpack.c.b16 %v2560, %v2548
    %v3677 = vpack.c.b16 %v2561, %v2549
    %v3678 = vpack.c.b16 %v2562, %v2550
    %v3679 = vpack.c.b16 %v2563, %v2551
    %v3680 = vpack.c.b16 %v2564, %v2552
    %v3681 = vpack.c.b16 %v2577, %v2565
    %v3682 = vpack.c.b16 %v2578, %v2566
    %v3683 = vpack.c.b16 %v2579, %v2567
    %v3684 = vpack.c.b16 %v2580, %v2568
    %v3685 = vpack.c.b16 %v2581, %v2569
    %v3686 = vpack.c.b16 %v2582, %v2570
    %v3687 = vpack.c.b16 %v2583, %v2571
    %v3688 = vpack.c.b16 %v2584, %v2572
    %v3689 = vpack.c.b16 %v2585, %v2573
    %v3690 = vpack.c.b16 %v2586, %v2574
    %v3691 = vpack.c.b16 %v2587, %v2575
    %v3692 = vpack.c.b16 %v2588, %v2576
    %v3693 = vpack.c.b16 %v2601, %v2589
    %v3694 = vpack.c.b16 %v2602, %v2590
    %v3695 = vpack.c.b16 %v2603, %v2591
    %v3696 = vpack.c.b16 %v2604, %v2592
    %v3697 = vpack.c.b16 %v2605, %v2593
    %v3698 = vpack.c.b16 %v2606, %v2594
    %v3699 = vpack.c.b16 %v2607, %v2595
    %v3700 = vpack.c.b16 %v2608, %v2596
    %v3701 = vpack.c.b16 %v2609, %v2597
    %v3702 = vpack.c.b16 %v2610, %v2598
    %v3703 = vpack.c.b16 %v2611, %v2599
    %v3704 = vpack.c.b16 %v2612, %v2600
    %v3705 = vpack.c.b16 %v2625, %v2613
    %v3706 = vpack.c.b16 %v2626, %v2614
    %v3707 = vpack.c.b16 %v2627, %v2615
    %v3708 = vpack.c.b16 %v2628, %v2616
    %v3709 = vpack.c.b16 %v2629, %v2617
    %v3710 = vpack.c.b16 %v2630, %v2618
    %v3711 = vpack.c.b16 %v2631, %v2619
    %v3712 = vpack.c.b16 %v2632, %v2620
    %v3713 = vpack.c.b16 %v2633, %v2621
    %v3714 = vpack.c.b16 %v2634, %v2622
    %v3715 = vpack.c.b16 %v2635, %v2623
    %v3716 = vpack.c.b16 %v2636, %v2624
    %v3717 = vpack.c.b16 %v2649, %v2637
    %v3718 = vpack.c.b16 %v2650, %v2638
    %v3719 = vpack.c.b16 %v2651, %v2639
    %v3720 = vpack.c.b16 %v2652, %v2640
    %v3721 = vpack.c.b16 %v2653, %v2641
    %v3722 = vpack.c.b16 %v2654, %v2642
    %v3723 = vpack.c.b16 %v2655, %v2643
    %v3724 = vpack.c.b16 %v2656, %v2644
    %v3725 = vpack.c.b16 %v2657, %v2645
    %v3726 = vpack.c.b16 %v2658, %v2646
    %v3727 = vpack.c.b16 %v2659, %v2647
    %v3728 = vpack.c.b16 %v2660, %v2648
    %v3729 = vpack.c.b16 %v2673, %v2661
    %v3730 = vpack.c.b16 %v2674, %v2662
    %v3731 = vpack.c.b16 %v2675, %v2663
    %v3732 = vpack.c.b16 %v2676, %v2664
    %v3733 = vpack.c.b16 %v2677, %v2665
    %v3734 = vpack.c.b16 %v2678, %v2666
    %v3735 = vpack.c.b16 %v2679, %v2667
    %v3736 = vpack.c.b16 %v2680, %v2668
    %v3737 = vpack.c.b16 %v2681, %v2669
    %v3738 = vpack.c.b16 %v2682, %v2670
    %v3739 = vpack.c.b16 %v2683, %v2671
    %v3740 = vpack.c.b16 %v2684, %v2672
    %v3741 = vpack.c.b16 %v2697, %v2685
    %v3742 = vpack.c.b16 %v2698, %v2686
    %v3743 = vpack.c.b16 %v2699, %v2687
    %v3744 = vpack.c.b16 %v2700, %v2688
    %v3745 = vpack.c.b16 %v2701, %v2689
    %v3746 = vpack.c.b16 %v2702, %v2690
    %v3747 = vpack.c.b16 %v2703, %v2691
    %v3748 = vpack.c.b16 %v2704, %v2692
    %v3749 = vpack.c.b16 %v2705, %v2693
    %v3750 = vpack.c.b16 %v2706, %v2694
    %v3751 = vpack.c.b16 %v2707, %v2695
    %v3752 = vpack.c.b16 %v2708, %v2696
    %v3753 = vpack.c.b16 %v2721, %v2709
    %v3754 = vpack.c.b16 %v2722, %v2710
    %v3755 = vpack.c.b16 %v2723, %v2711
    %v3756 = vpack.c.b16 %v2724, %v2712
    %v3757 = vpack.c.b16 %v2725, %v2713
    %v3758 = vpack.c.b16 %v2726, %v2714
    %v3759 = vpack.c.b16 %v2727, %v2715
    %v3760 = vpack.c.b16 %v2728, %v2716
    %v3761 = vpack.c.b16 %v2729, %v2717
    %v3762 = vpack.c.b16 %v2730, %v2718
    %v3763 = vpack.c.b16 %v2731, %v2719
    %v3764 = vpack.c.b16 %v2732, %v2720
    %v3765 = vpack.c.b16 %v2745, %v2733
    %v3766 = vpack.c.b16 %v2746, %v2734
    %v3767 = vpack.c.b16 %v2747, %v2735
    %v3768 = vpack.c.b16 %v2748, %v2736
    %v3769 = vpack.c.b16 %v2749, %v2737
    %v3770 = vpack.c.b16 %v2750, %v2738
    %v3771 = vpack.c.b16 %v2751, %v2739
    %v3772 = vpack.c.b16 %v2752, %v2740
    %v3773 = vpack.c.b16 %v2753, %v2741
    %v3774 = vpack.c.b16 %v2754, %v2742
    %v3775 = vpack.c.b16 %v2755, %v2743
    %v3776 = vpack.c.b16 %v2756, %v2744
    %v3777 = vpack.c.b16 %v2769, %v2757
    %v3778 = vpack.c.b16 %v2770, %v2758
    %v3779 = vpack.c.b16 %v2771, %v2759
    %v3780 = vpack.c.b16 %v2772, %v2760
    %v3781 = vpack.c.b16 %v2773, %v2761
    %v3782 = vpack.c.b16 %v2774, %v2762
    %v3783 = vpack.c.b16 %v2775, %v2763
    %v3784 = vpack.c.b16 %v2776, %v2764
    %v3785 = vpack.c.b16 %v2777, %v2765
    %v3786 = vpack.c.b16 %v2778, %v2766
    %v3787 = vpack.c.b16 %v2779, %v2767
    %v3788 = vpack.c.b16 %v2780, %v2768
    %v3789 = vpack.c.b16 %v2793, %v2781
    %v3790 = vpack.c.b16 %v2794, %v2782
    %v3791 = vpack.c.b16 %v2795, %v2783
    %v3792 = vpack.c.b16 %v2796, %v2784
    %v3793 = vpack.c.b16 %v2797, %v2785
    %v3794 = vpack.c.b16 %v2798, %v2786
    %v3795 = vpack.c.b16 %v2799, %v2787
    %v3796 = vpack.c.b16 %v2800, %v2788
    %v3797 = vpack.c.b16 %v2801, %v2789
    %v3798 = vpack.c.b16 %v2802, %v2790
    %v3799 = vpack.c.b16 %v2803, %v2791
    %v3800 = vpack.c.b16 %v2804, %v2792
    %v3801 = vpack.c.b16 %v2817, %v2805
    %v3802 = vpack.c.b16 %v2818, %v2806
    %v3803 = vpack.c.b16 %v2819, %v2807
    %v3804 = vpack.c.b16 %v2820, %v2808
    %v3805 = vpack.c.b16 %v2821, %v2809
    %v3806 = vpack.c.b16 %v2822, %v2810
    %v3807 = vpack.c.b16 %v2823, %v2811
    %v3808 = vpack.c.b16 %v2824, %v2812
    %v3809 = vpack.c.b16 %v2825, %v2813
    %v3810 = vpack.c.b16 %v2826, %v2814
    %v3811 = vpack.c.b16 %v2827, %v2815
    %v3812 = vpack.c.b16 %v2828, %v2816
    %v3813 = vpack.c.b16 %v2841, %v2829
    %v3814 = vpack.c.b16 %v2842, %v2830
    %v3815 = vpack.c.b16 %v2843, %v2831
    %v3816 = vpack.c.b16 %v2844, %v2832
    %v3817 = vpack.c.b16 %v2845, %v2833
    %v3818 = vpack.c.b16 %v2846, %v2834
    %v3819 = vpack.c.b16 %v2847, %v2835
    %v3820 = vpack.c.b16 %v2848, %v2836
    %v3821 = vpack.c.b16 %v2849, %v2837
    %v3822 = vpack.c.b16 %v2850, %v2838
    %v3823 = vpack.c.b16 %v2851, %v2839
    %v3824 = vpack.c.b16 %v2852, %v2840
    %v3825 = vpack.c.b16 %v2865, %v2853
    %v3826 = vpack.c.b16 %v2866, %v2854
    %v3827 = vpack.c.b16 %v2867, %v2855
    %v3828 = vpack.c.b16 %v2868, %v2856
    %v3829 = vpack.c.b16 %v2869, %v2857
    %v3830 = vpack.c.b16 %v2870, %v2858
    %v3831 = vpack.c.b16 %v2871, %v2859
    %v3832 = vpack.c.b16 %v2872, %v2860
    %v3833 = vpack.c.b16 %v2873, %v2861
    %v3834 = vpack.c.b16 %v2874, %v2862
    %v3835 = vpack.c.b16 %v2875, %v2863
    %v3836 = vpack.c.b16 %v2876, %v2864
    %v3837 = vpack.c.b16 %v2889, %v2877
    %v3838 = vpack.c.b16 %v2890, %v2878
    %v3839 = vpack.c.b16 %v2891, %v2879
    %v3840 = vpack.c.b16 %v2892, %v2880
    %v3841 = vpack.c.b16 %v2893, %v2881
    %v3842 = vpack.c.b16 %v2894, %v2882
    %v3843 = vpack.c.b16 %v2895, %v2883
    %v3844 = vpack.c.b16 %v2896, %v2884
    %v3845 = vpack.c.b16 %v2897, %v2885
    %v3846 = vpack.c.b16 %v2898, %v2886
    %v3847 = vpack.c.b16 %v2899, %v2887
    %v3848 = vpack.c.b16 %v2900, %v2888
    %v3849 = vpack.c.b16 %v2913, %v2901
    %v3850 = vpack.c.b16 %v2914, %v2902
    %v3851 = vpack.c.b16 %v2915, %v2903
    %v3852 = vpack.c.b16 %v2916, %v2904
    %v3853 = vpack.c.b16 %v2917, %v2905
    %v3854 = vpack.c.b16 %v2918, %v2906
    %v3855 = vpack.c.b16 %v2919, %v2907
    %v3856 = vpack.c.b16 %v2920, %v2908
    %v3857 = vpack.c.b16 %v2921, %v2909
    %v3858 = vpack.c.b16 %v2922, %v2910
    %v3859 = vpack.c.b16 %v2923, %v2911
    %v3860 = vpack.c.b16 %v2924, %v2912
    %v3861 = vpack.c.b16 %v2937, %v2925
    %v3862 = vpack.c.b16 %v2938, %v2926
    %v3863 = vpack.c.b16 %v2939, %v2927
    %v3864 = vpack.c.b16 %v2940, %v2928
    %v3865 = vpack.c.b16 %v2941, %v2929
    %v3866 = vpack.c.b16 %v2942, %v2930
    %v3867 = vpack.c.b16 %v2943, %v2931
    %v3868 = vpack.c.b16 %v2944, %v2932
    %v3869 = vpack.c.b16 %v2945, %v2933
    %v3870 = vpack.c.b16 %v2946, %v2934
    %v3871 = vpack.c.b16 %v2947, %v2935
    %v3872 = vpack.c.b16 %v2948, %v2936
    %v3873 = vpack.c.b16 %v2961, %v2949
    %v3874 = vpack.c.b16 %v2962, %v2950
    %v3875 = vpack.c.b16 %v2963, %v2951
    %v3876 = vpack.c.b16 %v2964, %v2952
    %v3877 = vpack.c.b16 %v2965, %v2953
    %v3878 = vpack.c.b16 %v2966, %v2954
    %v3879 = vpack.c.b16 %v2967, %v2955
    %v3880 = vpack.c.b16 %v2968, %v2956
    %v3881 = vpack.c.b16 %v2969, %v2957
    %v3882 = vpack.c.b16 %v2970, %v2958
    %v3883 = vpack.c.b16 %v2971, %v2959
    %v3884 = vpack.c.b16 %v2972, %v2960
    %v3885 = vpack.c.b16 %v2985, %v2973
    %v3886 = vpack.c.b16 %v2986, %v2974
    %v3887 = vpack.c.b16 %v2987, %v2975
    %v3888 = vpack.c.b16 %v2988, %v2976
    %v3889 = vpack.c.b16 %v2989, %v2977
    %v3890 = vpack.c.b16 %v2990, %v2978
    %v3891 = vpack.c.b16 %v2991, %v2979
    %v3892 = vpack.c.b16 %v2992, %v2980
    %v3893 = vpack.c.b16 %v2993, %v2981
    %v3894 = vpack.c.b16 %v2994, %v2982
    %v3895 = vpack.c.b16 %v2995, %v2983
    %v3896 = vpack.c.b16 %v2996, %v2984
    %v3897 = vpack.c.b16 %v3009, %v2997
    %v3898 = vpack.c.b16 %v3010, %v2998
    %v3899 = vpack.c.b16 %v3011, %v2999
    %v3900 = vpack.c.b16 %v3012, %v3000
    %v3901 = vpack.c.b16 %v3013, %v3001
    %v3902 = vpack.c.b16 %v3014, %v3002
    %v3903 = vpack.c.b16 %v3015, %v3003
    %v3904 = vpack.c.b16 %v3016, %v3004
    %v3905 = vpack.c.b16 %v3017, %v3005
    %v3906 = vpack.c.b16 %v3018, %v3006
    %v3907 = vpack.c.b16 %v3019, %v3007
    %v3908 = vpack.c.b16 %v3020, %v3008
    %v3909 = vpack.c.b16 %v3033, %v3021
    %v3910 = vpack.c.b16 %v3034, %v3022
    %v3911 = vpack.c.b16 %v3035, %v3023
    %v3912 = vpack.c.b16 %v3036, %v3024
    %v3913 = vpack.c.b16 %v3037, %v3025
    %v3914 = vpack.c.b16 %v3038, %v3026
    %v3915 = vpack.c.b16 %v3039, %v3027
    %v3916 = vpack.c.b16 %v3040, %v3028
    %v3917 = vpack.c.b16 %v3041, %v3029
    %v3918 = vpack.c.b16 %v3042, %v3030
    %v3919 = vpack.c.b16 %v3043, %v3031
    %v3920 = vpack.c.b16 %v3044, %v3032
    %v3921 = vpack.c.b16 %v3057, %v3045
    %v3922 = vpack.c.b16 %v3058, %v3046
    %v3923 = vpack.c.b16 %v3059, %v3047
    %v3924 = vpack.c.b16 %v3060, %v3048
    %v3925 = vpack.c.b16 %v3061, %v3049
    %v3926 = vpack.c.b16 %v3062, %v3050
    %v3927 = vpack.c.b16 %v3063, %v3051
    %v3928 = vpack.c.b16 %v3064, %v3052
    %v3929 = vpack.c.b16 %v3065, %v3053
    %v3930 = vpack.c.b16 %v3066, %v3054
    %v3931 = vpack.c.b16 %v3067, %v3055
    %v3932 = vpack.c.b16 %v3068, %v3056
    %v3933 = vpack.c.b16 %v3081, %v3069
    %v3934 = vpack.c.b16 %v3082, %v3070
    %v3935 = vpack.c.b16 %v3083, %v3071
    %v3936 = vpack.c.b16 %v3084, %v3072
    %v3937 = vpack.c.b16 %v3085, %v3073
    %v3938 = vpack.c.b16 %v3086, %v3074
    %v3939 = vpack.c.b16 %v3087, %v3075
    %v3940 = vpack.c.b16 %v3088, %v3076
    %v3941 = vpack.c.b16 %v3089, %v3077
    %v3942 = vpack.c.b16 %v3090, %v3078
    %v3943 = vpack.c.b16 %v3091, %v3079
    %v3944 = vpack.c.b16 %v3092, %v3080
    %v3945 = vpack.c.b16 %v3105, %v3093
    %v3946 = vpack.c.b16 %v3106, %v3094
    %v3947 = vpack.c.b16 %v3107, %v3095
    %v3948 = vpack.c.b16 %v3108, %v3096
    %v3949 = vpack.c.b16 %v3109, %v3097
    %v3950 = vpack.c.b16 %v3110, %v3098
    %v3951 = vpack.c.b16 %v3111, %v3099
    %v3952 = vpack.c.b16 %v3112, %v3100
    %v3953 = vpack.c.b16 %v3113, %v3101
    %v3954 = vpack.c.b16 %v3114, %v3102
    %v3955 = vpack.c.b16 %v3115, %v3103
    %v3956 = vpack.c.b16 %v3116, %v3104
    %v3957 = vpack.c.b16 %v3129, %v3117
    %v3958 = vpack.c.b16 %v3130, %v3118
    %v3959 = vpack.c.b16 %v3131, %v3119
    %v3960 = vpack.c.b16 %v3132, %v3120
    %v3961 = vpack.c.b16 %v3133, %v3121
    %v3962 = vpack.c.b16 %v3134, %v3122
    %v3963 = vpack.c.b16 %v3135, %v3123
    %v3964 = vpack.c.b16 %v3136, %v3124
    %v3965 = vpack.c.b16 %v3137, %v3125
    %v3966 = vpack.c.b16 %v3138, %v3126
    %v3967 = vpack.c.b16 %v3139, %v3127
    %v3968 = vpack.c.b16 %v3140, %v3128
    %v3969 = vpack.c.b16 %v3153, %v3141
    %v3970 = vpack.c.b16 %v3154, %v3142
    %v3971 = vpack.c.b16 %v3155, %v3143
    %v3972 = vpack.c.b16 %v3156, %v3144
    %v3973 = vpack.c.b16 %v3157, %v3145
    %v3974 = vpack.c.b16 %v3158, %v3146
    %v3975 = vpack.c.b16 %v3159, %v3147
    %v3976 = vpack.c.b16 %v3160, %v3148
    %v3977 = vpack.c.b16 %v3161, %v3149
    %v3978 = vpack.c.b16 %v3162, %v3150
    %v3979 = vpack.c.b16 %v3163, %v3151
    %v3980 = vpack.c.b16 %v3164, %v3152
    %v3981 = vpack.c.b16 %v3177, %v3165
    %v3982 = vpack.c.b16 %v3178, %v3166
    %v3983 = vpack.c.b16 %v3179, %v3167
    %v3984 = vpack.c.b16 %v3180, %v3168
    %v3985 = vpack.c.b16 %v3181, %v3169
    %v3986 = vpack.c.b16 %v3182, %v3170
    %v3987 = vpack.c.b16 %v3183, %v3171
    %v3988 = vpack.c.b16 %v3184, %v3172
    %v3989 = vpack.c.b16 %v3185, %v3173
    %v3990 = vpack.c.b16 %v3186, %v3174
    %v3991 = vpack.c.b16 %v3187, %v3175
    %v3992 = vpack.c.b16 %v3188, %v3176
    %v3993 = vpack.c.b16 %v3201, %v3189
    %v3994 = vpack.c.b16 %v3202, %v3190
    %v3995 = vpack.c.b16 %v3203, %v3191
    %v3996 = vpack.c.b16 %v3204, %v3192
    %v3997 = vpack.c.b16 %v3205, %v3193
    %v3998 = vpack.c.b16 %v3206, %v3194
    %v3999 = vpack.c.b16 %v3207, %v3195
    %v4000 = vpack.c.b16 %v3208, %v3196
    %v4001 = vpack.c.b16 %v3209, %v3197
    %v4002 = vpack.c.b16 %v3210, %v3198
    %v4003 = vpack.c.b16 %v3211, %v3199
    %v4004 = vpack.c.b16 %v3212, %v3200
    %v4005 = vpack.c.b16 %v3225, %v3213
    %v4006 = vpack.c.b16 %v3226, %v3214
    %v4007 = vpack.c.b16 %v3227, %v3215
    %v4008 = vpack.c.b16 %v3228, %v3216
    %v4009 = vpack.c.b16 %v3229, %v3217
    %v4010 = vpack.c.b16 %v3230, %v3218
    %v4011 = vpack.c.b16 %v3231, %v3219
    %v4012 = vpack.c.b16 %v3232, %v3220
    %v4013 = vpack.c.b16 %v3233, %v3221
    %v4014 = vpack.c.b16 %v3234, %v3222
    %v4015 = vpack.c.b16 %v3235, %v3223
    %v4016 = vpack.c.b16 %v3236, %v3224
    %v4017 = vpack.c.b16 %v3249, %v3237
    %v4018 = vpack.c.b16 %v3250, %v3238
    %v4019 = vpack.c.b16 %v3251, %v3239
    %v4020 = vpack.c.b16 %v3252, %v3240
    %v4021 = vpack.c.b16 %v3253, %v3241
    %v4022 = vpack.c.b16 %v3254, %v3242
    %v4023 = vpack.c.b16 %v3255, %v3243
    %v4024 = vpack.c.b16 %v3256, %v3244
    %v4025 = vpack.c.b16 %v3257, %v3245
    %v4026 = vpack.c.b16 %v3258, %v3246
    %v4027 = vpack.c.b16 %v3259, %v3247
    %v4028 = vpack.c.b16 %v3260, %v3248
    %4797 = vmatprep.subr.bf16.mxu0 %v3262
    %4798 = vmatpush1.bf16.msra.mxu0 %v3261
    %4799 = vmatprep.subr.bf16.mxu0 %v3274
    %4800 = vmatpush1.bf16.msra.mxu0 %v3273
    %4801 = vmatprep.subr.bf16.mxu0 %v3286
    %4802 = vmatpush1.bf16.msra.mxu0 %v3285
    %4803 = vmatprep.subr.bf16.mxu0 %v3298
    %4804 = vmatpush1.bf16.msra.mxu0 %v3297
    %4805 = vmatprep.subr.bf16.mxu0 %v3310
    %4806 = vmatpush1.bf16.msra.mxu0 %v3309
    %4807 = vmatprep.subr.bf16.mxu0 %v3322
    %4808 = vmatpush1.bf16.msra.mxu0 %v3321
    %4809 = vmatprep.subr.bf16.mxu0 %v3334
    %4810 = vmatpush1.bf16.msra.mxu0 %v3333
    %4811 = vmatprep.subr.bf16.mxu0 %v3346
    %4812 = vmatpush1.bf16.msra.mxu0 %v3345
    %4813 = vmatprep.subr.bf16.mxu0 %v3358
    %4814 = vmatpush1.bf16.msra.mxu0 %v3357
    %4815 = vmatprep.subr.bf16.mxu0 %v3370
    %4816 = vmatpush1.bf16.msra.mxu0 %v3369
    %4817 = vmatprep.subr.bf16.mxu0 %v3382
    %4818 = vmatpush1.bf16.msra.mxu0 %v3381
    %4819 = vmatprep.subr.bf16.mxu0 %v3394
    %4820 = vmatpush1.bf16.msra.mxu0 %v3393
    %4821 = vmatprep.subr.bf16.mxu0 %v3406
    %4822 = vmatpush1.bf16.msra.mxu0 %v3405
    %4823 = vmatprep.subr.bf16.mxu0 %v3418
    %4824 = vmatpush1.bf16.msra.mxu0 %v3417
    %4825 = vmatprep.subr.bf16.mxu0 %v3430
    %4826 = vmatpush1.bf16.msra.mxu0 %v3429
    %4827 = vmatprep.subr.bf16.mxu0 %v3442
    %4828 = vmatpush1.bf16.msra.mxu0 %v3441
    %4829 = vmatprep.mubr.bf16.mxu0 %v182
    %4830 = vmatmul.mubr.bf16.gmra.mrb[0].mxu0 %v181
    %v4831 = vpop.f32.mrb[0].mxu0
    %v4832 = vadd.f32 0.0, %v4831
    %v4833 = vpop.f32.mrb[0].mxu0
    %v4834 = vadd.f32 0.0, %v4833
    %v4835 = vpop.f32.mrb[0].mxu0
    %v4836 = vpop.f32.mrb[0].mxu0
    %4837 = vdwg.mxu0
    %4838 = vmatprep.subr.bf16.mxu0 %v3454
    %4839 = vmatpush1.bf16.msra.mxu0 %v3453
    %4840 = vmatprep.subr.bf16.mxu0 %v3466
    %4841 = vmatpush1.bf16.msra.mxu0 %v3465
    %4842 = vmatprep.subr.bf16.mxu0 %v3478
    %4843 = vmatpush1.bf16.msra.mxu0 %v3477
    %4844 = vmatprep.subr.bf16.mxu0 %v3490
    %4845 = vmatpush1.bf16.msra.mxu0 %v3489
    %4846 = vmatprep.subr.bf16.mxu0 %v3502
    %4847 = vmatpush1.bf16.msra.mxu0 %v3501
    %4848 = vmatprep.subr.bf16.mxu0 %v3514
    %4849 = vmatpush1.bf16.msra.mxu0 %v3513
    %4850 = vmatprep.subr.bf16.mxu0 %v3526
    %4851 = vmatpush1.bf16.msra.mxu0 %v3525
    %4852 = vmatprep.subr.bf16.mxu0 %v3538
    %4853 = vmatpush1.bf16.msra.mxu0 %v3537
    %4854 = vmatprep.subr.bf16.mxu0 %v3550
    %4855 = vmatpush1.bf16.msra.mxu0 %v3549
    %4856 = vmatprep.subr.bf16.mxu0 %v3562
    %4857 = vmatpush1.bf16.msra.mxu0 %v3561
    %4858 = vmatprep.subr.bf16.mxu0 %v3574
    %4859 = vmatpush1.bf16.msra.mxu0 %v3573
    %4860 = vmatprep.subr.bf16.mxu0 %v3586
    %4861 = vmatpush1.bf16.msra.mxu0 %v3585
    %4862 = vmatprep.subr.bf16.mxu0 %v3598
    %4863 = vmatpush1.bf16.msra.mxu0 %v3597
    %4864 = vmatprep.subr.bf16.mxu0 %v3610
    %4865 = vmatpush1.bf16.msra.mxu0 %v3609
    %4866 = vmatprep.subr.bf16.mxu0 %v3622
    %4867 = vmatpush1.bf16.msra.mxu0 %v3621
    %4868 = vmatprep.subr.bf16.mxu0 %v3634
    %4869 = vmatpush1.bf16.msra.mxu0 %v3633
    %4870 = vmatprep.mubr.bf16.mxu0 %v184
    %4871 = vmatmul.mubr.bf16.gmra.mrb[0].mxu0 %v183
    %v4872 = vpop.f32.mrb[0].mxu0
    %v4873 = vadd.f32 %v4832, %v4872
    %v4874 = vpop.f32.mrb[0].mxu0
    %v4875 = vadd.f32 %v4834, %v4874
    %v4876 = vpop.f32.mrb[0].mxu0
    %v4877 = vpop.f32.mrb[0].mxu0
    %4878 = vdwg.mxu0
    %4879 = vmatprep.subr.bf16.mxu0 %v3646
    %4880 = vmatpush1.bf16.msra.mxu0 %v3645
    %4881 = vmatprep.subr.bf16.mxu0 %v3658
    %4882 = vmatpush1.bf16.msra.mxu0 %v3657
    %4883 = vmatprep.subr.bf16.mxu0 %v3670
    %4884 = vmatpush1.bf16.msra.mxu0 %v3669
    %4885 = vmatprep.subr.bf16.mxu0 %v3682
    %4886 = vmatpush1.bf16.msra.mxu0 %v3681
    %4887 = vmatprep.subr.bf16.mxu0 %v3694
    %4888 = vmatpush1.bf16.msra.mxu0 %v3693
    %4889 = vmatprep.subr.bf16.mxu0 %v3706
    %4890 = vmatpush1.bf16.msra.mxu0 %v3705
    %4891 = vmatprep.subr.bf16.mxu0 %v3718
    %4892 = vmatpush1.bf16.msra.mxu0 %v3717
    %4893 = vmatprep.subr.bf16.mxu0 %v3730
    %4894 = vmatpush1.bf16.msra.mxu0 %v3729
    %4895 = vmatprep.subr.bf16.mxu0 %v3742
    %4896 = vmatpush1.bf16.msra.mxu0 %v3741
    %4897 = vmatprep.subr.bf16.mxu0 %v3754
    %4898 = vmatpush1.bf16.msra.mxu0 %v3753
    %4899 = vmatprep.subr.bf16.mxu0 %v3766
    %4900 = vmatpush1.bf16.msra.mxu0 %v3765
    %4901 = vmatprep.subr.bf16.mxu0 %v3778
    %4902 = vmatpush1.bf16.msra.mxu0 %v3777
    %4903 = vmatprep.subr.bf16.mxu0 %v3790
    %4904 = vmatpush1.bf16.msra.mxu0 %v3789
    %4905 = vmatprep.subr.bf16.mxu0 %v3802
    %4906 = vmatpush1.bf16.msra.mxu0 %v3801
    %4907 = vmatprep.subr.bf16.mxu0 %v3814
    %4908 = vmatpush1.bf16.msra.mxu0 %v3813
    %4909 = vmatprep.subr.bf16.mxu0 %v3826
    %4910 = vmatpush1.bf16.msra.mxu0 %v3825
    %4911 = vmatprep.mubr.bf16.mxu0 %v186
    %4912 = vmatmul.mubr.bf16.gmra.mrb[0].mxu0 %v185
    %v4913 = vpop.f32.mrb[0].mxu0
    %v4914 = vadd.f32 %v4873, %v4913
    %v4915 = vpop.f32.mrb[0].mxu0
    %v4916 = vadd.f32 %v4875, %v4915
    %v4917 = vpop.f32.mrb[0].mxu0
    %v4918 = vpop.f32.mrb[0].mxu0
    %4919 = vdwg.mxu0
    %4920 = vmatprep.subr.bf16.mxu0 %v3838
    %4921 = vmatpush1.bf16.msra.mxu0 %v3837
    %4922 = vmatprep.subr.bf16.mxu0 %v3850
    %4923 = vmatpush1.bf16.msra.mxu0 %v3849
    %4924 = vmatprep.subr.bf16.mxu0 %v3862
    %4925 = vmatpush1.bf16.msra.mxu0 %v3861
    %4926 = vmatprep.subr.bf16.mxu0 %v3874
    %4927 = vmatpush1.bf16.msra.mxu0 %v3873
    %4928 = vmatprep.subr.bf16.mxu0 %v3886
    %4929 = vmatpush1.bf16.msra.mxu0 %v3885
    %4930 = vmatprep.subr.bf16.mxu0 %v3898
    %4931 = vmatpush1.bf16.msra.mxu0 %v3897
    %4932 = vmatprep.subr.bf16.mxu0 %v3910
    %4933 = vmatpush1.bf16.msra.mxu0 %v3909
    %4934 = vmatprep.subr.bf16.mxu0 %v3922
    %4935 = vmatpush1.bf16.msra.mxu0 %v3921
    %4936 = vmatprep.subr.bf16.mxu0 %v3934
    %4937 = vmatpush1.bf16.msra.mxu0 %v3933
    %4938 = vmatprep.subr.bf16.mxu0 %v3946
    %4939 = vmatpush1.bf16.msra.mxu0 %v3945
    %4940 = vmatprep.subr.bf16.mxu0 %v3958
    %4941 = vmatpush1.bf16.msra.mxu0 %v3957
    %4942 = vmatprep.subr.bf16.mxu0 %v3970
    %4943 = vmatpush1.bf16.msra.mxu0 %v3969
    %4944 = vmatprep.subr.bf16.mxu0 %v3982
    %4945 = vmatpush1.bf16.msra.mxu0 %v3981
    %4946 = vmatprep.subr.bf16.mxu0 %v3994
    %4947 = vmatpush1.bf16.msra.mxu0 %v3993
    %4948 = vmatprep.subr.bf16.mxu0 %v4006
    %4949 = vmatpush1.bf16.msra.mxu0 %v4005
    %4950 = vmatprep.subr.bf16.mxu0 %v4018
    %4951 = vmatpush1.bf16.msra.mxu0 %v4017
    %4952 = vmatprep.mubr.bf16.mxu0 %v188
    %4953 = vmatmul.mubr.bf16.gmra.mrb[0].mxu0 %v187
    %v4954 = vpop.f32.mrb[0].mxu0
    %v4955 = vadd.f32 %v4914, %v4954
    %v4956 = vpop.f32.mrb[0].mxu0
    %v4957 = vadd.f32 %v4916, %v4956
    %v4958 = vpop.f32.mrb[0].mxu0
    %v4959 = vpop.f32.mrb[0].mxu0
    %4960 = vdwg.mxu0
    %4961 = vmatprep.subr.bf16.mxu0 %v3264
    %4962 = vmatpush1.bf16.msra.mxu0 %v3263
    %4963 = vmatprep.subr.bf16.mxu0 %v3276
    %4964 = vmatpush1.bf16.msra.mxu0 %v3275
    %4965 = vmatprep.subr.bf16.mxu0 %v3288
    %4966 = vmatpush1.bf16.msra.mxu0 %v3287
    %4967 = vmatprep.subr.bf16.mxu0 %v3300
    %4968 = vmatpush1.bf16.msra.mxu0 %v3299
    %4969 = vmatprep.subr.bf16.mxu0 %v3312
    %4970 = vmatpush1.bf16.msra.mxu0 %v3311
    %4971 = vmatprep.subr.bf16.mxu0 %v3324
    %4972 = vmatpush1.bf16.msra.mxu0 %v3323
    %4973 = vmatprep.subr.bf16.mxu0 %v3336
    %4974 = vmatpush1.bf16.msra.mxu0 %v3335
    %4975 = vmatprep.subr.bf16.mxu0 %v3348
    %4976 = vmatpush1.bf16.msra.mxu0 %v3347
    %4977 = vmatprep.subr.bf16.mxu0 %v3360
    %4978 = vmatpush1.bf16.msra.mxu0 %v3359
    %4979 = vmatprep.subr.bf16.mxu0 %v3372
    %4980 = vmatpush1.bf16.msra.mxu0 %v3371
    %4981 = vmatprep.subr.bf16.mxu0 %v3384
    %4982 = vmatpush1.bf16.msra.mxu0 %v3383
    %4983 = vmatprep.subr.bf16.mxu0 %v3396
    %4984 = vmatpush1.bf16.msra.mxu0 %v3395
    %4985 = vmatprep.subr.bf16.mxu0 %v3408
    %4986 = vmatpush1.bf16.msra.mxu0 %v3407
    %4987 = vmatprep.subr.bf16.mxu0 %v3420
    %4988 = vmatpush1.bf16.msra.mxu0 %v3419
    %4989 = vmatprep.subr.bf16.mxu0 %v3432
    %4990 = vmatpush1.bf16.msra.mxu0 %v3431
    %4991 = vmatprep.subr.bf16.mxu0 %v3444
    %4992 = vmatpush1.bf16.msra.mxu0 %v3443
    %4993 = vmatprep.mubr.bf16.mxu0 %v182
    %4994 = vmatmul.mubr.bf16.gmra.mrb[0].mxu0 %v181
    %v4995 = vpop.f32.mrb[0].mxu0
    %v4996 = vadd.f32 0.0, %v4995
    %v4997 = vpop.f32.mrb[0].mxu0
    %v4998 = vadd.f32 0.0, %v4997
    %v4999 = vpop.f32.mrb[0].mxu0
    %v5000 = vpop.f32.mrb[0].mxu0
    %5001 = vdwg.mxu0
    %5002 = vmatprep.subr.bf16.mxu0 %v3456
    %5003 = vmatpush1.bf16.msra.mxu0 %v3455
    %5004 = vmatprep.subr.bf16.mxu0 %v3468
    %5005 = vmatpush1.bf16.msra.mxu0 %v3467
    %5006 = vmatprep.subr.bf16.mxu0 %v3480
    %5007 = vmatpush1.bf16.msra.mxu0 %v3479
    %5008 = vmatprep.subr.bf16.mxu0 %v3492
    %5009 = vmatpush1.bf16.msra.mxu0 %v3491
    %5010 = vmatprep.subr.bf16.mxu0 %v3504
    %5011 = vmatpush1.bf16.msra.mxu0 %v3503
    %5012 = vmatprep.subr.bf16.mxu0 %v3516
    %5013 = vmatpush1.bf16.msra.mxu0 %v3515
    %5014 = vmatprep.subr.bf16.mxu0 %v3528
    %5015 = vmatpush1.bf16.msra.mxu0 %v3527
    %5016 = vmatprep.subr.bf16.mxu0 %v3540
    %5017 = vmatpush1.bf16.msra.mxu0 %v3539
    %5018 = vmatprep.subr.bf16.mxu0 %v3552
    %5019 = vmatpush1.bf16.msra.mxu0 %v3551
    %5020 = vmatprep.subr.bf16.mxu0 %v3564
    %5021 = vmatpush1.bf16.msra.mxu0 %v3563
    %5022 = vmatprep.subr.bf16.mxu0 %v3576
    %5023 = vmatpush1.bf16.msra.mxu0 %v3575
    %5024 = vmatprep.subr.bf16.mxu0 %v3588
    %5025 = vmatpush1.bf16.msra.mxu0 %v3587
    %5026 = vmatprep.subr.bf16.mxu0 %v3600
    %5027 = vmatpush1.bf16.msra.mxu0 %v3599
    %5028 = vmatprep.subr.bf16.mxu0 %v3612
    %5029 = vmatpush1.bf16.msra.mxu0 %v3611
    %5030 = vmatprep.subr.bf16.mxu0 %v3624
    %5031 = vmatpush1.bf16.msra.mxu0 %v3623
    %5032 = vmatprep.subr.bf16.mxu0 %v3636
    %5033 = vmatpush1.bf16.msra.mxu0 %v3635
    %5034 = vmatprep.mubr.bf16.mxu0 %v184
    %5035 = vmatmul.mubr.bf16.gmra.mrb[0].mxu0 %v183
    %v5036 = vpop.f32.mrb[0].mxu0
    %v5037 = vadd.f32 %v4996, %v5036
    %v5038 = vpop.f32.mrb[0].mxu0
    %v5039 = vadd.f32 %v4998, %v5038
    %v5040 = vpop.f32.mrb[0].mxu0
    %v5041 = vpop.f32.mrb[0].mxu0
    %5042 = vdwg.mxu0
    %5043 = vmatprep.subr.bf16.mxu0 %v3648
    %5044 = vmatpush1.bf16.msra.mxu0 %v3647
    %5045 = vmatprep.subr.bf16.mxu0 %v3660
    %5046 = vmatpush1.bf16.msra.mxu0 %v3659
    %5047 = vmatprep.subr.bf16.mxu0 %v3672
    %5048 = vmatpush1.bf16.msra.mxu0 %v3671
    %5049 = vmatprep.subr.bf16.mxu0 %v3684
    %5050 = vmatpush1.bf16.msra.mxu0 %v3683
    %5051 = vmatprep.subr.bf16.mxu0 %v3696
    %5052 = vmatpush1.bf16.msra.mxu0 %v3695
    %5053 = vmatprep.subr.bf16.mxu0 %v3708
    %5054 = vmatpush1.bf16.msra.mxu0 %v3707
    %5055 = vmatprep.subr.bf16.mxu0 %v3720
    %5056 = vmatpush1.bf16.msra.mxu0 %v3719
    %5057 = vmatprep.subr.bf16.mxu0 %v3732
    %5058 = vmatpush1.bf16.msra.mxu0 %v3731
    %5059 = vmatprep.subr.bf16.mxu0 %v3744
    %5060 = vmatpush1.bf16.msra.mxu0 %v3743
    %5061 = vmatprep.subr.bf16.mxu0 %v3756
    %5062 = vmatpush1.bf16.msra.mxu0 %v3755
    %5063 = vmatprep.subr.bf16.mxu0 %v3768
    %5064 = vmatpush1.bf16.msra.mxu0 %v3767
    %5065 = vmatprep.subr.bf16.mxu0 %v3780
    %5066 = vmatpush1.bf16.msra.mxu0 %v3779
    %5067 = vmatprep.subr.bf16.mxu0 %v3792
    %5068 = vmatpush1.bf16.msra.mxu0 %v3791
    %5069 = vmatprep.subr.bf16.mxu0 %v3804
    %5070 = vmatpush1.bf16.msra.mxu0 %v3803
    %5071 = vmatprep.subr.bf16.mxu0 %v3816
    %5072 = vmatpush1.bf16.msra.mxu0 %v3815
    %5073 = vmatprep.subr.bf16.mxu0 %v3828
    %5074 = vmatpush1.bf16.msra.mxu0 %v3827
    %5075 = vmatprep.mubr.bf16.mxu0 %v186
    %5076 = vmatmul.mubr.bf16.gmra.mrb[0].mxu0 %v185
    %v5077 = vpop.f32.mrb[0].mxu0
    %v5078 = vadd.f32 %v5037, %v5077
    %v5079 = vpop.f32.mrb[0].mxu0
    %v5080 = vadd.f32 %v5039, %v5079
    %v5081 = vpop.f32.mrb[0].mxu0
    %v5082 = vpop.f32.mrb[0].mxu0
    %5083 = vdwg.mxu0
    %5084 = vmatprep.subr.bf16.mxu0 %v3840
    %5085 = vmatpush1.bf16.msra.mxu0 %v3839
    %5086 = vmatprep.subr.bf16.mxu0 %v3852
    %5087 = vmatpush1.bf16.msra.mxu0 %v3851
    %5088 = vmatprep.subr.bf16.mxu0 %v3864
    %5089 = vmatpush1.bf16.msra.mxu0 %v3863
    %5090 = vmatprep.subr.bf16.mxu0 %v3876
    %5091 = vmatpush1.bf16.msra.mxu0 %v3875
    %5092 = vmatprep.subr.bf16.mxu0 %v3888
    %5093 = vmatpush1.bf16.msra.mxu0 %v3887
    %5094 = vmatprep.subr.bf16.mxu0 %v3900
    %5095 = vmatpush1.bf16.msra.mxu0 %v3899
    %5096 = vmatprep.subr.bf16.mxu0 %v3912
    %5097 = vmatpush1.bf16.msra.mxu0 %v3911
    %5098 = vmatprep.subr.bf16.mxu0 %v3924
    %5099 = vmatpush1.bf16.msra.mxu0 %v3923
    %5100 = vmatprep.subr.bf16.mxu0 %v3936
    %5101 = vmatpush1.bf16.msra.mxu0 %v3935
    %5102 = vmatprep.subr.bf16.mxu0 %v3948
    %5103 = vmatpush1.bf16.msra.mxu0 %v3947
    %5104 = vmatprep.subr.bf16.mxu0 %v3960
    %5105 = vmatpush1.bf16.msra.mxu0 %v3959
    %5106 = vmatprep.subr.bf16.mxu0 %v3972
    %5107 = vmatpush1.bf16.msra.mxu0 %v3971
    %5108 = vmatprep.subr.bf16.mxu0 %v3984
    %5109 = vmatpush1.bf16.msra.mxu0 %v3983
    %5110 = vmatprep.subr.bf16.mxu0 %v3996
    %5111 = vmatpush1.bf16.msra.mxu0 %v3995
    %5112 = vmatprep.subr.bf16.mxu0 %v4008
    %5113 = vmatpush1.bf16.msra.mxu0 %v4007
    %5114 = vmatprep.subr.bf16.mxu0 %v4020
    %5115 = vmatpush1.bf16.msra.mxu0 %v4019
    %5116 = vmatprep.mubr.bf16.mxu0 %v188
    %5117 = vmatmul.mubr.bf16.gmra.mrb[0].mxu0 %v187
    %v5118 = vpop.f32.mrb[0].mxu0
    %v5119 = vadd.f32 %v5078, %v5118
    %v5120 = vpop.f32.mrb[0].mxu0
    %v5121 = vadd.f32 %v5080, %v5120
    %v5122 = vpop.f32.mrb[0].mxu0
    %v5123 = vpop.f32.mrb[0].mxu0
    %5124 = vdwg.mxu0
    %5125 = vmatprep.subr.bf16.mxu0 %v3266
    %5126 = vmatpush1.bf16.msra.mxu0 %v3265
    %5127 = vmatprep.subr.bf16.mxu0 %v3278
    %5128 = vmatpush1.bf16.msra.mxu0 %v3277
    %5129 = vmatprep.subr.bf16.mxu0 %v3290
    %5130 = vmatpush1.bf16.msra.mxu0 %v3289
    %5131 = vmatprep.subr.bf16.mxu0 %v3302
    %5132 = vmatpush1.bf16.msra.mxu0 %v3301
    %5133 = vmatprep.subr.bf16.mxu0 %v3314
    %5134 = vmatpush1.bf16.msra.mxu0 %v3313
    %5135 = vmatprep.subr.bf16.mxu0 %v3326
    %5136 = vmatpush1.bf16.msra.mxu0 %v3325
    %5137 = vmatprep.subr.bf16.mxu0 %v3338
    %5138 = vmatpush1.bf16.msra.mxu0 %v3337
    %5139 = vmatprep.subr.bf16.mxu0 %v3350
    %5140 = vmatpush1.bf16.msra.mxu0 %v3349
    %5141 = vmatprep.subr.bf16.mxu0 %v3362
    %5142 = vmatpush1.bf16.msra.mxu0 %v3361
    %5143 = vmatprep.subr.bf16.mxu0 %v3374
    %5144 = vmatpush1.bf16.msra.mxu0 %v3373
    %5145 = vmatprep.subr.bf16.mxu0 %v3386
    %5146 = vmatpush1.bf16.msra.mxu0 %v3385
    %5147 = vmatprep.subr.bf16.mxu0 %v3398
    %5148 = vmatpush1.bf16.msra.mxu0 %v3397
    %5149 = vmatprep.subr.bf16.mxu0 %v3410
    %5150 = vmatpush1.bf16.msra.mxu0 %v3409
    %5151 = vmatprep.subr.bf16.mxu0 %v3422
    %5152 = vmatpush1.bf16.msra.mxu0 %v3421
    %5153 = vmatprep.subr.bf16.mxu0 %v3434
    %5154 = vmatpush1.bf16.msra.mxu0 %v3433
    %5155 = vmatprep.subr.bf16.mxu0 %v3446
    %5156 = vmatpush1.bf16.msra.mxu0 %v3445
    %5157 = vmatprep.mubr.bf16.mxu0 %v182
    %5158 = vmatmul.mubr.bf16.gmra.mrb[0].mxu0 %v181
    %v5159 = vpop.f32.mrb[0].mxu0
    %v5160 = vadd.f32 0.0, %v5159
    %v5161 = vpop.f32.mrb[0].mxu0
    %v5162 = vadd.f32 0.0, %v5161
    %v5163 = vpop.f32.mrb[0].mxu0
    %v5164 = vpop.f32.mrb[0].mxu0
    %5165 = vdwg.mxu0
    %5166 = vmatprep.subr.bf16.mxu0 %v3458
    %5167 = vmatpush1.bf16.msra.mxu0 %v3457
    %5168 = vmatprep.subr.bf16.mxu0 %v3470
    %5169 = vmatpush1.bf16.msra.mxu0 %v3469
    %5170 = vmatprep.subr.bf16.mxu0 %v3482
    %5171 = vmatpush1.bf16.msra.mxu0 %v3481
    %5172 = vmatprep.subr.bf16.mxu0 %v3494
    %5173 = vmatpush1.bf16.msra.mxu0 %v3493
    %5174 = vmatprep.subr.bf16.mxu0 %v3506
    %5175 = vmatpush1.bf16.msra.mxu0 %v3505
    %5176 = vmatprep.subr.bf16.mxu0 %v3518
    %5177 = vmatpush1.bf16.msra.mxu0 %v3517
    %5178 = vmatprep.subr.bf16.mxu0 %v3530
    %5179 = vmatpush1.bf16.msra.mxu0 %v3529
    %5180 = vmatprep.subr.bf16.mxu0 %v3542
    %5181 = vmatpush1.bf16.msra.mxu0 %v3541
    %5182 = vmatprep.subr.bf16.mxu0 %v3554
    %5183 = vmatpush1.bf16.msra.mxu0 %v3553
    %5184 = vmatprep.subr.bf16.mxu0 %v3566
    %5185 = vmatpush1.bf16.msra.mxu0 %v3565
    %5186 = vmatprep.subr.bf16.mxu0 %v3578
    %5187 = vmatpush1.bf16.msra.mxu0 %v3577
    %5188 = vmatprep.subr.bf16.mxu0 %v3590
    %5189 = vmatpush1.bf16.msra.mxu0 %v3589
    %5190 = vmatprep.subr.bf16.mxu0 %v3602
    %5191 = vmatpush1.bf16.msra.mxu0 %v3601
    %5192 = vmatprep.subr.bf16.mxu0 %v3614
    %5193 = vmatpush1.bf16.msra.mxu0 %v3613
    %5194 = vmatprep.subr.bf16.mxu0 %v3626
    %5195 = vmatpush1.bf16.msra.mxu0 %v3625
    %5196 = vmatprep.subr.bf16.mxu0 %v3638
    %5197 = vmatpush1.bf16.msra.mxu0 %v3637
    %5198 = vmatprep.mubr.bf16.mxu0 %v184
    %5199 = vmatmul.mubr.bf16.gmra.mrb[0].mxu0 %v183
    %v5200 = vpop.f32.mrb[0].mxu0
    %v5201 = vadd.f32 %v5160, %v5200
    %v5202 = vpop.f32.mrb[0].mxu0
    %v5203 = vadd.f32 %v5162, %v5202
    %v5204 = vpop.f32.mrb[0].mxu0
    %v5205 = vpop.f32.mrb[0].mxu0
    %5206 = vdwg.mxu0
    %5207 = vmatprep.subr.bf16.mxu0 %v3650
    %5208 = vmatpush1.bf16.msra.mxu0 %v3649
    %5209 = vmatprep.subr.bf16.mxu0 %v3662
    %5210 = vmatpush1.bf16.msra.mxu0 %v3661
    %5211 = vmatprep.subr.bf16.mxu0 %v3674
    %5212 = vmatpush1.bf16.msra.mxu0 %v3673
    %5213 = vmatprep.subr.bf16.mxu0 %v3686
    %5214 = vmatpush1.bf16.msra.mxu0 %v3685
    %5215 = vmatprep.subr.bf16.mxu0 %v3698
    %5216 = vmatpush1.bf16.msra.mxu0 %v3697
    %5217 = vmatprep.subr.bf16.mxu0 %v3710
    %5218 = vmatpush1.bf16.msra.mxu0 %v3709
    %5219 = vmatprep.subr.bf16.mxu0 %v3722
    %5220 = vmatpush1.bf16.msra.mxu0 %v3721
    %5221 = vmatprep.subr.bf16.mxu0 %v3734
    %5222 = vmatpush1.bf16.msra.mxu0 %v3733
    %5223 = vmatprep.subr.bf16.mxu0 %v3746
    %5224 = vmatpush1.bf16.msra.mxu0 %v3745
    %5225 = vmatprep.subr.bf16.mxu0 %v3758
    %5226 = vmatpush1.bf16.msra.mxu0 %v3757
    %5227 = vmatprep.subr.bf16.mxu0 %v3770
    %5228 = vmatpush1.bf16.msra.mxu0 %v3769
    %5229 = vmatprep.subr.bf16.mxu0 %v3782
    %5230 = vmatpush1.bf16.msra.mxu0 %v3781
    %5231 = vmatprep.subr.bf16.mxu0 %v3794
    %5232 = vmatpush1.bf16.msra.mxu0 %v3793
    %5233 = vmatprep.subr.bf16.mxu0 %v3806
    %5234 = vmatpush1.bf16.msra.mxu0 %v3805
    %5235 = vmatprep.subr.bf16.mxu0 %v3818
    %5236 = vmatpush1.bf16.msra.mxu0 %v3817
    %5237 = vmatprep.subr.bf16.mxu0 %v3830
    %5238 = vmatpush1.bf16.msra.mxu0 %v3829
    %5239 = vmatprep.mubr.bf16.mxu0 %v186
    %5240 = vmatmul.mubr.bf16.gmra.mrb[0].mxu0 %v185
    %v5241 = vpop.f32.mrb[0].mxu0
    %v5242 = vadd.f32 %v5201, %v5241
    %v5243 = vpop.f32.mrb[0].mxu0
    %v5244 = vadd.f32 %v5203, %v5243
    %v5245 = vpop.f32.mrb[0].mxu0
    %v5246 = vpop.f32.mrb[0].mxu0
    %5247 = vdwg.mxu0
    %5248 = vmatprep.subr.bf16.mxu0 %v3842
    %5249 = vmatpush1.bf16.msra.mxu0 %v3841
    %5250 = vmatprep.subr.bf16.mxu0 %v3854
    %5251 = vmatpush1.bf16.msra.mxu0 %v3853
    %5252 = vmatprep.subr.bf16.mxu0 %v3866
    %5253 = vmatpush1.bf16.msra.mxu0 %v3865
    %5254 = vmatprep.subr.bf16.mxu0 %v3878
    %5255 = vmatpush1.bf16.msra.mxu0 %v3877
    %5256 = vmatprep.subr.bf16.mxu0 %v3890
    %5257 = vmatpush1.bf16.msra.mxu0 %v3889
    %5258 = vmatprep.subr.bf16.mxu0 %v3902
    %5259 = vmatpush1.bf16.msra.mxu0 %v3901
    %5260 = vmatprep.subr.bf16.mxu0 %v3914
    %5261 = vmatpush1.bf16.msra.mxu0 %v3913
    %5262 = vmatprep.subr.bf16.mxu0 %v3926
    %5263 = vmatpush1.bf16.msra.mxu0 %v3925
    %5264 = vmatprep.subr.bf16.mxu0 %v3938
    %5265 = vmatpush1.bf16.msra.mxu0 %v3937
    %5266 = vmatprep.subr.bf16.mxu0 %v3950
    %5267 = vmatpush1.bf16.msra.mxu0 %v3949
    %5268 = vmatprep.subr.bf16.mxu0 %v3962
    %5269 = vmatpush1.bf16.msra.mxu0 %v3961
    %5270 = vmatprep.subr.bf16.mxu0 %v3974
    %5271 = vmatpush1.bf16.msra.mxu0 %v3973
    %5272 = vmatprep.subr.bf16.mxu0 %v3986
    %5273 = vmatpush1.bf16.msra.mxu0 %v3985
    %5274 = vmatprep.subr.bf16.mxu0 %v3998
    %5275 = vmatpush1.bf16.msra.mxu0 %v3997
    %5276 = vmatprep.subr.bf16.mxu0 %v4010
    %5277 = vmatpush1.bf16.msra.mxu0 %v4009
    %5278 = vmatprep.subr.bf16.mxu0 %v4022
    %5279 = vmatpush1.bf16.msra.mxu0 %v4021
    %5280 = vmatprep.mubr.bf16.mxu0 %v188
    %5281 = vmatmul.mubr.bf16.gmra.mrb[0].mxu0 %v187
    %v5282 = vpop.f32.mrb[0].mxu0
    %v5283 = vadd.f32 %v5242, %v5282
    %v5284 = vpop.f32.mrb[0].mxu0
    %v5285 = vadd.f32 %v5244, %v5284
    %v5286 = vpop.f32.mrb[0].mxu0
    %v5287 = vpop.f32.mrb[0].mxu0
    %5288 = vdwg.mxu0
    %5289 = vmatprep.subr.bf16.mxu0 %v3268
    %5290 = vmatpush1.bf16.msra.mxu0 %v3267
    %5291 = vmatprep.subr.bf16.mxu0 %v3280
    %5292 = vmatpush1.bf16.msra.mxu0 %v3279
    %5293 = vmatprep.subr.bf16.mxu0 %v3292
    %5294 = vmatpush1.bf16.msra.mxu0 %v3291
    %5295 = vmatprep.subr.bf16.mxu0 %v3304
    %5296 = vmatpush1.bf16.msra.mxu0 %v3303
    %5297 = vmatprep.subr.bf16.mxu0 %v3316
    %5298 = vmatpush1.bf16.msra.mxu0 %v3315
    %5299 = vmatprep.subr.bf16.mxu0 %v3328
    %5300 = vmatpush1.bf16.msra.mxu0 %v3327
    %5301 = vmatprep.subr.bf16.mxu0 %v3340
    %5302 = vmatpush1.bf16.msra.mxu0 %v3339
    %5303 = vmatprep.subr.bf16.mxu0 %v3352
    %5304 = vmatpush1.bf16.msra.mxu0 %v3351
    %5305 = vmatprep.subr.bf16.mxu0 %v3364
    %5306 = vmatpush1.bf16.msra.mxu0 %v3363
    %5307 = vmatprep.subr.bf16.mxu0 %v3376
    %5308 = vmatpush1.bf16.msra.mxu0 %v3375
    %5309 = vmatprep.subr.bf16.mxu0 %v3388
    %5310 = vmatpush1.bf16.msra.mxu0 %v3387
    %5311 = vmatprep.subr.bf16.mxu0 %v3400
    %5312 = vmatpush1.bf16.msra.mxu0 %v3399
    %5313 = vmatprep.subr.bf16.mxu0 %v3412
    %5314 = vmatpush1.bf16.msra.mxu0 %v3411
    %5315 = vmatprep.subr.bf16.mxu0 %v3424
    %5316 = vmatpush1.bf16.msra.mxu0 %v3423
    %5317 = vmatprep.subr.bf16.mxu0 %v3436
    %5318 = vmatpush1.bf16.msra.mxu0 %v3435
    %5319 = vmatprep.subr.bf16.mxu0 %v3448
    %5320 = vmatpush1.bf16.msra.mxu0 %v3447
    %5321 = vmatprep.mubr.bf16.mxu0 %v182
    %5322 = vmatmul.mubr.bf16.gmra.mrb[0].mxu0 %v181
    %v5323 = vpop.f32.mrb[0].mxu0
    %v5324 = vadd.f32 0.0, %v5323
    %v5325 = vpop.f32.mrb[0].mxu0
    %v5326 = vadd.f32 0.0, %v5325
    %v5327 = vpop.f32.mrb[0].mxu0
    %v5328 = vpop.f32.mrb[0].mxu0
    %5329 = vdwg.mxu0
    %5330 = vmatprep.subr.bf16.mxu0 %v3460
    %5331 = vmatpush1.bf16.msra.mxu0 %v3459
    %5332 = vmatprep.subr.bf16.mxu0 %v3472
    %5333 = vmatpush1.bf16.msra.mxu0 %v3471
    %5334 = vmatprep.subr.bf16.mxu0 %v3484
    %5335 = vmatpush1.bf16.msra.mxu0 %v3483
    %5336 = vmatprep.subr.bf16.mxu0 %v3496
    %5337 = vmatpush1.bf16.msra.mxu0 %v3495
    %5338 = vmatprep.subr.bf16.mxu0 %v3508
    %5339 = vmatpush1.bf16.msra.mxu0 %v3507
    %5340 = vmatprep.subr.bf16.mxu0 %v3520
    %5341 = vmatpush1.bf16.msra.mxu0 %v3519
    %5342 = vmatprep.subr.bf16.mxu0 %v3532
    %5343 = vmatpush1.bf16.msra.mxu0 %v3531
    %5344 = vmatprep.subr.bf16.mxu0 %v3544
    %5345 = vmatpush1.bf16.msra.mxu0 %v3543
    %5346 = vmatprep.subr.bf16.mxu0 %v3556
    %5347 = vmatpush1.bf16.msra.mxu0 %v3555
    %5348 = vmatprep.subr.bf16.mxu0 %v3568
    %5349 = vmatpush1.bf16.msra.mxu0 %v3567
    %5350 = vmatprep.subr.bf16.mxu0 %v3580
    %5351 = vmatpush1.bf16.msra.mxu0 %v3579
    %5352 = vmatprep.subr.bf16.mxu0 %v3592
    %5353 = vmatpush1.bf16.msra.mxu0 %v3591
    %5354 = vmatprep.subr.bf16.mxu0 %v3604
    %5355 = vmatpush1.bf16.msra.mxu0 %v3603
    %5356 = vmatprep.subr.bf16.mxu0 %v3616
    %5357 = vmatpush1.bf16.msra.mxu0 %v3615
    %5358 = vmatprep.subr.bf16.mxu0 %v3628
    %5359 = vmatpush1.bf16.msra.mxu0 %v3627
    %5360 = vmatprep.subr.bf16.mxu0 %v3640
    %5361 = vmatpush1.bf16.msra.mxu0 %v3639
    %5362 = vmatprep.mubr.bf16.mxu0 %v184
    %5363 = vmatmul.mubr.bf16.gmra.mrb[0].mxu0 %v183
    %v5364 = vpop.f32.mrb[0].mxu0
    %v5365 = vadd.f32 %v5324, %v5364
    %v5366 = vpop.f32.mrb[0].mxu0
    %v5367 = vadd.f32 %v5326, %v5366
    %v5368 = vpop.f32.mrb[0].mxu0
    %v5369 = vpop.f32.mrb[0].mxu0
    %5370 = vdwg.mxu0
    %5371 = vmatprep.subr.bf16.mxu0 %v3652
    %5372 = vmatpush1.bf16.msra.mxu0 %v3651
    %5373 = vmatprep.subr.bf16.mxu0 %v3664
    %5374 = vmatpush1.bf16.msra.mxu0 %v3663
    %5375 = vmatprep.subr.bf16.mxu0 %v3676
    %5376 = vmatpush1.bf16.msra.mxu0 %v3675
    %5377 = vmatprep.subr.bf16.mxu0 %v3688
    %5378 = vmatpush1.bf16.msra.mxu0 %v3687
    %5379 = vmatprep.subr.bf16.mxu0 %v3700
    %5380 = vmatpush1.bf16.msra.mxu0 %v3699
    %5381 = vmatprep.subr.bf16.mxu0 %v3712
    %5382 = vmatpush1.bf16.msra.mxu0 %v3711
    %5383 = vmatprep.subr.bf16.mxu0 %v3724
    %5384 = vmatpush1.bf16.msra.mxu0 %v3723
    %5385 = vmatprep.subr.bf16.mxu0 %v3736
    %5386 = vmatpush1.bf16.msra.mxu0 %v3735
    %5387 = vmatprep.subr.bf16.mxu0 %v3748
    %5388 = vmatpush1.bf16.msra.mxu0 %v3747
    %5389 = vmatprep.subr.bf16.mxu0 %v3760
    %5390 = vmatpush1.bf16.msra.mxu0 %v3759
    %5391 = vmatprep.subr.bf16.mxu0 %v3772
    %5392 = vmatpush1.bf16.msra.mxu0 %v3771
    %5393 = vmatprep.subr.bf16.mxu0 %v3784
    %5394 = vmatpush1.bf16.msra.mxu0 %v3783
    %5395 = vmatprep.subr.bf16.mxu0 %v3796
    %5396 = vmatpush1.bf16.msra.mxu0 %v3795
    %5397 = vmatprep.subr.bf16.mxu0 %v3808
    %5398 = vmatpush1.bf16.msra.mxu0 %v3807
    %5399 = vmatprep.subr.bf16.mxu0 %v3820
    %5400 = vmatpush1.bf16.msra.mxu0 %v3819
    %5401 = vmatprep.subr.bf16.mxu0 %v3832
    %5402 = vmatpush1.bf16.msra.mxu0 %v3831
    %5403 = vmatprep.mubr.bf16.mxu0 %v186
    %5404 = vmatmul.mubr.bf16.gmra.mrb[0].mxu0 %v185
    %v5405 = vpop.f32.mrb[0].mxu0
    %v5406 = vadd.f32 %v5365, %v5405
    %v5407 = vpop.f32.mrb[0].mxu0
    %v5408 = vadd.f32 %v5367, %v5407
    %v5409 = vpop.f32.mrb[0].mxu0
    %v5410 = vpop.f32.mrb[0].mxu0
    %5411 = vdwg.mxu0
    %5412 = vmatprep.subr.bf16.mxu0 %v3844
    %5413 = vmatpush1.bf16.msra.mxu0 %v3843
    %5414 = vmatprep.subr.bf16.mxu0 %v3856
    %5415 = vmatpush1.bf16.msra.mxu0 %v3855
    %5416 = vmatprep.subr.bf16.mxu0 %v3868
    %5417 = vmatpush1.bf16.msra.mxu0 %v3867
    %5418 = vmatprep.subr.bf16.mxu0 %v3880
    %5419 = vmatpush1.bf16.msra.mxu0 %v3879
    %5420 = vmatprep.subr.bf16.mxu0 %v3892
    %5421 = vmatpush1.bf16.msra.mxu0 %v3891
    %5422 = vmatprep.subr.bf16.mxu0 %v3904
    %5423 = vmatpush1.bf16.msra.mxu0 %v3903
    %5424 = vmatprep.subr.bf16.mxu0 %v3916
    %5425 = vmatpush1.bf16.msra.mxu0 %v3915
    %5426 = vmatprep.subr.bf16.mxu0 %v3928
    %5427 = vmatpush1.bf16.msra.mxu0 %v3927
    %5428 = vmatprep.subr.bf16.mxu0 %v3940
    %5429 = vmatpush1.bf16.msra.mxu0 %v3939
    %5430 = vmatprep.subr.bf16.mxu0 %v3952
    %5431 = vmatpush1.bf16.msra.mxu0 %v3951
    %5432 = vmatprep.subr.bf16.mxu0 %v3964
    %5433 = vmatpush1.bf16.msra.mxu0 %v3963
    %5434 = vmatprep.subr.bf16.mxu0 %v3976
    %5435 = vmatpush1.bf16.msra.mxu0 %v3975
    %5436 = vmatprep.subr.bf16.mxu0 %v3988
    %5437 = vmatpush1.bf16.msra.mxu0 %v3987
    %5438 = vmatprep.subr.bf16.mxu0 %v4000
    %5439 = vmatpush1.bf16.msra.mxu0 %v3999
    %5440 = vmatprep.subr.bf16.mxu0 %v4012
    %5441 = vmatpush1.bf16.msra.mxu0 %v4011
    %5442 = vmatprep.subr.bf16.mxu0 %v4024
    %5443 = vmatpush1.bf16.msra.mxu0 %v4023
    %5444 = vmatprep.mubr.bf16.mxu0 %v188
    %5445 = vmatmul.mubr.bf16.gmra.mrb[0].mxu0 %v187
    %v5446 = vpop.f32.mrb[0].mxu0
    %v5447 = vadd.f32 %v5406, %v5446
    %v5448 = vpop.f32.mrb[0].mxu0
    %v5449 = vadd.f32 %v5408, %v5448
    %v5450 = vpop.f32.mrb[0].mxu0
    %v5451 = vpop.f32.mrb[0].mxu0
    %5452 = vdwg.mxu0
    %5453 = vmatprep.subr.bf16.mxu0 %v3270
    %5454 = vmatpush1.bf16.msra.mxu0 %v3269
    %5455 = vmatprep.subr.bf16.mxu0 %v3282
    %5456 = vmatpush1.bf16.msra.mxu0 %v3281
    %5457 = vmatprep.subr.bf16.mxu0 %v3294
    %5458 = vmatpush1.bf16.msra.mxu0 %v3293
    %5459 = vmatprep.subr.bf16.mxu0 %v3306
    %5460 = vmatpush1.bf16.msra.mxu0 %v3305
    %5461 = vmatprep.subr.bf16.mxu0 %v3318
    %5462 = vmatpush1.bf16.msra.mxu0 %v3317
    %5463 = vmatprep.subr.bf16.mxu0 %v3330
    %5464 = vmatpush1.bf16.msra.mxu0 %v3329
    %5465 = vmatprep.subr.bf16.mxu0 %v3342
    %5466 = vmatpush1.bf16.msra.mxu0 %v3341
    %5467 = vmatprep.subr.bf16.mxu0 %v3354
    %5468 = vmatpush1.bf16.msra.mxu0 %v3353
    %5469 = vmatprep.subr.bf16.mxu0 %v3366
    %5470 = vmatpush1.bf16.msra.mxu0 %v3365
    %5471 = vmatprep.subr.bf16.mxu0 %v3378
    %5472 = vmatpush1.bf16.msra.mxu0 %v3377
    %5473 = vmatprep.subr.bf16.mxu0 %v3390
    %5474 = vmatpush1.bf16.msra.mxu0 %v3389
    %5475 = vmatprep.subr.bf16.mxu0 %v3402
    %5476 = vmatpush1.bf16.msra.mxu0 %v3401
    %5477 = vmatprep.subr.bf16.mxu0 %v3414
    %5478 = vmatpush1.bf16.msra.mxu0 %v3413
    %5479 = vmatprep.subr.bf16.mxu0 %v3426
    %5480 = vmatpush1.bf16.msra.mxu0 %v3425
    %5481 = vmatprep.subr.bf16.mxu0 %v3438
    %5482 = vmatpush1.bf16.msra.mxu0 %v3437
    %5483 = vmatprep.subr.bf16.mxu0 %v3450
    %5484 = vmatpush1.bf16.msra.mxu0 %v3449
    %5485 = vmatprep.mubr.bf16.mxu0 %v182
    %5486 = vmatmul.mubr.bf16.gmra.mrb[0].mxu0 %v181
    %v5487 = vpop.f32.mrb[0].mxu0
    %v5488 = vadd.f32 0.0, %v5487
    %v5489 = vpop.f32.mrb[0].mxu0
    %v5490 = vadd.f32 0.0, %v5489
    %v5491 = vpop.f32.mrb[0].mxu0
    %v5492 = vpop.f32.mrb[0].mxu0
    %5493 = vdwg.mxu0
    %5494 = vmatprep.subr.bf16.mxu0 %v3462
    %5495 = vmatpush1.bf16.msra.mxu0 %v3461
    %5496 = vmatprep.subr.bf16.mxu0 %v3474
    %5497 = vmatpush1.bf16.msra.mxu0 %v3473
    %5498 = vmatprep.subr.bf16.mxu0 %v3486
    %5499 = vmatpush1.bf16.msra.mxu0 %v3485
    %5500 = vmatprep.subr.bf16.mxu0 %v3498
    %5501 = vmatpush1.bf16.msra.mxu0 %v3497
    %5502 = vmatprep.subr.bf16.mxu0 %v3510
    %5503 = vmatpush1.bf16.msra.mxu0 %v3509
    %5504 = vmatprep.subr.bf16.mxu0 %v3522
    %5505 = vmatpush1.bf16.msra.mxu0 %v3521
    %5506 = vmatprep.subr.bf16.mxu0 %v3534
    %5507 = vmatpush1.bf16.msra.mxu0 %v3533
    %5508 = vmatprep.subr.bf16.mxu0 %v3546
    %5509 = vmatpush1.bf16.msra.mxu0 %v3545
    %5510 = vmatprep.subr.bf16.mxu0 %v3558
    %5511 = vmatpush1.bf16.msra.mxu0 %v3557
    %5512 = vmatprep.subr.bf16.mxu0 %v3570
    %5513 = vmatpush1.bf16.msra.mxu0 %v3569
    %5514 = vmatprep.subr.bf16.mxu0 %v3582
    %5515 = vmatpush1.bf16.msra.mxu0 %v3581
    %5516 = vmatprep.subr.bf16.mxu0 %v3594
    %5517 = vmatpush1.bf16.msra.mxu0 %v3593
    %5518 = vmatprep.subr.bf16.mxu0 %v3606
    %5519 = vmatpush1.bf16.msra.mxu0 %v3605
    %5520 = vmatprep.subr.bf16.mxu0 %v3618
    %5521 = vmatpush1.bf16.msra.mxu0 %v3617
    %5522 = vmatprep.subr.bf16.mxu0 %v3630
    %5523 = vmatpush1.bf16.msra.mxu0 %v3629
    %5524 = vmatprep.subr.bf16.mxu0 %v3642
    %5525 = vmatpush1.bf16.msra.mxu0 %v3641
    %5526 = vmatprep.mubr.bf16.mxu0 %v184
    %5527 = vmatmul.mubr.bf16.gmra.mrb[0].mxu0 %v183
    %v5528 = vpop.f32.mrb[0].mxu0
    %v5529 = vadd.f32 %v5488, %v5528
    %v5530 = vpop.f32.mrb[0].mxu0
    %v5531 = vadd.f32 %v5490, %v5530
    %v5532 = vpop.f32.mrb[0].mxu0
    %v5533 = vpop.f32.mrb[0].mxu0
    %5534 = vdwg.mxu0
    %5535 = vmatprep.subr.bf16.mxu0 %v3654
    %5536 = vmatpush1.bf16.msra.mxu0 %v3653
    %5537 = vmatprep.subr.bf16.mxu0 %v3666
    %5538 = vmatpush1.bf16.msra.mxu0 %v3665
    %5539 = vmatprep.subr.bf16.mxu0 %v3678
    %5540 = vmatpush1.bf16.msra.mxu0 %v3677
    %5541 = vmatprep.subr.bf16.mxu0 %v3690
    %5542 = vmatpush1.bf16.msra.mxu0 %v3689
    %5543 = vmatprep.subr.bf16.mxu0 %v3702
    %5544 = vmatpush1.bf16.msra.mxu0 %v3701
    %5545 = vmatprep.subr.bf16.mxu0 %v3714
    %5546 = vmatpush1.bf16.msra.mxu0 %v3713
    %5547 = vmatprep.subr.bf16.mxu0 %v3726
    %5548 = vmatpush1.bf16.msra.mxu0 %v3725
    %5549 = vmatprep.subr.bf16.mxu0 %v3738
    %5550 = vmatpush1.bf16.msra.mxu0 %v3737
    %5551 = vmatprep.subr.bf16.mxu0 %v3750
    %5552 = vmatpush1.bf16.msra.mxu0 %v3749
    %5553 = vmatprep.subr.bf16.mxu0 %v3762
    %5554 = vmatpush1.bf16.msra.mxu0 %v3761
    %5555 = vmatprep.subr.bf16.mxu0 %v3774
    %5556 = vmatpush1.bf16.msra.mxu0 %v3773
    %5557 = vmatprep.subr.bf16.mxu0 %v3786
    %5558 = vmatpush1.bf16.msra.mxu0 %v3785
    %5559 = vmatprep.subr.bf16.mxu0 %v3798
    %5560 = vmatpush1.bf16.msra.mxu0 %v3797
    %5561 = vmatprep.subr.bf16.mxu0 %v3810
    %5562 = vmatpush1.bf16.msra.mxu0 %v3809
    %5563 = vmatprep.subr.bf16.mxu0 %v3822
    %5564 = vmatpush1.bf16.msra.mxu0 %v3821
    %5565 = vmatprep.subr.bf16.mxu0 %v3834
    %5566 = vmatpush1.bf16.msra.mxu0 %v3833
    %5567 = vmatprep.mubr.bf16.mxu0 %v186
    %5568 = vmatmul.mubr.bf16.gmra.mrb[0].mxu0 %v185
    %v5569 = vpop.f32.mrb[0].mxu0
    %v5570 = vadd.f32 %v5529, %v5569
    %v5571 = vpop.f32.mrb[0].mxu0
    %v5572 = vadd.f32 %v5531, %v5571
    %v5573 = vpop.f32.mrb[0].mxu0
    %v5574 = vpop.f32.mrb[0].mxu0
    %5575 = vdwg.mxu0
    %5576 = vmatprep.subr.bf16.mxu0 %v3846
    %5577 = vmatpush1.bf16.msra.mxu0 %v3845
    %5578 = vmatprep.subr.bf16.mxu0 %v3858
    %5579 = vmatpush1.bf16.msra.mxu0 %v3857
    %5580 = vmatprep.subr.bf16.mxu0 %v3870
    %5581 = vmatpush1.bf16.msra.mxu0 %v3869
    %5582 = vmatprep.subr.bf16.mxu0 %v3882
    %5583 = vmatpush1.bf16.msra.mxu0 %v3881
    %5584 = vmatprep.subr.bf16.mxu0 %v3894
    %5585 = vmatpush1.bf16.msra.mxu0 %v3893
    %5586 = vmatprep.subr.bf16.mxu0 %v3906
    %5587 = vmatpush1.bf16.msra.mxu0 %v3905
    %5588 = vmatprep.subr.bf16.mxu0 %v3918
    %5589 = vmatpush1.bf16.msra.mxu0 %v3917
    %5590 = vmatprep.subr.bf16.mxu0 %v3930
    %5591 = vmatpush1.bf16.msra.mxu0 %v3929
    %5592 = vmatprep.subr.bf16.mxu0 %v3942
    %5593 = vmatpush1.bf16.msra.mxu0 %v3941
    %5594 = vmatprep.subr.bf16.mxu0 %v3954
    %5595 = vmatpush1.bf16.msra.mxu0 %v3953
    %5596 = vmatprep.subr.bf16.mxu0 %v3966
    %5597 = vmatpush1.bf16.msra.mxu0 %v3965
    %5598 = vmatprep.subr.bf16.mxu0 %v3978
    %5599 = vmatpush1.bf16.msra.mxu0 %v3977
    %5600 = vmatprep.subr.bf16.mxu0 %v3990
    %5601 = vmatpush1.bf16.msra.mxu0 %v3989
    %5602 = vmatprep.subr.bf16.mxu0 %v4002
    %5603 = vmatpush1.bf16.msra.mxu0 %v4001
    %5604 = vmatprep.subr.bf16.mxu0 %v4014
    %5605 = vmatpush1.bf16.msra.mxu0 %v4013
    %5606 = vmatprep.subr.bf16.mxu0 %v4026
    %5607 = vmatpush1.bf16.msra.mxu0 %v4025
    %5608 = vmatprep.mubr.bf16.mxu0 %v188
    %5609 = vmatmul.mubr.bf16.gmra.mrb[0].mxu0 %v187
    %v5610 = vpop.f32.mrb[0].mxu0
    %v5611 = vadd.f32 %v5570, %v5610
    %v5612 = vpop.f32.mrb[0].mxu0
    %v5613 = vadd.f32 %v5572, %v5612
    %v5614 = vpop.f32.mrb[0].mxu0
    %v5615 = vpop.f32.mrb[0].mxu0
    %5616 = vdwg.mxu0
    %5617 = vmatprep.subr.bf16.mxu0 %v3272
    %5618 = vmatpush1.bf16.msra.mxu0 %v3271
    %5619 = vmatprep.subr.bf16.mxu0 %v3284
    %5620 = vmatpush1.bf16.msra.mxu0 %v3283
    %5621 = vmatprep.subr.bf16.mxu0 %v3296
    %5622 = vmatpush1.bf16.msra.mxu0 %v3295
    %5623 = vmatprep.subr.bf16.mxu0 %v3308
    %5624 = vmatpush1.bf16.msra.mxu0 %v3307
    %5625 = vmatprep.subr.bf16.mxu0 %v3320
    %5626 = vmatpush1.bf16.msra.mxu0 %v3319
    %5627 = vmatprep.subr.bf16.mxu0 %v3332
    %5628 = vmatpush1.bf16.msra.mxu0 %v3331
    %5629 = vmatprep.subr.bf16.mxu0 %v3344
    %5630 = vmatpush1.bf16.msra.mxu0 %v3343
    %5631 = vmatprep.subr.bf16.mxu0 %v3356
    %5632 = vmatpush1.bf16.msra.mxu0 %v3355
    %5633 = vmatprep.subr.bf16.mxu0 %v3368
    %5634 = vmatpush1.bf16.msra.mxu0 %v3367
    %5635 = vmatprep.subr.bf16.mxu0 %v3380
    %5636 = vmatpush1.bf16.msra.mxu0 %v3379
    %5637 = vmatprep.subr.bf16.mxu0 %v3392
    %5638 = vmatpush1.bf16.msra.mxu0 %v3391
    %5639 = vmatprep.subr.bf16.mxu0 %v3404
    %5640 = vmatpush1.bf16.msra.mxu0 %v3403
    %5641 = vmatprep.subr.bf16.mxu0 %v3416
    %5642 = vmatpush1.bf16.msra.mxu0 %v3415
    %5643 = vmatprep.subr.bf16.mxu0 %v3428
    %5644 = vmatpush1.bf16.msra.mxu0 %v3427
    %5645 = vmatprep.subr.bf16.mxu0 %v3440
    %5646 = vmatpush1.bf16.msra.mxu0 %v3439
    %5647 = vmatprep.subr.bf16.mxu0 %v3452
    %5648 = vmatpush1.bf16.msra.mxu0 %v3451
    %5649 = vmatprep.mubr.bf16.mxu0 %v182
    %5650 = vmatmul.mubr.bf16.gmra.mrb[0].mxu0 %v181
    %v5651 = vpop.f32.mrb[0].mxu0
    %v5652 = vadd.f32 0.0, %v5651
    %v5653 = vpop.f32.mrb[0].mxu0
    %v5654 = vadd.f32 0.0, %v5653
    %v5655 = vpop.f32.mrb[0].mxu0
    %v5656 = vpop.f32.mrb[0].mxu0
    %5657 = vdwg.mxu0
    %5658 = vmatprep.subr.bf16.mxu0 %v3464
    %5659 = vmatpush1.bf16.msra.mxu0 %v3463
    %5660 = vmatprep.subr.bf16.mxu0 %v3476
    %5661 = vmatpush1.bf16.msra.mxu0 %v3475
    %5662 = vmatprep.subr.bf16.mxu0 %v3488
    %5663 = vmatpush1.bf16.msra.mxu0 %v3487
    %5664 = vmatprep.subr.bf16.mxu0 %v3500
    %5665 = vmatpush1.bf16.msra.mxu0 %v3499
    %5666 = vmatprep.subr.bf16.mxu0 %v3512
    %5667 = vmatpush1.bf16.msra.mxu0 %v3511
    %5668 = vmatprep.subr.bf16.mxu0 %v3524
    %5669 = vmatpush1.bf16.msra.mxu0 %v3523
    %5670 = vmatprep.subr.bf16.mxu0 %v3536
    %5671 = vmatpush1.bf16.msra.mxu0 %v3535
    %5672 = vmatprep.subr.bf16.mxu0 %v3548
    %5673 = vmatpush1.bf16.msra.mxu0 %v3547
    %5674 = vmatprep.subr.bf16.mxu0 %v3560
    %5675 = vmatpush1.bf16.msra.mxu0 %v3559
    %5676 = vmatprep.subr.bf16.mxu0 %v3572
    %5677 = vmatpush1.bf16.msra.mxu0 %v3571
    %5678 = vmatprep.subr.bf16.mxu0 %v3584
    %5679 = vmatpush1.bf16.msra.mxu0 %v3583
    %5680 = vmatprep.subr.bf16.mxu0 %v3596
    %5681 = vmatpush1.bf16.msra.mxu0 %v3595
    %5682 = vmatprep.subr.bf16.mxu0 %v3608
    %5683 = vmatpush1.bf16.msra.mxu0 %v3607
    %5684 = vmatprep.subr.bf16.mxu0 %v3620
    %5685 = vmatpush1.bf16.msra.mxu0 %v3619
    %5686 = vmatprep.subr.bf16.mxu0 %v3632
    %5687 = vmatpush1.bf16.msra.mxu0 %v3631
    %5688 = vmatprep.subr.bf16.mxu0 %v3644
    %5689 = vmatpush1.bf16.msra.mxu0 %v3643
    %5690 = vmatprep.mubr.bf16.mxu0 %v184
    %5691 = vmatmul.mubr.bf16.gmra.mrb[0].mxu0 %v183
    %v5692 = vpop.f32.mrb[0].mxu0
    %v5693 = vadd.f32 %v5652, %v5692
    %v5694 = vpop.f32.mrb[0].mxu0
    %v5695 = vadd.f32 %v5654, %v5694
    %v5696 = vpop.f32.mrb[0].mxu0
    %v5697 = vpop.f32.mrb[0].mxu0
    %5698 = vdwg.mxu0
    %5699 = vmatprep.subr.bf16.mxu0 %v3656
    %5700 = vmatpush1.bf16.msra.mxu0 %v3655
    %5701 = vmatprep.subr.bf16.mxu0 %v3668
    %5702 = vmatpush1.bf16.msra.mxu0 %v3667
    %5703 = vmatprep.subr.bf16.mxu0 %v3680
    %5704 = vmatpush1.bf16.msra.mxu0 %v3679
    %5705 = vmatprep.subr.bf16.mxu0 %v3692
    %5706 = vmatpush1.bf16.msra.mxu0 %v3691
    %5707 = vmatprep.subr.bf16.mxu0 %v3704
    %5708 = vmatpush1.bf16.msra.mxu0 %v3703
    %5709 = vmatprep.subr.bf16.mxu0 %v3716
    %5710 = vmatpush1.bf16.msra.mxu0 %v3715
    %5711 = vmatprep.subr.bf16.mxu0 %v3728
    %5712 = vmatpush1.bf16.msra.mxu0 %v3727
    %5713 = vmatprep.subr.bf16.mxu0 %v3740
    %5714 = vmatpush1.bf16.msra.mxu0 %v3739
    %5715 = vmatprep.subr.bf16.mxu0 %v3752
    %5716 = vmatpush1.bf16.msra.mxu0 %v3751
    %5717 = vmatprep.subr.bf16.mxu0 %v3764
    %5718 = vmatpush1.bf16.msra.mxu0 %v3763
    %5719 = vmatprep.subr.bf16.mxu0 %v3776
    %5720 = vmatpush1.bf16.msra.mxu0 %v3775
    %5721 = vmatprep.subr.bf16.mxu0 %v3788
    %5722 = vmatpush1.bf16.msra.mxu0 %v3787
    %5723 = vmatprep.subr.bf16.mxu0 %v3800
    %5724 = vmatpush1.bf16.msra.mxu0 %v3799
    %5725 = vmatprep.subr.bf16.mxu0 %v3812
    %5726 = vmatpush1.bf16.msra.mxu0 %v3811
    %5727 = vmatprep.subr.bf16.mxu0 %v3824
    %5728 = vmatpush1.bf16.msra.mxu0 %v3823
    %5729 = vmatprep.subr.bf16.mxu0 %v3836
    %5730 = vmatpush1.bf16.msra.mxu0 %v3835
    %5731 = vmatprep.mubr.bf16.mxu0 %v186
    %5732 = vmatmul.mubr.bf16.gmra.mrb[0].mxu0 %v185
    %v5733 = vpop.f32.mrb[0].mxu0
    %v5734 = vadd.f32 %v5693, %v5733
    %v5735 = vpop.f32.mrb[0].mxu0
    %v5736 = vadd.f32 %v5695, %v5735
    %v5737 = vpop.f32.mrb[0].mxu0
    %v5738 = vpop.f32.mrb[0].mxu0
    %5739 = vdwg.mxu0
    %5740 = vmatprep.subr.bf16.mxu0 %v3848
    %5741 = vmatpush1.bf16.msra.mxu0 %v3847
    %5742 = vmatprep.subr.bf16.mxu0 %v3860
    %5743 = vmatpush1.bf16.msra.mxu0 %v3859
    %5744 = vmatprep.subr.bf16.mxu0 %v3872
    %5745 = vmatpush1.bf16.msra.mxu0 %v3871
    %5746 = vmatprep.subr.bf16.mxu0 %v3884
    %5747 = vmatpush1.bf16.msra.mxu0 %v3883
    %5748 = vmatprep.subr.bf16.mxu0 %v3896
    %5749 = vmatpush1.bf16.msra.mxu0 %v3895
    %5750 = vmatprep.subr.bf16.mxu0 %v3908
    %5751 = vmatpush1.bf16.msra.mxu0 %v3907
    %5752 = vmatprep.subr.bf16.mxu0 %v3920
    %5753 = vmatpush1.bf16.msra.mxu0 %v3919
    %5754 = vmatprep.subr.bf16.mxu0 %v3932
    %5755 = vmatpush1.bf16.msra.mxu0 %v3931
    %5756 = vmatprep.subr.bf16.mxu0 %v3944
    %5757 = vmatpush1.bf16.msra.mxu0 %v3943
    %5758 = vmatprep.subr.bf16.mxu0 %v3956
    %5759 = vmatpush1.bf16.msra.mxu0 %v3955
    %5760 = vmatprep.subr.bf16.mxu0 %v3968
    %5761 = vmatpush1.bf16.msra.mxu0 %v3967
    %5762 = vmatprep.subr.bf16.mxu0 %v3980
    %5763 = vmatpush1.bf16.msra.mxu0 %v3979
    %5764 = vmatprep.subr.bf16.mxu0 %v3992
    %5765 = vmatpush1.bf16.msra.mxu0 %v3991
    %5766 = vmatprep.subr.bf16.mxu0 %v4004
    %5767 = vmatpush1.bf16.msra.mxu0 %v4003
    %5768 = vmatprep.subr.bf16.mxu0 %v4016
    %5769 = vmatpush1.bf16.msra.mxu0 %v4015
    %5770 = vmatprep.subr.bf16.mxu0 %v4028
    %5771 = vmatpush1.bf16.msra.mxu0 %v4027
    %5772 = vmatprep.mubr.bf16.mxu0 %v188
    %5773 = vmatmul.mubr.bf16.gmra.mrb[0].mxu0 %v187
    %v5774 = vpop.f32.mrb[0].mxu0
    %v5775 = vadd.f32 %v5734, %v5774
    %v5776 = vpop.f32.mrb[0].mxu0
    %v5777 = vadd.f32 %v5736, %v5776
    %v5778 = vpop.f32.mrb[0].mxu0
    %v5779 = vpop.f32.mrb[0].mxu0
    %5780 = vdwg.mxu0
    %v5781 = vmax.f32 %v4955, %v5121
    %v5782 = vmax.f32 %v4957, %v5283
    %v5783 = vmax.f32 %v5119, %v5285
    %v5784 = vmax.f32 %v5447, %v5613
    %v5785 = vmax.f32 %v5449, %v5775
    %v5786 = vmax.f32 %v5611, %v5777
    %v5787 = vmax.f32 %v5781, %v5784
    %v5788 = vmax.f32 %v5782, %v5785
    %v5789 = vmax.f32 %v5783, %v5786
    %v5790 = vld [vmem:[#allocation5] sm:$0x7]
    %v5792 = vlaneseq
    %v5793 = vshrl.u32 %v5792, 7
    %v5794 = vsub.s32 0, %v5793
    %v5795 = vrot.slane %v5790, %v5794
    %v5796 = vlaneseq
    %v5797 = vshrl.u32 %v5796, 7
    %v5798 = vsub.s32 1, %v5797
    %v5799 = vrot.slane %v5790, %v5798
    %v5800 = vlaneseq
    %v5801 = vshrl.u32 %v5800, 7
    %v5802 = vsub.s32 2, %v5801
    %v5803 = vrot.slane %v5790, %v5802
    %v5807 = vadd.f32 %v5787, %v5795
    %v5808 = vadd.f32 %v5788, %v5799
    %v5809 = vadd.f32 %v5789, %v5803
    %v5810 = vmax.f32 %v5807, 0.0
    %v5811 = vmax.f32 %v5808, 0.0
    %v5812 = vmax.f32 %v5809, 0.0
    %v5813 = vpack.c.bf16 %v5810, %v5810
    %v5814 = vpack.c.bf16 %v5811, %v5811
    %v5815 = vpack.c.bf16 %v5812, %v5812
    %v5816 = vld [vmem:[#allocation7] sm:$0xff]
    %v5817 = vld [vmem:[#allocation7 + $0x8] sm:$0xff]
    %v5818 = vld [vmem:[#allocation7 + $0x10] sm:$0xff]
    %v5819 = vld [vmem:[#allocation7 + $0x18] sm:$0xff]
    %v5820 = vld [vmem:[#allocation7 + $0x20] sm:$0xff]
    %v5821 = vld [vmem:[#allocation7 + $0x28] sm:$0xff]
    %v5822 = vld [vmem:[#allocation7 + $0x30] sm:$0xff]
    %v5823 = vld [vmem:[#allocation7 + $0x38] sm:$0xff]
    %v5824 = vld [vmem:[#allocation7 + $0x40] sm:$0xff]
    %v5825 = vld [vmem:[#allocation7 + $0x48] sm:$0xff]
    %v5826 = vld [vmem:[#allocation7 + $0x50] sm:$0xff]
    %v5827 = vld [vmem:[#allocation7 + $0x58] sm:$0xff]
    %v5828 = vld [vmem:[#allocation7 + $0x60] sm:$0xff]
    %v5829 = vld [vmem:[#allocation7 + $0x68] sm:$0xff]
    %v5830 = vld [vmem:[#allocation7 + $0x70] sm:$0xff]
    %v5831 = vld [vmem:[#allocation7 + $0x78] sm:$0xff]
    %v5832 = vld [vmem:[#allocation7 + $0x80] sm:$0xff]
    %v5833 = vld [vmem:[#allocation7 + $0x88] sm:$0xff]
    %v5834 = vld [vmem:[#allocation7 + $0x90] sm:$0xff]
    %v5835 = vld [vmem:[#allocation7 + $0x98] sm:$0xff]
    %v5836 = vld [vmem:[#allocation7 + $0xa0] sm:$0xff]
    %v5837 = vld [vmem:[#allocation7 + $0xa8] sm:$0xff]
    %v5838 = vld [vmem:[#allocation7 + $0xb0] sm:$0xff]
    %v5839 = vld [vmem:[#allocation7 + $0xb8] sm:$0xff]
    %v5840 = vld [vmem:[#allocation7 + $0xc0] sm:$0xff]
    %v5841 = vld [vmem:[#allocation7 + $0xc8] sm:$0xff]
    %v5842 = vld [vmem:[#allocation7 + $0xd0] sm:$0xff]
    %v5843 = vld [vmem:[#allocation7 + $0xd8] sm:$0xff]
    %v5844 = vld [vmem:[#allocation7 + $0xe0] sm:$0xff]
    %v5845 = vld [vmem:[#allocation7 + $0xe8] sm:$0xff]
    %v5846 = vld [vmem:[#allocation7 + $0xf0] sm:$0xff]
    %v5847 = vld [vmem:[#allocation7 + $0xf8] sm:$0xff]
    %v5848 = vld [vmem:[#allocation7 + $0x100] sm:$0xff]
    %v5849 = vld [vmem:[#allocation7 + $0x108] sm:$0xff]
    %v5850 = vld [vmem:[#allocation7 + $0x110] sm:$0xff]
    %v5851 = vld [vmem:[#allocation7 + $0x118] sm:$0xff]
    %v5852 = vld [vmem:[#allocation7 + $0x120] sm:$0xff]
    %v5853 = vld [vmem:[#allocation7 + $0x128] sm:$0xff]
    %v5854 = vld [vmem:[#allocation7 + $0x130] sm:$0xff]
    %v5855 = vld [vmem:[#allocation7 + $0x138] sm:$0xff]
    %v5856 = vld [vmem:[#allocation7 + $0x140] sm:$0xff]
    %v5857 = vld [vmem:[#allocation7 + $0x148] sm:$0xff]
    %v5858 = vld [vmem:[#allocation7 + $0x150] sm:$0xff]
    %v5859 = vld [vmem:[#allocation7 + $0x158] sm:$0xff]
    %v5860 = vld [vmem:[#allocation7 + $0x160] sm:$0xff]
    %v5861 = vld [vmem:[#allocation7 + $0x168] sm:$0xff]
    %v5862 = vld [vmem:[#allocation7 + $0x170] sm:$0xff]
    %v5863 = vld [vmem:[#allocation7 + $0x178] sm:$0xff]
    %v5864 = vld [vmem:[#allocation7 + $0x180] sm:$0xff]
    %v5865 = vld [vmem:[#allocation7 + $0x188] sm:$0xff]
    %v5866 = vld [vmem:[#allocation7 + $0x190] sm:$0xff]
    %v5867 = vld [vmem:[#allocation7 + $0x198] sm:$0xff]
    %v5868 = vld [vmem:[#allocation7 + $0x1a0] sm:$0xff]
    %v5869 = vld [vmem:[#allocation7 + $0x1a8] sm:$0xff]
    %v5870 = vld [vmem:[#allocation7 + $0x1b0] sm:$0xff]
    %v5871 = vld [vmem:[#allocation7 + $0x1b8] sm:$0xff]
    %v5872 = vld [vmem:[#allocation7 + $0x1c0] sm:$0xff]
    %v5873 = vld [vmem:[#allocation7 + $0x1c8] sm:$0xff]
    %v5874 = vld [vmem:[#allocation7 + $0x1d0] sm:$0xff]
    %v5875 = vld [vmem:[#allocation7 + $0x1d8] sm:$0xff]
    %v5876 = vld [vmem:[#allocation7 + $0x1e0] sm:$0xff]
    %v5877 = vld [vmem:[#allocation7 + $0x1e8] sm:$0xff]
    %v5878 = vld [vmem:[#allocation7 + $0x1f0] sm:$0xff]
    %v5879 = vld [vmem:[#allocation7 + $0x1f8] sm:$0xff]
    %v5880 = vld [vmem:[#allocation7 + $0x200] sm:$0xff]
    %v5881 = vld [vmem:[#allocation7 + $0x208] sm:$0xff]
    %v5882 = vld [vmem:[#allocation7 + $0x210] sm:$0xff]
    %v5883 = vld [vmem:[#allocation7 + $0x218] sm:$0xff]
    %v5884 = vld [vmem:[#allocation7 + $0x220] sm:$0xff]
    %v5885 = vld [vmem:[#allocation7 + $0x228] sm:$0xff]
    %v5886 = vld [vmem:[#allocation7 + $0x230] sm:$0xff]
    %v5887 = vld [vmem:[#allocation7 + $0x238] sm:$0xff]
    %v5888 = vld [vmem:[#allocation7 + $0x240] sm:$0xff]
    %v5889 = vld [vmem:[#allocation7 + $0x248] sm:$0xff]
    %v5890 = vld [vmem:[#allocation7 + $0x250] sm:$0xff]
    %v5891 = vld [vmem:[#allocation7 + $0x258] sm:$0xff]
    %v5892 = vld [vmem:[#allocation7 + $0x260] sm:$0xff]
    %v5893 = vld [vmem:[#allocation7 + $0x268] sm:$0xff]
    %v5894 = vld [vmem:[#allocation7 + $0x270] sm:$0xff]
    %v5895 = vld [vmem:[#allocation7 + $0x278] sm:$0xff]
    %v5896 = vld [vmem:[#allocation7 + $0x280] sm:$0xff]
    %v5897 = vld [vmem:[#allocation7 + $0x288] sm:$0xff]
    %v5898 = vld [vmem:[#allocation7 + $0x290] sm:$0xff]
    %v5899 = vld [vmem:[#allocation7 + $0x298] sm:$0xff]
    %v5900 = vld [vmem:[#allocation7 + $0x2a0] sm:$0xff]
    %v5901 = vld [vmem:[#allocation7 + $0x2a8] sm:$0xff]
    %v5902 = vld [vmem:[#allocation7 + $0x2b0] sm:$0xff]
    %v5903 = vld [vmem:[#allocation7 + $0x2b8] sm:$0xff]
    %v5904 = vld [vmem:[#allocation7 + $0x2c0] sm:$0xff]
    %v5905 = vld [vmem:[#allocation7 + $0x2c8] sm:$0xff]
    %v5906 = vld [vmem:[#allocation7 + $0x2d0] sm:$0xff]
    %v5907 = vld [vmem:[#allocation7 + $0x2d8] sm:$0xff]
    %v5908 = vld [vmem:[#allocation7 + $0x2e0] sm:$0xff]
    %v5909 = vld [vmem:[#allocation7 + $0x2e8] sm:$0xff]
    %v5910 = vld [vmem:[#allocation7 + $0x2f0] sm:$0xff]
    %v5911 = vld [vmem:[#allocation7 + $0x2f8] sm:$0xff]
    %v6008 = vunpack.c.l.b16 %v5816
    %v6009 = vunpack.c.h.b16 %v5816
    %v6010 = vunpack.c.l.b16 %v5817
    %v6011 = vunpack.c.h.b16 %v5817
    %v6012 = vunpack.c.l.b16 %v5818
    %v6013 = vunpack.c.h.b16 %v5818
    %v6014 = vunpack.c.l.b16 %v5819
    %v6015 = vunpack.c.h.b16 %v5819
    %v6016 = vunpack.c.l.b16 %v5820
    %v6017 = vunpack.c.h.b16 %v5820
    %v6018 = vunpack.c.l.b16 %v5821
    %v6019 = vunpack.c.h.b16 %v5821
    %v6020 = vunpack.c.l.b16 %v5822
    %v6021 = vunpack.c.h.b16 %v5822
    %v6022 = vunpack.c.l.b16 %v5823
    %v6023 = vunpack.c.h.b16 %v5823
    %v6024 = vunpack.c.l.b16 %v5824
    %v6025 = vunpack.c.h.b16 %v5824
    %v6026 = vunpack.c.l.b16 %v5825
    %v6027 = vunpack.c.h.b16 %v5825
    %v6028 = vunpack.c.l.b16 %v5826
    %v6029 = vunpack.c.h.b16 %v5826
    %v6030 = vunpack.c.l.b16 %v5827
    %v6031 = vunpack.c.h.b16 %v5827
    %v6032 = vunpack.c.l.b16 %v5828
    %v6033 = vunpack.c.h.b16 %v5828
    %v6034 = vunpack.c.l.b16 %v5829
    %v6035 = vunpack.c.h.b16 %v5829
    %v6036 = vunpack.c.l.b16 %v5830
    %v6037 = vunpack.c.h.b16 %v5830
    %v6038 = vunpack.c.l.b16 %v5831
    %v6039 = vunpack.c.h.b16 %v5831
    %v6040 = vunpack.c.l.b16 %v5832
    %v6041 = vunpack.c.h.b16 %v5832
    %v6042 = vunpack.c.l.b16 %v5833
    %v6043 = vunpack.c.h.b16 %v5833
    %v6044 = vunpack.c.l.b16 %v5834
    %v6045 = vunpack.c.h.b16 %v5834
    %v6046 = vunpack.c.l.b16 %v5835
    %v6047 = vunpack.c.h.b16 %v5835
    %v6048 = vunpack.c.l.b16 %v5836
    %v6049 = vunpack.c.h.b16 %v5836
    %v6050 = vunpack.c.l.b16 %v5837
    %v6051 = vunpack.c.h.b16 %v5837
    %v6052 = vunpack.c.l.b16 %v5838
    %v6053 = vunpack.c.h.b16 %v5838
    %v6054 = vunpack.c.l.b16 %v5839
    %v6055 = vunpack.c.h.b16 %v5839
    %v6056 = vunpack.c.l.b16 %v5840
    %v6057 = vunpack.c.h.b16 %v5840
    %v6058 = vunpack.c.l.b16 %v5841
    %v6059 = vunpack.c.h.b16 %v5841
    %v6060 = vunpack.c.l.b16 %v5842
    %v6061 = vunpack.c.h.b16 %v5842
    %v6062 = vunpack.c.l.b16 %v5843
    %v6063 = vunpack.c.h.b16 %v5843
    %v6064 = vunpack.c.l.b16 %v5844
    %v6065 = vunpack.c.h.b16 %v5844
    %v6066 = vunpack.c.l.b16 %v5845
    %v6067 = vunpack.c.h.b16 %v5845
    %v6068 = vunpack.c.l.b16 %v5846
    %v6069 = vunpack.c.h.b16 %v5846
    %v6070 = vunpack.c.l.b16 %v5847
    %v6071 = vunpack.c.h.b16 %v5847
    %v6072 = vunpack.c.l.b16 %v5848
    %v6073 = vunpack.c.h.b16 %v5848
    %v6074 = vunpack.c.l.b16 %v5849
    %v6075 = vunpack.c.h.b16 %v5849
    %v6076 = vunpack.c.l.b16 %v5850
    %v6077 = vunpack.c.h.b16 %v5850
    %v6078 = vunpack.c.l.b16 %v5851
    %v6079 = vunpack.c.h.b16 %v5851
    %v6080 = vunpack.c.l.b16 %v5852
    %v6081 = vunpack.c.h.b16 %v5852
    %v6082 = vunpack.c.l.b16 %v5853
    %v6083 = vunpack.c.h.b16 %v5853
    %v6084 = vunpack.c.l.b16 %v5854
    %v6085 = vunpack.c.h.b16 %v5854
    %v6086 = vunpack.c.l.b16 %v5855
    %v6087 = vunpack.c.h.b16 %v5855
    %v6088 = vunpack.c.l.b16 %v5856
    %v6089 = vunpack.c.h.b16 %v5856
    %v6090 = vunpack.c.l.b16 %v5857
    %v6091 = vunpack.c.h.b16 %v5857
    %v6092 = vunpack.c.l.b16 %v5858
    %v6093 = vunpack.c.h.b16 %v5858
    %v6094 = vunpack.c.l.b16 %v5859
    %v6095 = vunpack.c.h.b16 %v5859
    %v6096 = vunpack.c.l.b16 %v5860
    %v6097 = vunpack.c.h.b16 %v5860
    %v6098 = vunpack.c.l.b16 %v5861
    %v6099 = vunpack.c.h.b16 %v5861
    %v6100 = vunpack.c.l.b16 %v5862
    %v6101 = vunpack.c.h.b16 %v5862
    %v6102 = vunpack.c.l.b16 %v5863
    %v6103 = vunpack.c.h.b16 %v5863
    %v6104 = vunpack.c.l.b16 %v5864
    %v6105 = vunpack.c.h.b16 %v5864
    %v6106 = vunpack.c.l.b16 %v5865
    %v6107 = vunpack.c.h.b16 %v5865
    %v6108 = vunpack.c.l.b16 %v5866
    %v6109 = vunpack.c.h.b16 %v5866
    %v6110 = vunpack.c.l.b16 %v5867
    %v6111 = vunpack.c.h.b16 %v5867
    %v6112 = vunpack.c.l.b16 %v5868
    %v6113 = vunpack.c.h.b16 %v5868
    %v6114 = vunpack.c.l.b16 %v5869
    %v6115 = vunpack.c.h.b16 %v5869
    %v6116 = vunpack.c.l.b16 %v5870
    %v6117 = vunpack.c.h.b16 %v5870
    %v6118 = vunpack.c.l.b16 %v5871
    %v6119 = vunpack.c.h.b16 %v5871
    %v6120 = vunpack.c.l.b16 %v5872
    %v6121 = vunpack.c.h.b16 %v5872
    %v6122 = vunpack.c.l.b16 %v5873
    %v6123 = vunpack.c.h.b16 %v5873
    %v6124 = vunpack.c.l.b16 %v5874
    %v6125 = vunpack.c.h.b16 %v5874
    %v6126 = vunpack.c.l.b16 %v5875
    %v6127 = vunpack.c.h.b16 %v5875
    %v6128 = vunpack.c.l.b16 %v5876
    %v6129 = vunpack.c.h.b16 %v5876
    %v6130 = vunpack.c.l.b16 %v5877
    %v6131 = vunpack.c.h.b16 %v5877
    %v6132 = vunpack.c.l.b16 %v5878
    %v6133 = vunpack.c.h.b16 %v5878
    %v6134 = vunpack.c.l.b16 %v5879
    %v6135 = vunpack.c.h.b16 %v5879
    %v6136 = vunpack.c.l.b16 %v5880
    %v6137 = vunpack.c.h.b16 %v5880
    %v6138 = vunpack.c.l.b16 %v5881
    %v6139 = vunpack.c.h.b16 %v5881
    %v6140 = vunpack.c.l.b16 %v5882
    %v6141 = vunpack.c.h.b16 %v5882
    %v6142 = vunpack.c.l.b16 %v5883
    %v6143 = vunpack.c.h.b16 %v5883
    %v6144 = vunpack.c.l.b16 %v5884
    %v6145 = vunpack.c.h.b16 %v5884
    %v6146 = vunpack.c.l.b16 %v5885
    %v6147 = vunpack.c.h.b16 %v5885
    %v6148 = vunpack.c.l.b16 %v5886
    %v6149 = vunpack.c.h.b16 %v5886
    %v6150 = vunpack.c.l.b16 %v5887
    %v6151 = vunpack.c.h.b16 %v5887
    %v6152 = vunpack.c.l.b16 %v5888
    %v6153 = vunpack.c.h.b16 %v5888
    %v6154 = vunpack.c.l.b16 %v5889
    %v6155 = vunpack.c.h.b16 %v5889
    %v6156 = vunpack.c.l.b16 %v5890
    %v6157 = vunpack.c.h.b16 %v5890
    %v6158 = vunpack.c.l.b16 %v5891
    %v6159 = vunpack.c.h.b16 %v5891
    %v6160 = vunpack.c.l.b16 %v5892
    %v6161 = vunpack.c.h.b16 %v5892
    %v6162 = vunpack.c.l.b16 %v5893
    %v6163 = vunpack.c.h.b16 %v5893
    %v6164 = vunpack.c.l.b16 %v5894
    %v6165 = vunpack.c.h.b16 %v5894
    %v6166 = vunpack.c.l.b16 %v5895
    %v6167 = vunpack.c.h.b16 %v5895
    %v6168 = vunpack.c.l.b16 %v5896
    %v6169 = vunpack.c.h.b16 %v5896
    %v6170 = vunpack.c.l.b16 %v5897
    %v6171 = vunpack.c.h.b16 %v5897
    %v6172 = vunpack.c.l.b16 %v5898
    %v6173 = vunpack.c.h.b16 %v5898
    %v6174 = vunpack.c.l.b16 %v5899
    %v6175 = vunpack.c.h.b16 %v5899
    %v6176 = vunpack.c.l.b16 %v5900
    %v6177 = vunpack.c.h.b16 %v5900
    %v6178 = vunpack.c.l.b16 %v5901
    %v6179 = vunpack.c.h.b16 %v5901
    %v6180 = vunpack.c.l.b16 %v5902
    %v6181 = vunpack.c.h.b16 %v5902
    %v6182 = vunpack.c.l.b16 %v5903
    %v6183 = vunpack.c.h.b16 %v5903
    %v6184 = vunpack.c.l.b16 %v5904
    %v6185 = vunpack.c.h.b16 %v5904
    %v6186 = vunpack.c.l.b16 %v5905
    %v6187 = vunpack.c.h.b16 %v5905
    %v6188 = vunpack.c.l.b16 %v5906
    %v6189 = vunpack.c.h.b16 %v5906
    %v6190 = vunpack.c.l.b16 %v5907
    %v6191 = vunpack.c.h.b16 %v5907
    %v6192 = vunpack.c.l.b16 %v5908
    %v6193 = vunpack.c.h.b16 %v5908
    %v6194 = vunpack.c.l.b16 %v5909
    %v6195 = vunpack.c.h.b16 %v5909
    %v6196 = vunpack.c.l.b16 %v5910
    %v6197 = vunpack.c.h.b16 %v5910
    %v6198 = vunpack.c.l.b16 %v5911
    %v6199 = vunpack.c.h.b16 %v5911
    %v6200 = vpack.c.b16 %v6012, %v6008
    %v6201 = vpack.c.b16 %v6013, %v6009
    %v6202 = vpack.c.b16 %v6014, %v6010
    %v6203 = vpack.c.b16 %v6015, %v6011
    %v6204 = vpack.c.b16 %v6020, %v6016
    %v6205 = vpack.c.b16 %v6021, %v6017
    %v6206 = vpack.c.b16 %v6022, %v6018
    %v6207 = vpack.c.b16 %v6023, %v6019
    %v6208 = vpack.c.b16 %v6028, %v6024
    %v6209 = vpack.c.b16 %v6029, %v6025
    %v6210 = vpack.c.b16 %v6030, %v6026
    %v6211 = vpack.c.b16 %v6031, %v6027
    %v6212 = vpack.c.b16 %v6036, %v6032
    %v6213 = vpack.c.b16 %v6037, %v6033
    %v6214 = vpack.c.b16 %v6038, %v6034
    %v6215 = vpack.c.b16 %v6039, %v6035
    %v6216 = vpack.c.b16 %v6044, %v6040
    %v6217 = vpack.c.b16 %v6045, %v6041
    %v6218 = vpack.c.b16 %v6046, %v6042
    %v6219 = vpack.c.b16 %v6047, %v6043
    %v6220 = vpack.c.b16 %v6052, %v6048
    %v6221 = vpack.c.b16 %v6053, %v6049
    %v6222 = vpack.c.b16 %v6054, %v6050
    %v6223 = vpack.c.b16 %v6055, %v6051
    %v6224 = vpack.c.b16 %v6060, %v6056
    %v6225 = vpack.c.b16 %v6061, %v6057
    %v6226 = vpack.c.b16 %v6062, %v6058
    %v6227 = vpack.c.b16 %v6063, %v6059
    %v6228 = vpack.c.b16 %v6068, %v6064
    %v6229 = vpack.c.b16 %v6069, %v6065
    %v6230 = vpack.c.b16 %v6070, %v6066
    %v6231 = vpack.c.b16 %v6071, %v6067
    %v6232 = vpack.c.b16 %v6076, %v6072
    %v6233 = vpack.c.b16 %v6077, %v6073
    %v6234 = vpack.c.b16 %v6078, %v6074
    %v6235 = vpack.c.b16 %v6079, %v6075
    %v6236 = vpack.c.b16 %v6084, %v6080
    %v6237 = vpack.c.b16 %v6085, %v6081
    %v6238 = vpack.c.b16 %v6086, %v6082
    %v6239 = vpack.c.b16 %v6087, %v6083
    %v6240 = vpack.c.b16 %v6092, %v6088
    %v6241 = vpack.c.b16 %v6093, %v6089
    %v6242 = vpack.c.b16 %v6094, %v6090
    %v6243 = vpack.c.b16 %v6095, %v6091
    %v6244 = vpack.c.b16 %v6100, %v6096
    %v6245 = vpack.c.b16 %v6101, %v6097
    %v6246 = vpack.c.b16 %v6102, %v6098
    %v6247 = vpack.c.b16 %v6103, %v6099
    %v6248 = vpack.c.b16 %v6108, %v6104
    %v6249 = vpack.c.b16 %v6109, %v6105
    %v6250 = vpack.c.b16 %v6110, %v6106
    %v6251 = vpack.c.b16 %v6111, %v6107
    %v6252 = vpack.c.b16 %v6116, %v6112
    %v6253 = vpack.c.b16 %v6117, %v6113
    %v6254 = vpack.c.b16 %v6118, %v6114
    %v6255 = vpack.c.b16 %v6119, %v6115
    %v6256 = vpack.c.b16 %v6124, %v6120
    %v6257 = vpack.c.b16 %v6125, %v6121
    %v6258 = vpack.c.b16 %v6126, %v6122
    %v6259 = vpack.c.b16 %v6127, %v6123
    %v6260 = vpack.c.b16 %v6132, %v6128
    %v6261 = vpack.c.b16 %v6133, %v6129
    %v6262 = vpack.c.b16 %v6134, %v6130
    %v6263 = vpack.c.b16 %v6135, %v6131
    %v6264 = vpack.c.b16 %v6140, %v6136
    %v6265 = vpack.c.b16 %v6141, %v6137
    %v6266 = vpack.c.b16 %v6142, %v6138
    %v6267 = vpack.c.b16 %v6143, %v6139
    %v6268 = vpack.c.b16 %v6148, %v6144
    %v6269 = vpack.c.b16 %v6149, %v6145
    %v6270 = vpack.c.b16 %v6150, %v6146
    %v6271 = vpack.c.b16 %v6151, %v6147
    %v6272 = vpack.c.b16 %v6156, %v6152
    %v6273 = vpack.c.b16 %v6157, %v6153
    %v6274 = vpack.c.b16 %v6158, %v6154
    %v6275 = vpack.c.b16 %v6159, %v6155
    %v6276 = vpack.c.b16 %v6164, %v6160
    %v6277 = vpack.c.b16 %v6165, %v6161
    %v6278 = vpack.c.b16 %v6166, %v6162
    %v6279 = vpack.c.b16 %v6167, %v6163
    %v6280 = vpack.c.b16 %v6172, %v6168
    %v6281 = vpack.c.b16 %v6173, %v6169
    %v6282 = vpack.c.b16 %v6174, %v6170
    %v6283 = vpack.c.b16 %v6175, %v6171
    %v6284 = vpack.c.b16 %v6180, %v6176
    %v6285 = vpack.c.b16 %v6181, %v6177
    %v6286 = vpack.c.b16 %v6182, %v6178
    %v6287 = vpack.c.b16 %v6183, %v6179
    %v6288 = vpack.c.b16 %v6188, %v6184
    %v6289 = vpack.c.b16 %v6189, %v6185
    %v6290 = vpack.c.b16 %v6190, %v6186
    %v6291 = vpack.c.b16 %v6191, %v6187
    %v6292 = vpack.c.b16 %v6196, %v6192
    %v6293 = vpack.c.b16 %v6197, %v6193
    %v6294 = vpack.c.b16 %v6198, %v6194
    %v6295 = vpack.c.b16 %v6199, %v6195
    %6392 = vmatprep.subr.bf16.mxu0 %v6201
    %6393 = vmatpush1.bf16.msra.mxu0 %v6200
    %6394 = vmatprep.subr.bf16.mxu0 %v6205
    %6395 = vmatpush1.bf16.msra.mxu0 %v6204
    %6396 = vmatprep.subr.bf16.mxu0 %v6209
    %6397 = vmatpush1.bf16.msra.mxu0 %v6208
    %6398 = vmatprep.subr.bf16.mxu0 %v6213
    %6399 = vmatpush1.bf16.msra.mxu0 %v6212
    %6400 = vmatprep.subr.bf16.mxu0 %v6217
    %6401 = vmatpush1.bf16.msra.mxu0 %v6216
    %6402 = vmatprep.subr.bf16.mxu0 %v6221
    %6403 = vmatpush1.bf16.msra.mxu0 %v6220
    %6404 = vmatprep.subr.bf16.mxu0 %v6225
    %6405 = vmatpush1.bf16.msra.mxu0 %v6224
    %6406 = vmatprep.subr.bf16.mxu0 %v6229
    %6407 = vmatpush1.bf16.msra.mxu0 %v6228
    %6408 = vmatprep.subr.bf16.mxu0 %v6233
    %6409 = vmatpush1.bf16.msra.mxu0 %v6232
    %6410 = vmatprep.subr.bf16.mxu0 %v6237
    %6411 = vmatpush1.bf16.msra.mxu0 %v6236
    %6412 = vmatprep.subr.bf16.mxu0 %v6241
    %6413 = vmatpush1.bf16.msra.mxu0 %v6240
    %6414 = vmatprep.subr.bf16.mxu0 %v6245
    %6415 = vmatpush1.bf16.msra.mxu0 %v6244
    %6416 = vmatprep.subr.bf16.mxu0 %v6249
    %6417 = vmatpush1.bf16.msra.mxu0 %v6248
    %6418 = vmatprep.subr.bf16.mxu0 %v6253
    %6419 = vmatpush1.bf16.msra.mxu0 %v6252
    %6420 = vmatprep.subr.bf16.mxu0 %v6257
    %6421 = vmatpush1.bf16.msra.mxu0 %v6256
    %6422 = vmatprep.subr.bf16.mxu0 %v6261
    %6423 = vmatpush1.bf16.msra.mxu0 %v6260
    %6424 = vmatprep.mubr.bf16.mxu0 %v5814
    %6425 = vmatmul.mubr.bf16.gmra.mrb[0].mxu0 %v5813
    %v6426 = vpop.f32.mrb[0].mxu0
    %v6427 = vadd.f32 0.0, %v6426
    %v6428 = vpop.f32.mrb[0].mxu0
    %v6429 = vadd.f32 0.0, %v6428
    %v6430 = vpop.f32.mrb[0].mxu0
    %v6431 = vpop.f32.mrb[0].mxu0
    %6432 = vdwg.mxu0
    %6433 = vmatprep.subr.bf16.mxu0 %v6265
    %6434 = vmatpush1.bf16.msra.mxu0 %v6264
    %6435 = vmatprep.subr.bf16.mxu0 %v6269
    %6436 = vmatpush1.bf16.msra.mxu0 %v6268
    %6437 = vmatprep.subr.bf16.mxu0 %v6273
    %6438 = vmatpush1.bf16.msra.mxu0 %v6272
    %6439 = vmatprep.subr.bf16.mxu0 %v6277
    %6440 = vmatpush1.bf16.msra.mxu0 %v6276
    %6441 = vmatprep.subr.bf16.mxu0 %v6281
    %6442 = vmatpush1.bf16.msra.mxu0 %v6280
    %6443 = vmatprep.subr.bf16.mxu0 %v6285
    %6444 = vmatpush1.bf16.msra.mxu0 %v6284
    %6445 = vmatprep.subr.bf16.mxu0 %v6289
    %6446 = vmatpush1.bf16.msra.mxu0 %v6288
    %6447 = vmatprep.subr.bf16.mxu0 %v6293
    %6448 = vmatpush1.bf16.msra.mxu0 %v6292
    %6449 = vmatprep.subr.bf16.mxu0 0
    %6450 = vmatpush1.bf16.msra.mxu0 0
    %6451 = vmatprep.subr.bf16.mxu0 0
    %6452 = vmatpush1.bf16.msra.mxu0 0
    %6453 = vmatprep.subr.bf16.mxu0 0
    %6454 = vmatpush1.bf16.msra.mxu0 0
    %6455 = vmatprep.subr.bf16.mxu0 0
    %6456 = vmatpush1.bf16.msra.mxu0 0
    %6457 = vmatprep.subr.bf16.mxu0 0
    %6458 = vmatpush1.bf16.msra.mxu0 0
    %6459 = vmatprep.subr.bf16.mxu0 0
    %6460 = vmatpush1.bf16.msra.mxu0 0
    %6461 = vmatprep.subr.bf16.mxu0 0
    %6462 = vmatpush1.bf16.msra.mxu0 0
    %6463 = vmatprep.subr.bf16.mxu0 0
    %6464 = vmatpush1.bf16.msra.mxu0 0
    %6465 = vmatprep.mubr.bf16.mxu0 0
    %6466 = vmatmul.mubr.bf16.gmra.mrb[0].mxu0 %v5815
    %v6467 = vpop.f32.mrb[0].mxu0
    %v6468 = vadd.f32 %v6427, %v6467
    %v6469 = vpop.f32.mrb[0].mxu0
    %v6470 = vadd.f32 %v6429, %v6469
    %v6471 = vpop.f32.mrb[0].mxu0
    %v6472 = vpop.f32.mrb[0].mxu0
    %6473 = vdwg.mxu0
    %6474 = vmatprep.subr.bf16.mxu0 %v6203
    %6475 = vmatpush1.bf16.msra.mxu0 %v6202
    %6476 = vmatprep.subr.bf16.mxu0 %v6207
    %6477 = vmatpush1.bf16.msra.mxu0 %v6206
    %6478 = vmatprep.subr.bf16.mxu0 %v6211
    %6479 = vmatpush1.bf16.msra.mxu0 %v6210
    %6480 = vmatprep.subr.bf16.mxu0 %v6215
    %6481 = vmatpush1.bf16.msra.mxu0 %v6214
    %6482 = vmatprep.subr.bf16.mxu0 %v6219
    %6483 = vmatpush1.bf16.msra.mxu0 %v6218
    %6484 = vmatprep.subr.bf16.mxu0 %v6223
    %6485 = vmatpush1.bf16.msra.mxu0 %v6222
    %6486 = vmatprep.subr.bf16.mxu0 %v6227
    %6487 = vmatpush1.bf16.msra.mxu0 %v6226
    %6488 = vmatprep.subr.bf16.mxu0 %v6231
    %6489 = vmatpush1.bf16.msra.mxu0 %v6230
    %6490 = vmatprep.subr.bf16.mxu0 %v6235
    %6491 = vmatpush1.bf16.msra.mxu0 %v6234
    %6492 = vmatprep.subr.bf16.mxu0 %v6239
    %6493 = vmatpush1.bf16.msra.mxu0 %v6238
    %6494 = vmatprep.subr.bf16.mxu0 %v6243
    %6495 = vmatpush1.bf16.msra.mxu0 %v6242
    %6496 = vmatprep.subr.bf16.mxu0 %v6247
    %6497 = vmatpush1.bf16.msra.mxu0 %v6246
    %6498 = vmatprep.subr.bf16.mxu0 %v6251
    %6499 = vmatpush1.bf16.msra.mxu0 %v6250
    %6500 = vmatprep.subr.bf16.mxu0 %v6255
    %6501 = vmatpush1.bf16.msra.mxu0 %v6254
    %6502 = vmatprep.subr.bf16.mxu0 %v6259
    %6503 = vmatpush1.bf16.msra.mxu0 %v6258
    %6504 = vmatprep.subr.bf16.mxu0 %v6263
    %6505 = vmatpush1.bf16.msra.mxu0 %v6262
    %6506 = vmatprep.mubr.bf16.mxu0 %v5814
    %6507 = vmatmul.mubr.bf16.gmra.mrb[0].mxu0 %v5813
    %v6508 = vpop.f32.mrb[0].mxu0
    %v6509 = vadd.f32 0.0, %v6508
    %v6510 = vpop.f32.mrb[0].mxu0
    %v6511 = vadd.f32 0.0, %v6510
    %v6512 = vpop.f32.mrb[0].mxu0
    %v6513 = vpop.f32.mrb[0].mxu0
    %6514 = vdwg.mxu0
    %6515 = vmatprep.subr.bf16.mxu0 %v6267
    %6516 = vmatpush1.bf16.msra.mxu0 %v6266
    %6517 = vmatprep.subr.bf16.mxu0 %v6271
    %6518 = vmatpush1.bf16.msra.mxu0 %v6270
    %6519 = vmatprep.subr.bf16.mxu0 %v6275
    %6520 = vmatpush1.bf16.msra.mxu0 %v6274
    %6521 = vmatprep.subr.bf16.mxu0 %v6279
    %6522 = vmatpush1.bf16.msra.mxu0 %v6278
    %6523 = vmatprep.subr.bf16.mxu0 %v6283
    %6524 = vmatpush1.bf16.msra.mxu0 %v6282
    %6525 = vmatprep.subr.bf16.mxu0 %v6287
    %6526 = vmatpush1.bf16.msra.mxu0 %v6286
    %6527 = vmatprep.subr.bf16.mxu0 %v6291
    %6528 = vmatpush1.bf16.msra.mxu0 %v6290
    %6529 = vmatprep.subr.bf16.mxu0 %v6295
    %6530 = vmatpush1.bf16.msra.mxu0 %v6294
    %6531 = vmatprep.subr.bf16.mxu0 0
    %6532 = vmatpush1.bf16.msra.mxu0 0
    %6533 = vmatprep.subr.bf16.mxu0 0
    %6534 = vmatpush1.bf16.msra.mxu0 0
    %6535 = vmatprep.subr.bf16.mxu0 0
    %6536 = vmatpush1.bf16.msra.mxu0 0
    %6537 = vmatprep.subr.bf16.mxu0 0
    %6538 = vmatpush1.bf16.msra.mxu0 0
    %6539 = vmatprep.subr.bf16.mxu0 0
    %6540 = vmatpush1.bf16.msra.mxu0 0
    %6541 = vmatprep.subr.bf16.mxu0 0
    %6542 = vmatpush1.bf16.msra.mxu0 0
    %6543 = vmatprep.subr.bf16.mxu0 0
    %6544 = vmatpush1.bf16.msra.mxu0 0
    %6545 = vmatprep.subr.bf16.mxu0 0
    %6546 = vmatpush1.bf16.msra.mxu0 0
    %6547 = vmatprep.mubr.bf16.mxu0 0
    %6548 = vmatmul.mubr.bf16.gmra.mrb[0].mxu0 %v5815
    %v6549 = vpop.f32.mrb[0].mxu0
    %v6550 = vadd.f32 %v6509, %v6549
    %v6551 = vpop.f32.mrb[0].mxu0
    %v6552 = vadd.f32 %v6511, %v6551
    %v6553 = vpop.f32.mrb[0].mxu0
    %v6554 = vpop.f32.mrb[0].mxu0
    %6555 = vdwg.mxu0
    %v6556 = vmax.f32 %v6468, %v6470
    %v6557 = vmax.f32 %v6550, %v6552
    %v6558 = vmax.f32 %v6556, %v6557
    %v6559 = vld [vmem:[#allocation8] sm:$0x1]
    %v6561 = vlaneseq
    %v6562 = vshrl.u32 %v6561, 7
    %v6563 = vsub.s32 0, %v6562
    %v6564 = vrot.slane %v6559, %v6563
    %v6566 = vadd.f32 %v6558, %v6564
    %v6567 = vmax.f32 %v6566, 0.0
    %v6568 = vpack.c.bf16 %v6567, %v6567
    %v6569 = vld [vmem:[#allocation10] sm:$0xf]
    %v6570 = vld [vmem:[#allocation10 + $0x4] sm:$0xf]
    %v6571 = vld [vmem:[#allocation10 + $0x8] sm:$0xf]
    %v6572 = vld [vmem:[#allocation10 + $0xc] sm:$0xf]
    %v6573 = vld [vmem:[#allocation10 + $0x10] sm:$0xf]
    %v6574 = vld [vmem:[#allocation10 + $0x14] sm:$0xf]
    %v6575 = vld [vmem:[#allocation10 + $0x18] sm:$0xf]
    %v6576 = vld [vmem:[#allocation10 + $0x1c] sm:$0xf]
    %v6577 = vld [vmem:[#allocation10 + $0x20] sm:$0xf]
    %v6578 = vld [vmem:[#allocation10 + $0x24] sm:$0xf]
    %v6579 = vld [vmem:[#allocation10 + $0x28] sm:$0xf]
    %v6580 = vld [vmem:[#allocation10 + $0x2c] sm:$0xf]
    %v6581 = vld [vmem:[#allocation10 + $0x30] sm:$0xf]
    %v6582 = vld [vmem:[#allocation10 + $0x34] sm:$0xf]
    %v6583 = vld [vmem:[#allocation10 + $0x38] sm:$0xf]
    %v6584 = vld [vmem:[#allocation10 + $0x3c] sm:$0xf]
    %v6585 = vld [vmem:[#allocation11] sm:$0x1]
    %v6587 = vlaneseq
    %v6588 = vshrl.u32 %v6587, 7
    %v6589 = vsub.s32 0, %v6588
    %v6590 = vrot.slane %v6585, %v6589
    %v6608 = vunpack.c.l.b16 %v6569
    %v6609 = vunpack.c.l.b16 %v6570
    %v6610 = vunpack.c.l.b16 %v6571
    %v6611 = vunpack.c.l.b16 %v6572
    %v6612 = vunpack.c.l.b16 %v6573
    %v6613 = vunpack.c.l.b16 %v6574
    %v6614 = vunpack.c.l.b16 %v6575
    %v6615 = vunpack.c.l.b16 %v6576
    %v6616 = vunpack.c.l.b16 %v6577
    %v6617 = vunpack.c.l.b16 %v6578
    %v6618 = vunpack.c.l.b16 %v6579
    %v6619 = vunpack.c.l.b16 %v6580
    %v6620 = vunpack.c.l.b16 %v6581
    %v6621 = vunpack.c.l.b16 %v6582
    %v6622 = vunpack.c.l.b16 %v6583
    %v6623 = vunpack.c.l.b16 %v6584
    %v6624 = vpack.c.b16 %v6609, %v6608
    %v6625 = vpack.c.b16 %v6611, %v6610
    %v6626 = vpack.c.b16 %v6613, %v6612
    %v6627 = vpack.c.b16 %v6615, %v6614
    %v6628 = vpack.c.b16 %v6617, %v6616
    %v6629 = vpack.c.b16 %v6619, %v6618
    %v6630 = vpack.c.b16 %v6621, %v6620
    %v6631 = vpack.c.b16 %v6623, %v6622
    %6640 = vmatprep.subr.bf16.mxu0 0
    %6641 = vmatpush1.bf16.msra.mxu0 %v6624
    %6642 = vmatprep.subr.bf16.mxu0 0
    %6643 = vmatpush1.bf16.msra.mxu0 %v6625
    %6644 = vmatprep.subr.bf16.mxu0 0
    %6645 = vmatpush1.bf16.msra.mxu0 %v6626
    %6646 = vmatprep.subr.bf16.mxu0 0
    %6647 = vmatpush1.bf16.msra.mxu0 %v6627
    %6648 = vmatprep.subr.bf16.mxu0 0
    %6649 = vmatpush1.bf16.msra.mxu0 %v6628
    %6650 = vmatprep.subr.bf16.mxu0 0
    %6651 = vmatpush1.bf16.msra.mxu0 %v6629
    %6652 = vmatprep.subr.bf16.mxu0 0
    %6653 = vmatpush1.bf16.msra.mxu0 %v6630
    %6654 = vmatprep.subr.bf16.mxu0 0
    %6655 = vmatpush1.bf16.msra.mxu0 %v6631
    %6656 = vmatprep.subr.bf16.mxu0 0
    %6657 = vmatpush1.bf16.msra.mxu0 0
    %6658 = vmatprep.subr.bf16.mxu0 0
    %6659 = vmatpush1.bf16.msra.mxu0 0
    %6660 = vmatprep.subr.bf16.mxu0 0
    %6661 = vmatpush1.bf16.msra.mxu0 0
    %6662 = vmatprep.subr.bf16.mxu0 0
    %6663 = vmatpush1.bf16.msra.mxu0 0
    %6664 = vmatprep.subr.bf16.mxu0 0
    %6665 = vmatpush1.bf16.msra.mxu0 0
    %6666 = vmatprep.subr.bf16.mxu0 0
    %6667 = vmatpush1.bf16.msra.mxu0 0
    %6668 = vmatprep.subr.bf16.mxu0 0
    %6669 = vmatpush1.bf16.msra.mxu0 0
    %6670 = vmatprep.subr.bf16.mxu0 0
    %6671 = vmatpush1.bf16.msra.mxu0 0
    %6672 = vmatprep.mubr.bf16.mxu0 0
    %6673 = vmatmul.mubr.bf16.gmra.mrb[0].mxu0 %v6568
    %v6674 = vpop.f32.mrb[0].mxu0
    %v6675 = vadd.f32 %v6590, %v6674
    %v6676 = vpop.f32.mrb[0].mxu0
    %v6677 = vpop.f32.mrb[0].mxu0
    %v6678 = vpop.f32.mrb[0].mxu0
    %6679 = vdwg.mxu0
    %v6680 = vmax.f32 %v6675, 0.0
    %v6681 = vpack.c.bf16 %v6680, %v6680
    %v6682 = vld [vmem:[#allocation13] sm:$0xf]
    %v6683 = vld [vmem:[#allocation13 + $0x4] sm:$0xf]
    %v6684 = vld [vmem:[#allocation13 + $0x8] sm:$0xf]
    %v6685 = vld [vmem:[#allocation13 + $0xc] sm:$0xf]
    %v6686 = vld [vmem:[#allocation13 + $0x10] sm:$0xf]
    %v6687 = vld [vmem:[#allocation13 + $0x14] sm:$0xf]
    %v6688 = vld [vmem:[#allocation13 + $0x18] sm:$0xf]
    %v6689 = vld [vmem:[#allocation13 + $0x1c] sm:$0xf]
    %v6690 = vld [vmem:[#allocation13 + $0x20] sm:$0xf]
    %v6691 = vld [vmem:[#allocation13 + $0x24] sm:$0xf]
    %v6692 = vld [vmem:[#allocation13 + $0x28] sm:$0xf]
    %v6693 = vld [vmem:[#allocation13 + $0x2c] sm:$0xf]
    %v6694 = vld [vmem:[#allocation13 + $0x30] sm:$0xf]
    %v6695 = vld [vmem:[#allocation13 + $0x34] sm:$0xf]
    %v6696 = vld [vmem:[#allocation13 + $0x38] sm:$0xf]
    %v6697 = vld [vmem:[#allocation13 + $0x3c] sm:$0xf]
    %v6698 = vld [vmem:[#allocation14] sm:$0x1]
    %v6700 = vlaneseq
    %v6701 = vshrl.u32 %v6700, 7
    %v6702 = vsub.s32 0, %v6701
    %v6703 = vrot.slane %v6698, %v6702
    %v6721 = vunpack.c.l.b16 %v6682
    %v6722 = vunpack.c.l.b16 %v6683
    %v6723 = vunpack.c.l.b16 %v6684
    %v6724 = vunpack.c.l.b16 %v6685
    %v6725 = vunpack.c.l.b16 %v6686
    %v6726 = vunpack.c.l.b16 %v6687
    %v6727 = vunpack.c.l.b16 %v6688
    %v6728 = vunpack.c.l.b16 %v6689
    %v6729 = vunpack.c.l.b16 %v6690
    %v6730 = vunpack.c.l.b16 %v6691
    %v6731 = vunpack.c.l.b16 %v6692
    %v6732 = vunpack.c.l.b16 %v6693
    %v6733 = vunpack.c.l.b16 %v6694
    %v6734 = vunpack.c.l.b16 %v6695
    %v6735 = vunpack.c.l.b16 %v6696
    %v6736 = vunpack.c.l.b16 %v6697
    %v6737 = vpack.c.b16 %v6722, %v6721
    %v6738 = vpack.c.b16 %v6724, %v6723
    %v6739 = vpack.c.b16 %v6726, %v6725
    %v6740 = vpack.c.b16 %v6728, %v6727
    %v6741 = vpack.c.b16 %v6730, %v6729
    %v6742 = vpack.c.b16 %v6732, %v6731
    %v6743 = vpack.c.b16 %v6734, %v6733
    %v6744 = vpack.c.b16 %v6736, %v6735
    %6753 = vmatprep.subr.bf16.mxu0 0
    %6754 = vmatpush1.bf16.msra.mxu0 %v6737
    %6755 = vmatprep.subr.bf16.mxu0 0
    %6756 = vmatpush1.bf16.msra.mxu0 %v6738
    %6757 = vmatprep.subr.bf16.mxu0 0
    %6758 = vmatpush1.bf16.msra.mxu0 %v6739
    %6759 = vmatprep.subr.bf16.mxu0 0
    %6760 = vmatpush1.bf16.msra.mxu0 %v6740
    %6761 = vmatprep.subr.bf16.mxu0 0
    %6762 = vmatpush1.bf16.msra.mxu0 %v6741
    %6763 = vmatprep.subr.bf16.mxu0 0
    %6764 = vmatpush1.bf16.msra.mxu0 %v6742
    %6765 = vmatprep.subr.bf16.mxu0 0
    %6766 = vmatpush1.bf16.msra.mxu0 %v6743
    %6767 = vmatprep.subr.bf16.mxu0 0
    %6768 = vmatpush1.bf16.msra.mxu0 %v6744
    %6769 = vmatprep.subr.bf16.mxu0 0
    %6770 = vmatpush1.bf16.msra.mxu0 0
    %6771 = vmatprep.subr.bf16.mxu0 0
    %6772 = vmatpush1.bf16.msra.mxu0 0
    %6773 = vmatprep.subr.bf16.mxu0 0
    %6774 = vmatpush1.bf16.msra.mxu0 0
    %6775 = vmatprep.subr.bf16.mxu0 0
    %6776 = vmatpush1.bf16.msra.mxu0 0
    %6777 = vmatprep.subr.bf16.mxu0 0
    %6778 = vmatpush1.bf16.msra.mxu0 0
    %6779 = vmatprep.subr.bf16.mxu0 0
    %6780 = vmatpush1.bf16.msra.mxu0 0
    %6781 = vmatprep.subr.bf16.mxu0 0
    %6782 = vmatpush1.bf16.msra.mxu0 0
    %6783 = vmatprep.subr.bf16.mxu0 0
    %6784 = vmatpush1.bf16.msra.mxu0 0
    %6785 = vmatprep.mubr.bf16.mxu0 0
    %6786 = vmatmul.mubr.bf16.gmra.mrb[0].mxu0 %v6681
    %v6787 = vpop.f32.mrb[0].mxu0
    %v6788 = vadd.f32 %v6703, %v6787
    %v6789 = vpop.f32.mrb[0].mxu0
    %v6790 = vpop.f32.mrb[0].mxu0
    %v6791 = vpop.f32.mrb[0].mxu0
    %6792 = vdwg.mxu0
    %6793 = vst [vmem:[#allocation16] sm:$0x3] %v6788
    // Predicated region
    $region70: #{convnet_forward.1} parent=1 // pred_check
      _
    $region71: #{convnet_forward.1} parent=1 // pred_check_branch
      %6795 = sbr.rel (0) target = $region73
    $region72: #{convnet_forward.1} parent=1 // pred_region
      %s6797 = ssub.s32 32, 32
      %6798 = vsyncadd [#allocation4], %s6797
      %s6800 = sshll.u32 [#allocation16], 4
      %s6801 = int_to_ptr.vmem [resolvable:$true] %s6800
      %6803 = dma.vmem_to_hbm [thread:$0]  %s6801, 32, %s9, [#allocation4]
    $region73: #{convnet_forward.1} parent=1 // pred_fallthru
      _
    // Predicated region
    $region74: #{convnet_forward.1} parent=1 // pred_check
      _
    $region75: #{convnet_forward.1} parent=1 // pred_check_branch
      %6805 = sbr.rel (0) target = $region77
    $region76: #{convnet_forward.1} parent=1 // pred_region
      %6806 = dma.done [#allocation4], 32
    $region77: #{convnet_forward.1} parent=1 // pred_fallthru
      _
    %6807 = vsyncpa [#allocation3], 1
    %6808 = vsyncpa [#allocation6], 1
    %6809 = vsyncpa [#allocation9], 1
    %6810 = vsyncpa [#allocation12], 1
    %6811 = vsyncpa [#allocation15], 1
    %6812 = vsyncpa [#allocation4], 1

</llo_original>
